<compile_context>
chip_gen: v7x
topology: tpu7x:2x2x1
jax: 0.10.0
libtpu: 0.0.40
codegen_flags: <defaults>
</compile_context>

<pallas_src>
import jax
import jax.numpy as jnp
from jax.experimental import pallas as pl
from jax.experimental.pallas import tpu as pltpu

DOWNSAMPLING = 10
HIDDEN_CHANNELS = 30
FILTERING_SIZE = 25
ENVELOPE_SIZE = 15
BN_EPS = 1e-5


def _full_spec(shape):
    nd = len(shape)
    return pl.BlockSpec(shape, lambda *_: (0,) * nd)


# ---------------------------------------------------------------------------
# Single fused kernel: conv stack + BNs + abs + BiLSTM + BN + FC
# ---------------------------------------------------------------------------
def _simplenet_kernel(x_ref, uw_ref, ub_ref, fw_ref, ew_ref, eb_ref,
                      wi_ref, wh_ref, bg_ref, fcw_ref, fcb_ref,
                      out_ref, pad1, pad2):
    # layouts: x_ref (B, T, Cin) channels-last; out_ref (B, out_channels)
    B, T, Cin = x_ref.shape
    C = HIDDEN_CHANNELS
    H = C // 2
    Td = (T + DOWNSAMPLING - 1) // DOWNSAMPLING

    x = x_ref[...]
    uw = uw_ref[...]          # (Cin, C)
    ub = ub_ref[...]          # (1, C)

    # ---- 1x1 unmixing conv on the MXU (per batch, one small matmul each) ----
    u = [jnp.dot(x[b], uw, preferred_element_type=jnp.float32) + ub
         for b in range(B)]                                    # each (T, C)

    # ---- BatchNorm1d #1: batch statistics over (B, T), affine=False ---------
    n = float(B * T)
    mean1 = sum(jnp.sum(ub_, axis=0, keepdims=True) for ub_ in u) / n
    var1 = sum(jnp.sum((ub_ - mean1) ** 2, axis=0, keepdims=True) for ub_ in u) / n
    inv1 = jax.lax.rsqrt(var1 + BN_EPS)

    # ---- depthwise "filtering" conv (K=25, pad=12, no bias) -----------------
    # Only the halos are zeroed; the body is written once.
    P1 = FILTERING_SIZE // 2
    pad1[:, 0:P1, :] = jnp.zeros((B, P1, C), jnp.float32)
    pad1[:, P1 + T:P1 + T + P1, :] = jnp.zeros((B, P1, C), jnp.float32)
    for b in range(B):
        pad1[b:b + 1, P1:P1 + T, :] = ((u[b] - mean1) * inv1)[None]
    xp = pad1[...]                                             # (B, T+2*P1, C)
    fw = fw_ref[...]                                           # (K1, C)
    acc = jnp.zeros((B, T, C), jnp.float32)
    for k in range(FILTERING_SIZE):
        acc = acc + xp[:, k:k + T, :] * fw[k:k + 1, :][None]

    # ---- BatchNorm1d #2 + LeakyReLU(negative_slope=-1)  (== abs) ------------
    mean2 = jnp.mean(acc, axis=(0, 1), keepdims=True)
    var2 = jnp.mean((acc - mean2) ** 2, axis=(0, 1), keepdims=True)
    a = jnp.abs((acc - mean2) * jax.lax.rsqrt(var2 + BN_EPS))

    # ---- depthwise "envelope" conv (K=15, pad=7, with bias) -----------------
    P2 = ENVELOPE_SIZE // 2
    pad2[:, 0:P2, :] = jnp.zeros((B, P2, C), jnp.float32)
    pad2[:, P2 + T:P2 + T + P2, :] = jnp.zeros((B, P2, C), jnp.float32)
    pad2[:, P2:P2 + T, :] = a
    xp2 = pad2[...]                                            # (B, T+2*P2, C)
    ew = ew_ref[...]                                           # (K2, C)
    eb = eb_ref[...]                                           # (1, C)
    env = jnp.zeros((B, T, C), jnp.float32)
    for k in range(ENVELOPE_SIZE):
        env = env + xp2[:, k:k + T, :] * ew[k:k + 1, :][None]
    env = env + eb[None]                                       # (B, T, C)

    # ---- BiLSTM ------------------------------------------------------------
    # Hoisted input projection: project ALL timesteps, both directions, in one
    # matmul per batch (the ::10 downsample is a static row gather afterwards).
    wi = wi_ref[...]          # (C, 8H)  = [W_ih_fwd^T | W_ih_bwd^T]
    wh = wh_ref[...]          # (2H, 8H) = block_diag(W_hh_fwd^T, W_hh_bwd^T)
    bg = bg_ref[...]          # (1, 8H)  = [b_ih+b_hh fwd | b_ih+b_hh bwd]
    proj = [jnp.dot(env[b], wi, preferred_element_type=jnp.float32) + bg
            for b in range(B)]                                 # each (T, 8H)

    # Gather the downsampled per-timestep gate inputs (static slices only).
    gin_f = [jnp.concatenate(
        [proj[b][t * DOWNSAMPLING:t * DOWNSAMPLING + 1, 0:4 * H]
         for b in range(B)], axis=0) for t in range(Td)]        # each (B, 4H)
    gin_b = [jnp.concatenate(
        [proj[b][t * DOWNSAMPLING:t * DOWNSAMPLING + 1, 4 * H:8 * H]
         for b in range(B)], axis=0) for t in range(Td)]        # each (B, 4H)

    def _cell(g, c_prev):
        # PyTorch gate order: i, f, g, o
        i_g = 1.0 / (1.0 + jnp.exp(-g[:, 0:H]))
        f_g = 1.0 / (1.0 + jnp.exp(-g[:, H:2 * H]))
        g_g = jnp.tanh(g[:, 2 * H:3 * H])
        o_g = 1.0 / (1.0 + jnp.exp(-g[:, 3 * H:4 * H]))
        c_new = f_g * c_prev + i_g * g_g
        return o_g * jnp.tanh(c_new), c_new

    # Fused forward/backward recurrence: one block-diag recurrent matmul per step.
    h_f = jnp.zeros((B, H), jnp.float32)
    c_f = jnp.zeros((B, H), jnp.float32)
    h_b = jnp.zeros((B, H), jnp.float32)
    c_b = jnp.zeros((B, H), jnp.float32)
    hf_t = [None] * Td
    hb_t = [None] * Td
    for s in range(Td):
        r = Td - 1 - s
        g_rec = jnp.dot(jnp.concatenate([h_f, h_b], axis=1), wh,
                        preferred_element_type=jnp.float32)     # (B, 8H)
        g_f = gin_f[s] + g_rec[:, 0:4 * H]
        g_b = gin_b[r] + g_rec[:, 4 * H:8 * H]
        h_f, c_f = _cell(g_f, c_f)
        h_b, c_b = _cell(g_b, c_b)
        hf_t[s] = h_f          # forward output at time s
        hb_t[r] = h_b          # backward output at time r

    # ---- lane-dense flatten (time-major feature order t*2H + c) -------------
    # FC weights were pre-permuted in the wrapper to match this order.
    flat = jnp.concatenate(
        [jnp.concatenate([hf_t[t], hb_t[t]], axis=1) for t in range(Td)],
        axis=1)                                                 # (B, Td*2H)

    # ---- BatchNorm1d over batch (affine=False) + final Linear ---------------
    m = jnp.mean(flat, axis=0, keepdims=True)
    v = jnp.mean((flat - m) ** 2, axis=0, keepdims=True)
    fn = (flat - m) * jax.lax.rsqrt(v + BN_EPS)
    out_ref[...] = (jnp.dot(fn, fcw_ref[...], preferred_element_type=jnp.float32)
                    + fcb_ref[...])


# ---------------------------------------------------------------------------
# Wrapper
# ---------------------------------------------------------------------------
def simplenet_forward(x, params):
    """x: (B, in_channels, T) float32, PyTorch NCT layout."""
    B, Cin, T = x.shape
    C = HIDDEN_CHANNELS
    H = C // 2
    Td = (T + DOWNSAMPLING - 1) // DOWNSAMPLING
    xt = jnp.transpose(x, (0, 2, 1)).astype(jnp.float32)         # (B, T, Cin)

    uw = params["unmix_w"][:, :, 0].T                            # (Cin, C)
    ub = params["unmix_b"][None, :]                              # (1, C)
    fw = params["filt_w"][:, 0, :].T                             # (25, C)
    ew = params["env_w"][:, 0, :].T                              # (15, C)
    eb = params["env_b"][None, :]                                # (1, C)

    # BiLSTM weights: concat both directions' input projections; block-diag the
    # recurrent projections so one matmul drives both directions per step.
    wi = jnp.concatenate([params["w_ih_f"].T, params["w_ih_b"].T], axis=1)   # (C, 8H)
    wh = jnp.zeros((C, 8 * H), jnp.float32)
    wh = wh.at[:H, :4 * H].set(params["w_hh_f"].T)
    wh = wh.at[H:, 4 * H:].set(params["w_hh_b"].T)                           # (2H, 8H)
    bg = jnp.concatenate([params["b_ih_f"] + params["b_hh_f"],
                          params["b_ih_b"] + params["b_hh_b"]])[None, :]     # (1, 8H)

    # FC: permute weights from PyTorch's channel-major flatten (f = c*Td + t)
    # to the kernel's time-major flatten (f' = t*2H + c). BatchNorm is
    # per-feature, so a consistent permutation is exact.
    out_ch, F = params["fc_w"].shape
    assert F == 2 * H * Td
    fcw = jnp.transpose(params["fc_w"].reshape(out_ch, 2 * H, Td),
                        (2, 1, 0)).reshape(F, out_ch)            # (F, out)
    fcb = params["fc_b"][None, :]                                # (1, out)

    args = (xt, uw, ub, fw, ew, eb, wi, wh, bg, fcw, fcb)
    out = pl.pallas_call(
        _simplenet_kernel,
        out_shape=jax.ShapeDtypeStruct((B, out_ch), jnp.float32),
        grid=(1,),
        in_specs=[_full_spec(a.shape) for a in args],
        out_specs=_full_spec((B, out_ch)),
        scratch_shapes=[
            pltpu.VMEM((B, T + FILTERING_SIZE - 1, C), jnp.float32),
            pltpu.VMEM((B, T + ENVELOPE_SIZE - 1, C), jnp.float32),
        ],
        compiler_params=pltpu.CompilerParams(
            dimension_semantics=("arbitrary",)),
    )(*args)
    return out


def init_params(key, in_channels, out_channels, lag_backward, lag_forward):
    window = lag_backward + lag_forward + 1
    final_out = (window // DOWNSAMPLING + 1) * HIDDEN_CHANNELS
    H = HIDDEN_CHANNELS // 2
    keys = jax.random.split(key, 15)

    def init(k, shape, scale=0.1):
        return scale * jax.random.normal(k, shape, dtype=jnp.float32)

    return dict(
        unmix_w=init(keys[0], (HIDDEN_CHANNELS, in_channels, 1)),
        unmix_b=init(keys[1], (HIDDEN_CHANNELS,)),
        filt_w=init(keys[2], (HIDDEN_CHANNELS, 1, FILTERING_SIZE)),
        env_w=init(keys[3], (HIDDEN_CHANNELS, 1, ENVELOPE_SIZE)),
        env_b=init(keys[4], (HIDDEN_CHANNELS,)),
        w_ih_f=init(keys[5], (4 * H, HIDDEN_CHANNELS)),
        w_hh_f=init(keys[6], (4 * H, H)),
        b_ih_f=init(keys[7], (4 * H,)),
        b_hh_f=init(keys[8], (4 * H,)),
        w_ih_b=init(keys[9], (4 * H, HIDDEN_CHANNELS)),
        w_hh_b=init(keys[10], (4 * H, H)),
        b_ih_b=init(keys[11], (4 * H,)),
        b_hh_b=init(keys[12], (4 * H,)),
        fc_w=init(keys[13], (out_channels, final_out)),
        fc_b=init(keys[14], (out_channels,)),
    )


if __name__ == "__main__":
    in_channels, out_channels = 4, 2
    lag_backward, lag_forward = 25, 5        # window_size = 31 > FILTERING_SIZE
    B = 2
    T = lag_backward + lag_forward + 1

    key = jax.random.PRNGKey(0)
    kx, kp = jax.random.split(key)
    x = jax.random.normal(kx, (B, in_channels, T), dtype=jnp.float32)
    params = init_params(kp, in_channels, out_channels, lag_backward, lag_forward)

    out = simplenet_forward(x, params)
    jax.block_until_ready(out)
    assert out.shape == (B, out_channels), out.shape
    print("KERNEL_OK")
</pallas_src>

<mosaic_0001>
module attributes {stable_mosaic.version = 11 : i64} {
  func.func @_simplenet_kernel(%arg0: i32, %arg1: memref<2x31x4xf32, #tpu.memory_space<vmem>>, %arg2: memref<4x30xf32, #tpu.memory_space<vmem>>, %arg3: memref<1x30xf32, #tpu.memory_space<vmem>>, %arg4: memref<25x30xf32, #tpu.memory_space<vmem>>, %arg5: memref<15x30xf32, #tpu.memory_space<vmem>>, %arg6: memref<1x30xf32, #tpu.memory_space<vmem>>, %arg7: memref<30x120xf32, #tpu.memory_space<vmem>>, %arg8: memref<30x120xf32, #tpu.memory_space<vmem>>, %arg9: memref<1x120xf32, #tpu.memory_space<vmem>>, %arg10: memref<120x2xf32, #tpu.memory_space<vmem>>, %arg11: memref<1x2xf32, #tpu.memory_space<vmem>>, %arg12: memref<2x2xf32, #tpu.memory_space<vmem>>, %arg13: memref<2x55x30xf32, #tpu.memory_space<vmem>>, %arg14: memref<2x45x30xf32, #tpu.memory_space<vmem>>) attributes {dimension_semantics = [#tpu.dimension_semantics<arbitrary>], iteration_bounds = array<i64: 1>, scalar_prefetch = 0 : i64, scratch_operands = 2 : i64, tpu.core_type = #tpu.core_type<tc>, window_params = [{pipeline_mode = #tpu.pipeline_mode<synchronous>, transform_indices = @transform_0, window_bounds = array<i64: 2, 31, 4>}, {pipeline_mode = #tpu.pipeline_mode<synchronous>, transform_indices = @transform_1, window_bounds = array<i64: 4, 30>}, {pipeline_mode = #tpu.pipeline_mode<synchronous>, transform_indices = @transform_2, window_bounds = array<i64: 1, 30>}, {pipeline_mode = #tpu.pipeline_mode<synchronous>, transform_indices = @transform_3, window_bounds = array<i64: 25, 30>}, {pipeline_mode = #tpu.pipeline_mode<synchronous>, transform_indices = @transform_4, window_bounds = array<i64: 15, 30>}, {pipeline_mode = #tpu.pipeline_mode<synchronous>, transform_indices = @transform_5, window_bounds = array<i64: 1, 30>}, {pipeline_mode = #tpu.pipeline_mode<synchronous>, transform_indices = @transform_6, window_bounds = array<i64: 30, 120>}, {pipeline_mode = #tpu.pipeline_mode<synchronous>, transform_indices = @transform_7, window_bounds = array<i64: 30, 120>}, {pipeline_mode = #tpu.pipeline_mode<synchronous>, transform_indices = @transform_8, window_bounds = array<i64: 1, 120>}, {pipeline_mode = #tpu.pipeline_mode<synchronous>, transform_indices = @transform_9, window_bounds = array<i64: 120, 2>}, {pipeline_mode = #tpu.pipeline_mode<synchronous>, transform_indices = @transform_10, window_bounds = array<i64: 1, 2>}, {pipeline_mode = #tpu.pipeline_mode<synchronous>, transform_indices = @transform_11, window_bounds = array<i64: 2, 2>}]} {
    %c0 = arith.constant 0 : index
    %c0_0 = arith.constant 0 : index
    %c0_1 = arith.constant 0 : index
    %0 = vector.load %arg1[%c0, %c0_0, %c0_1] : memref<2x31x4xf32, #tpu.memory_space<vmem>>, vector<2x31x4xf32>
    %c0_2 = arith.constant 0 : index
    %c0_3 = arith.constant 0 : index
    %1 = vector.load %arg2[%c0_2, %c0_3] : memref<4x30xf32, #tpu.memory_space<vmem>>, vector<4x30xf32>
    %c0_4 = arith.constant 0 : index
    %c0_5 = arith.constant 0 : index
    %2 = vector.load %arg3[%c0_4, %c0_5] : memref<1x30xf32, #tpu.memory_space<vmem>>, vector<1x30xf32>
    %3 = vector.extract_strided_slice %0 {offsets = [0, 0, 0], sizes = [1, 31, 4], strides = [1, 1, 1]} : vector<2x31x4xf32> to vector<1x31x4xf32>
    %4 = vector.shape_cast %3 : vector<1x31x4xf32> to vector<31x4xf32>
    %cst = arith.constant dense<0.000000e+00> : vector<31x30xf32>
    %5 = tpu.matmul %4, %1, %cst {dimension_numbers = #tpu.dot_dimension_numbers<[1], [0], [0], [1], [0, 0, 1, 1], [], []>} : vector<31x4xf32>, vector<4x30xf32>, vector<31x30xf32> -> vector<31x30xf32>
    %6 = vector.broadcast %2 : vector<1x30xf32> to vector<31x30xf32>
    %7 = arith.addf %5, %6 : vector<31x30xf32>
    %8 = vector.extract_strided_slice %0 {offsets = [1, 0, 0], sizes = [1, 31, 4], strides = [1, 1, 1]} : vector<2x31x4xf32> to vector<1x31x4xf32>
    %9 = vector.shape_cast %8 : vector<1x31x4xf32> to vector<31x4xf32>
    %cst_6 = arith.constant dense<0.000000e+00> : vector<31x30xf32>
    %10 = tpu.matmul %9, %1, %cst_6 {dimension_numbers = #tpu.dot_dimension_numbers<[1], [0], [0], [1], [0, 0, 1, 1], [], []>} : vector<31x4xf32>, vector<4x30xf32>, vector<31x30xf32> -> vector<31x30xf32>
    %11 = vector.broadcast %2 : vector<1x30xf32> to vector<31x30xf32>
    %12 = arith.addf %10, %11 : vector<31x30xf32>
    %cst_7 = arith.constant dense<0.000000e+00> : vector<30xf32>
    %13 = vector.multi_reduction <add>, %7, %cst_7 [0] : vector<31x30xf32> to vector<30xf32>
    %14 = vector.shape_cast %13 : vector<30xf32> to vector<1x30xf32>
    %cst_8 = arith.constant 0.000000e+00 : f32
    %15 = vector.broadcast %cst_8 : f32 to vector<1x30xf32>
    %16 = arith.addf %15, %14 : vector<1x30xf32>
    %cst_9 = arith.constant dense<0.000000e+00> : vector<30xf32>
    %17 = vector.multi_reduction <add>, %12, %cst_9 [0] : vector<31x30xf32> to vector<30xf32>
    %18 = vector.shape_cast %17 : vector<30xf32> to vector<1x30xf32>
    %19 = arith.addf %16, %18 : vector<1x30xf32>
    %cst_10 = arith.constant 6.200000e+01 : f32
    %20 = vector.broadcast %cst_10 : f32 to vector<1x30xf32>
    %21 = arith.divf %19, %20 : vector<1x30xf32>
    %22 = vector.broadcast %21 : vector<1x30xf32> to vector<31x30xf32>
    %23 = arith.subf %7, %22 : vector<31x30xf32>
    %24 = arith.mulf %23, %23 : vector<31x30xf32>
    %cst_11 = arith.constant dense<0.000000e+00> : vector<30xf32>
    %25 = vector.multi_reduction <add>, %24, %cst_11 [0] : vector<31x30xf32> to vector<30xf32>
    %26 = vector.shape_cast %25 : vector<30xf32> to vector<1x30xf32>
    %cst_12 = arith.constant 0.000000e+00 : f32
    %27 = vector.broadcast %cst_12 : f32 to vector<1x30xf32>
    %28 = arith.addf %27, %26 : vector<1x30xf32>
    %29 = vector.broadcast %21 : vector<1x30xf32> to vector<31x30xf32>
    %30 = arith.subf %12, %29 : vector<31x30xf32>
    %31 = arith.mulf %30, %30 : vector<31x30xf32>
    %cst_13 = arith.constant dense<0.000000e+00> : vector<30xf32>
    %32 = vector.multi_reduction <add>, %31, %cst_13 [0] : vector<31x30xf32> to vector<30xf32>
    %33 = vector.shape_cast %32 : vector<30xf32> to vector<1x30xf32>
    %34 = arith.addf %28, %33 : vector<1x30xf32>
    %cst_14 = arith.constant 6.200000e+01 : f32
    %35 = vector.broadcast %cst_14 : f32 to vector<1x30xf32>
    %36 = arith.divf %34, %35 : vector<1x30xf32>
    %cst_15 = arith.constant 9.99999974E-6 : f32
    %37 = vector.broadcast %cst_15 : f32 to vector<1x30xf32>
    %38 = arith.addf %36, %37 : vector<1x30xf32>
    %39 = math.rsqrt %38 : vector<1x30xf32>
    %cst_16 = arith.constant 0.000000e+00 : f32
    %40 = vector.broadcast %cst_16 : f32 to vector<2x12x30xf32>
    %c0_17 = arith.constant 0 : index
    %c0_18 = arith.constant 0 : index
    %c0_19 = arith.constant 0 : index
    %41 = vector.load %arg13[%c0_17, %c0_18, %c0_19] : memref<2x55x30xf32, #tpu.memory_space<vmem>>, vector<2x12x30xf32>
    tpu.vector_store %arg13[%c0_17, %c0_18, %c0_19], %40 {strides = array<i32>} : memref<2x55x30xf32, #tpu.memory_space<vmem>>, vector<2x12x30xf32>,
    %cst_20 = arith.constant 0.000000e+00 : f32
    %42 = vector.broadcast %cst_20 : f32 to vector<2x12x30xf32>
    %c0_21 = arith.constant 0 : index
    %c43 = arith.constant 43 : index
    %c0_22 = arith.constant 0 : index
    %43 = vector.load %arg13[%c0_21, %c43, %c0_22] : memref<2x55x30xf32, #tpu.memory_space<vmem>>, vector<2x12x30xf32>
    tpu.vector_store %arg13[%c0_21, %c43, %c0_22], %42 {strides = array<i32>} : memref<2x55x30xf32, #tpu.memory_space<vmem>>, vector<2x12x30xf32>,
    %44 = vector.broadcast %21 : vector<1x30xf32> to vector<31x30xf32>
    %45 = arith.subf %7, %44 : vector<31x30xf32>
    %46 = vector.broadcast %39 : vector<1x30xf32> to vector<31x30xf32>
    %47 = arith.mulf %45, %46 : vector<31x30xf32>
    %48 = vector.shape_cast %47 : vector<31x30xf32> to vector<1x31x30xf32>
    %c0_23 = arith.constant 0 : index
    %c12 = arith.constant 12 : index
    %c0_24 = arith.constant 0 : index
    %49 = vector.load %arg13[%c0_23, %c12, %c0_24] : memref<2x55x30xf32, #tpu.memory_space<vmem>>, vector<1x31x30xf32>
    tpu.vector_store %arg13[%c0_23, %c12, %c0_24], %48 {strides = array<i32>} : memref<2x55x30xf32, #tpu.memory_space<vmem>>, vector<1x31x30xf32>,
    %50 = vector.broadcast %21 : vector<1x30xf32> to vector<31x30xf32>
    %51 = arith.subf %12, %50 : vector<31x30xf32>
    %52 = vector.broadcast %39 : vector<1x30xf32> to vector<31x30xf32>
    %53 = arith.mulf %51, %52 : vector<31x30xf32>
    %54 = vector.shape_cast %53 : vector<31x30xf32> to vector<1x31x30xf32>
    %c1 = arith.constant 1 : index
    %c12_25 = arith.constant 12 : index
    %c0_26 = arith.constant 0 : index
    %55 = vector.load %arg13[%c1, %c12_25, %c0_26] : memref<2x55x30xf32, #tpu.memory_space<vmem>>, vector<1x31x30xf32>
    tpu.vector_store %arg13[%c1, %c12_25, %c0_26], %54 {strides = array<i32>} : memref<2x55x30xf32, #tpu.memory_space<vmem>>, vector<1x31x30xf32>,
    %c0_27 = arith.constant 0 : index
    %c0_28 = arith.constant 0 : index
    %c0_29 = arith.constant 0 : index
    %56 = vector.load %arg13[%c0_27, %c0_28, %c0_29] : memref<2x55x30xf32, #tpu.memory_space<vmem>>, vector<2x55x30xf32>
    %c0_30 = arith.constant 0 : index
    %c0_31 = arith.constant 0 : index
    %57 = vector.load %arg4[%c0_30, %c0_31] : memref<25x30xf32, #tpu.memory_space<vmem>>, vector<25x30xf32>
    %cst_32 = arith.constant 0.000000e+00 : f32
    %58 = vector.broadcast %cst_32 : f32 to vector<2x31x30xf32>
    %59 = vector.extract_strided_slice %56 {offsets = [0, 0, 0], sizes = [2, 31, 30], strides = [1, 1, 1]} : vector<2x55x30xf32> to vector<2x31x30xf32>
    %60 = vector.extract_strided_slice %57 {offsets = [0, 0], sizes = [1, 30], strides = [1, 1]} : vector<25x30xf32> to vector<1x30xf32>
    %61 = vector.shape_cast %60 : vector<1x30xf32> to vector<1x1x30xf32>
    %62 = vector.broadcast %61 : vector<1x1x30xf32> to vector<2x31x30xf32>
    %63 = arith.mulf %59, %62 : vector<2x31x30xf32>
    %64 = arith.addf %58, %63 : vector<2x31x30xf32>
    %65 = vector.extract_strided_slice %56 {offsets = [0, 1, 0], sizes = [2, 31, 30], strides = [1, 1, 1]} : vector<2x55x30xf32> to vector<2x31x30xf32>
    %66 = vector.extract_strided_slice %57 {offsets = [1, 0], sizes = [1, 30], strides = [1, 1]} : vector<25x30xf32> to vector<1x30xf32>
    %67 = vector.shape_cast %66 : vector<1x30xf32> to vector<1x1x30xf32>
    %68 = vector.broadcast %67 : vector<1x1x30xf32> to vector<2x31x30xf32>
    %69 = arith.mulf %65, %68 : vector<2x31x30xf32>
    %70 = arith.addf %64, %69 : vector<2x31x30xf32>
    %71 = vector.extract_strided_slice %56 {offsets = [0, 2, 0], sizes = [2, 31, 30], strides = [1, 1, 1]} : vector<2x55x30xf32> to vector<2x31x30xf32>
    %72 = vector.extract_strided_slice %57 {offsets = [2, 0], sizes = [1, 30], strides = [1, 1]} : vector<25x30xf32> to vector<1x30xf32>
    %73 = vector.shape_cast %72 : vector<1x30xf32> to vector<1x1x30xf32>
    %74 = vector.broadcast %73 : vector<1x1x30xf32> to vector<2x31x30xf32>
    %75 = arith.mulf %71, %74 : vector<2x31x30xf32>
    %76 = arith.addf %70, %75 : vector<2x31x30xf32>
    %77 = vector.extract_strided_slice %56 {offsets = [0, 3, 0], sizes = [2, 31, 30], strides = [1, 1, 1]} : vector<2x55x30xf32> to vector<2x31x30xf32>
    %78 = vector.extract_strided_slice %57 {offsets = [3, 0], sizes = [1, 30], strides = [1, 1]} : vector<25x30xf32> to vector<1x30xf32>
    %79 = vector.shape_cast %78 : vector<1x30xf32> to vector<1x1x30xf32>
    %80 = vector.broadcast %79 : vector<1x1x30xf32> to vector<2x31x30xf32>
    %81 = arith.mulf %77, %80 : vector<2x31x30xf32>
    %82 = arith.addf %76, %81 : vector<2x31x30xf32>
    %83 = vector.extract_strided_slice %56 {offsets = [0, 4, 0], sizes = [2, 31, 30], strides = [1, 1, 1]} : vector<2x55x30xf32> to vector<2x31x30xf32>
    %84 = vector.extract_strided_slice %57 {offsets = [4, 0], sizes = [1, 30], strides = [1, 1]} : vector<25x30xf32> to vector<1x30xf32>
    %85 = vector.shape_cast %84 : vector<1x30xf32> to vector<1x1x30xf32>
    %86 = vector.broadcast %85 : vector<1x1x30xf32> to vector<2x31x30xf32>
    %87 = arith.mulf %83, %86 : vector<2x31x30xf32>
    %88 = arith.addf %82, %87 : vector<2x31x30xf32>
    %89 = vector.extract_strided_slice %56 {offsets = [0, 5, 0], sizes = [2, 31, 30], strides = [1, 1, 1]} : vector<2x55x30xf32> to vector<2x31x30xf32>
    %90 = vector.extract_strided_slice %57 {offsets = [5, 0], sizes = [1, 30], strides = [1, 1]} : vector<25x30xf32> to vector<1x30xf32>
    %91 = vector.shape_cast %90 : vector<1x30xf32> to vector<1x1x30xf32>
    %92 = vector.broadcast %91 : vector<1x1x30xf32> to vector<2x31x30xf32>
    %93 = arith.mulf %89, %92 : vector<2x31x30xf32>
    %94 = arith.addf %88, %93 : vector<2x31x30xf32>
    %95 = vector.extract_strided_slice %56 {offsets = [0, 6, 0], sizes = [2, 31, 30], strides = [1, 1, 1]} : vector<2x55x30xf32> to vector<2x31x30xf32>
    %96 = vector.extract_strided_slice %57 {offsets = [6, 0], sizes = [1, 30], strides = [1, 1]} : vector<25x30xf32> to vector<1x30xf32>
    %97 = vector.shape_cast %96 : vector<1x30xf32> to vector<1x1x30xf32>
    %98 = vector.broadcast %97 : vector<1x1x30xf32> to vector<2x31x30xf32>
    %99 = arith.mulf %95, %98 : vector<2x31x30xf32>
    %100 = arith.addf %94, %99 : vector<2x31x30xf32>
    %101 = vector.extract_strided_slice %56 {offsets = [0, 7, 0], sizes = [2, 31, 30], strides = [1, 1, 1]} : vector<2x55x30xf32> to vector<2x31x30xf32>
    %102 = vector.extract_strided_slice %57 {offsets = [7, 0], sizes = [1, 30], strides = [1, 1]} : vector<25x30xf32> to vector<1x30xf32>
    %103 = vector.shape_cast %102 : vector<1x30xf32> to vector<1x1x30xf32>
    %104 = vector.broadcast %103 : vector<1x1x30xf32> to vector<2x31x30xf32>
    %105 = arith.mulf %101, %104 : vector<2x31x30xf32>
    %106 = arith.addf %100, %105 : vector<2x31x30xf32>
    %107 = vector.extract_strided_slice %56 {offsets = [0, 8, 0], sizes = [2, 31, 30], strides = [1, 1, 1]} : vector<2x55x30xf32> to vector<2x31x30xf32>
    %108 = vector.extract_strided_slice %57 {offsets = [8, 0], sizes = [1, 30], strides = [1, 1]} : vector<25x30xf32> to vector<1x30xf32>
    %109 = vector.shape_cast %108 : vector<1x30xf32> to vector<1x1x30xf32>
    %110 = vector.broadcast %109 : vector<1x1x30xf32> to vector<2x31x30xf32>
    %111 = arith.mulf %107, %110 : vector<2x31x30xf32>
    %112 = arith.addf %106, %111 : vector<2x31x30xf32>
    %113 = vector.extract_strided_slice %56 {offsets = [0, 9, 0], sizes = [2, 31, 30], strides = [1, 1, 1]} : vector<2x55x30xf32> to vector<2x31x30xf32>
    %114 = vector.extract_strided_slice %57 {offsets = [9, 0], sizes = [1, 30], strides = [1, 1]} : vector<25x30xf32> to vector<1x30xf32>
    %115 = vector.shape_cast %114 : vector<1x30xf32> to vector<1x1x30xf32>
    %116 = vector.broadcast %115 : vector<1x1x30xf32> to vector<2x31x30xf32>
    %117 = arith.mulf %113, %116 : vector<2x31x30xf32>
    %118 = arith.addf %112, %117 : vector<2x31x30xf32>
    %119 = vector.extract_strided_slice %56 {offsets = [0, 10, 0], sizes = [2, 31, 30], strides = [1, 1, 1]} : vector<2x55x30xf32> to vector<2x31x30xf32>
    %120 = vector.extract_strided_slice %57 {offsets = [10, 0], sizes = [1, 30], strides = [1, 1]} : vector<25x30xf32> to vector<1x30xf32>
    %121 = vector.shape_cast %120 : vector<1x30xf32> to vector<1x1x30xf32>
    %122 = vector.broadcast %121 : vector<1x1x30xf32> to vector<2x31x30xf32>
    %123 = arith.mulf %119, %122 : vector<2x31x30xf32>
    %124 = arith.addf %118, %123 : vector<2x31x30xf32>
    %125 = vector.extract_strided_slice %56 {offsets = [0, 11, 0], sizes = [2, 31, 30], strides = [1, 1, 1]} : vector<2x55x30xf32> to vector<2x31x30xf32>
    %126 = vector.extract_strided_slice %57 {offsets = [11, 0], sizes = [1, 30], strides = [1, 1]} : vector<25x30xf32> to vector<1x30xf32>
    %127 = vector.shape_cast %126 : vector<1x30xf32> to vector<1x1x30xf32>
    %128 = vector.broadcast %127 : vector<1x1x30xf32> to vector<2x31x30xf32>
    %129 = arith.mulf %125, %128 : vector<2x31x30xf32>
    %130 = arith.addf %124, %129 : vector<2x31x30xf32>
    %131 = vector.extract_strided_slice %56 {offsets = [0, 12, 0], sizes = [2, 31, 30], strides = [1, 1, 1]} : vector<2x55x30xf32> to vector<2x31x30xf32>
    %132 = vector.extract_strided_slice %57 {offsets = [12, 0], sizes = [1, 30], strides = [1, 1]} : vector<25x30xf32> to vector<1x30xf32>
    %133 = vector.shape_cast %132 : vector<1x30xf32> to vector<1x1x30xf32>
    %134 = vector.broadcast %133 : vector<1x1x30xf32> to vector<2x31x30xf32>
    %135 = arith.mulf %131, %134 : vector<2x31x30xf32>
    %136 = arith.addf %130, %135 : vector<2x31x30xf32>
    %137 = vector.extract_strided_slice %56 {offsets = [0, 13, 0], sizes = [2, 31, 30], strides = [1, 1, 1]} : vector<2x55x30xf32> to vector<2x31x30xf32>
    %138 = vector.extract_strided_slice %57 {offsets = [13, 0], sizes = [1, 30], strides = [1, 1]} : vector<25x30xf32> to vector<1x30xf32>
    %139 = vector.shape_cast %138 : vector<1x30xf32> to vector<1x1x30xf32>
    %140 = vector.broadcast %139 : vector<1x1x30xf32> to vector<2x31x30xf32>
    %141 = arith.mulf %137, %140 : vector<2x31x30xf32>
    %142 = arith.addf %136, %141 : vector<2x31x30xf32>
    %143 = vector.extract_strided_slice %56 {offsets = [0, 14, 0], sizes = [2, 31, 30], strides = [1, 1, 1]} : vector<2x55x30xf32> to vector<2x31x30xf32>
    %144 = vector.extract_strided_slice %57 {offsets = [14, 0], sizes = [1, 30], strides = [1, 1]} : vector<25x30xf32> to vector<1x30xf32>
    %145 = vector.shape_cast %144 : vector<1x30xf32> to vector<1x1x30xf32>
    %146 = vector.broadcast %145 : vector<1x1x30xf32> to vector<2x31x30xf32>
    %147 = arith.mulf %143, %146 : vector<2x31x30xf32>
    %148 = arith.addf %142, %147 : vector<2x31x30xf32>
    %149 = vector.extract_strided_slice %56 {offsets = [0, 15, 0], sizes = [2, 31, 30], strides = [1, 1, 1]} : vector<2x55x30xf32> to vector<2x31x30xf32>
    %150 = vector.extract_strided_slice %57 {offsets = [15, 0], sizes = [1, 30], strides = [1, 1]} : vector<25x30xf32> to vector<1x30xf32>
    %151 = vector.shape_cast %150 : vector<1x30xf32> to vector<1x1x30xf32>
    %152 = vector.broadcast %151 : vector<1x1x30xf32> to vector<2x31x30xf32>
    %153 = arith.mulf %149, %152 : vector<2x31x30xf32>
    %154 = arith.addf %148, %153 : vector<2x31x30xf32>
    %155 = vector.extract_strided_slice %56 {offsets = [0, 16, 0], sizes = [2, 31, 30], strides = [1, 1, 1]} : vector<2x55x30xf32> to vector<2x31x30xf32>
    %156 = vector.extract_strided_slice %57 {offsets = [16, 0], sizes = [1, 30], strides = [1, 1]} : vector<25x30xf32> to vector<1x30xf32>
    %157 = vector.shape_cast %156 : vector<1x30xf32> to vector<1x1x30xf32>
    %158 = vector.broadcast %157 : vector<1x1x30xf32> to vector<2x31x30xf32>
    %159 = arith.mulf %155, %158 : vector<2x31x30xf32>
    %160 = arith.addf %154, %159 : vector<2x31x30xf32>
    %161 = vector.extract_strided_slice %56 {offsets = [0, 17, 0], sizes = [2, 31, 30], strides = [1, 1, 1]} : vector<2x55x30xf32> to vector<2x31x30xf32>
    %162 = vector.extract_strided_slice %57 {offsets = [17, 0], sizes = [1, 30], strides = [1, 1]} : vector<25x30xf32> to vector<1x30xf32>
    %163 = vector.shape_cast %162 : vector<1x30xf32> to vector<1x1x30xf32>
    %164 = vector.broadcast %163 : vector<1x1x30xf32> to vector<2x31x30xf32>
    %165 = arith.mulf %161, %164 : vector<2x31x30xf32>
    %166 = arith.addf %160, %165 : vector<2x31x30xf32>
    %167 = vector.extract_strided_slice %56 {offsets = [0, 18, 0], sizes = [2, 31, 30], strides = [1, 1, 1]} : vector<2x55x30xf32> to vector<2x31x30xf32>
    %168 = vector.extract_strided_slice %57 {offsets = [18, 0], sizes = [1, 30], strides = [1, 1]} : vector<25x30xf32> to vector<1x30xf32>
    %169 = vector.shape_cast %168 : vector<1x30xf32> to vector<1x1x30xf32>
    %170 = vector.broadcast %169 : vector<1x1x30xf32> to vector<2x31x30xf32>
    %171 = arith.mulf %167, %170 : vector<2x31x30xf32>
    %172 = arith.addf %166, %171 : vector<2x31x30xf32>
    %173 = vector.extract_strided_slice %56 {offsets = [0, 19, 0], sizes = [2, 31, 30], strides = [1, 1, 1]} : vector<2x55x30xf32> to vector<2x31x30xf32>
    %174 = vector.extract_strided_slice %57 {offsets = [19, 0], sizes = [1, 30], strides = [1, 1]} : vector<25x30xf32> to vector<1x30xf32>
    %175 = vector.shape_cast %174 : vector<1x30xf32> to vector<1x1x30xf32>
    %176 = vector.broadcast %175 : vector<1x1x30xf32> to vector<2x31x30xf32>
    %177 = arith.mulf %173, %176 : vector<2x31x30xf32>
    %178 = arith.addf %172, %177 : vector<2x31x30xf32>
    %179 = vector.extract_strided_slice %56 {offsets = [0, 20, 0], sizes = [2, 31, 30], strides = [1, 1, 1]} : vector<2x55x30xf32> to vector<2x31x30xf32>
    %180 = vector.extract_strided_slice %57 {offsets = [20, 0], sizes = [1, 30], strides = [1, 1]} : vector<25x30xf32> to vector<1x30xf32>
    %181 = vector.shape_cast %180 : vector<1x30xf32> to vector<1x1x30xf32>
    %182 = vector.broadcast %181 : vector<1x1x30xf32> to vector<2x31x30xf32>
    %183 = arith.mulf %179, %182 : vector<2x31x30xf32>
    %184 = arith.addf %178, %183 : vector<2x31x30xf32>
    %185 = vector.extract_strided_slice %56 {offsets = [0, 21, 0], sizes = [2, 31, 30], strides = [1, 1, 1]} : vector<2x55x30xf32> to vector<2x31x30xf32>
    %186 = vector.extract_strided_slice %57 {offsets = [21, 0], sizes = [1, 30], strides = [1, 1]} : vector<25x30xf32> to vector<1x30xf32>
    %187 = vector.shape_cast %186 : vector<1x30xf32> to vector<1x1x30xf32>
    %188 = vector.broadcast %187 : vector<1x1x30xf32> to vector<2x31x30xf32>
    %189 = arith.mulf %185, %188 : vector<2x31x30xf32>
    %190 = arith.addf %184, %189 : vector<2x31x30xf32>
    %191 = vector.extract_strided_slice %56 {offsets = [0, 22, 0], sizes = [2, 31, 30], strides = [1, 1, 1]} : vector<2x55x30xf32> to vector<2x31x30xf32>
    %192 = vector.extract_strided_slice %57 {offsets = [22, 0], sizes = [1, 30], strides = [1, 1]} : vector<25x30xf32> to vector<1x30xf32>
    %193 = vector.shape_cast %192 : vector<1x30xf32> to vector<1x1x30xf32>
    %194 = vector.broadcast %193 : vector<1x1x30xf32> to vector<2x31x30xf32>
    %195 = arith.mulf %191, %194 : vector<2x31x30xf32>
    %196 = arith.addf %190, %195 : vector<2x31x30xf32>
    %197 = vector.extract_strided_slice %56 {offsets = [0, 23, 0], sizes = [2, 31, 30], strides = [1, 1, 1]} : vector<2x55x30xf32> to vector<2x31x30xf32>
    %198 = vector.extract_strided_slice %57 {offsets = [23, 0], sizes = [1, 30], strides = [1, 1]} : vector<25x30xf32> to vector<1x30xf32>
    %199 = vector.shape_cast %198 : vector<1x30xf32> to vector<1x1x30xf32>
    %200 = vector.broadcast %199 : vector<1x1x30xf32> to vector<2x31x30xf32>
    %201 = arith.mulf %197, %200 : vector<2x31x30xf32>
    %202 = arith.addf %196, %201 : vector<2x31x30xf32>
    %203 = vector.extract_strided_slice %56 {offsets = [0, 24, 0], sizes = [2, 31, 30], strides = [1, 1, 1]} : vector<2x55x30xf32> to vector<2x31x30xf32>
    %204 = vector.extract_strided_slice %57 {offsets = [24, 0], sizes = [1, 30], strides = [1, 1]} : vector<25x30xf32> to vector<1x30xf32>
    %205 = vector.shape_cast %204 : vector<1x30xf32> to vector<1x1x30xf32>
    %206 = vector.broadcast %205 : vector<1x1x30xf32> to vector<2x31x30xf32>
    %207 = arith.mulf %203, %206 : vector<2x31x30xf32>
    %208 = arith.addf %202, %207 : vector<2x31x30xf32>
    %cst_33 = arith.constant dense<0.000000e+00> : vector<30xf32>
    %209 = vector.multi_reduction <add>, %208, %cst_33 [0, 1] : vector<2x31x30xf32> to vector<30xf32>
    %210 = vector.shape_cast %209 : vector<30xf32> to vector<1x1x30xf32>
    %cst_34 = arith.constant 6.200000e+01 : f32
    %211 = vector.broadcast %cst_34 : f32 to vector<1x1x30xf32>
    %212 = arith.divf %210, %211 : vector<1x1x30xf32>
    %213 = vector.broadcast %212 : vector<1x1x30xf32> to vector<2x31x30xf32>
    %214 = arith.subf %208, %213 : vector<2x31x30xf32>
    %215 = arith.mulf %214, %214 : vector<2x31x30xf32>
    %cst_35 = arith.constant dense<0.000000e+00> : vector<30xf32>
    %216 = vector.multi_reduction <add>, %215, %cst_35 [0, 1] : vector<2x31x30xf32> to vector<30xf32>
    %217 = vector.shape_cast %216 : vector<30xf32> to vector<1x1x30xf32>
    %cst_36 = arith.constant 6.200000e+01 : f32
    %218 = vector.broadcast %cst_36 : f32 to vector<1x1x30xf32>
    %219 = arith.divf %217, %218 : vector<1x1x30xf32>
    %220 = vector.broadcast %212 : vector<1x1x30xf32> to vector<2x31x30xf32>
    %221 = arith.subf %208, %220 : vector<2x31x30xf32>
    %cst_37 = arith.constant 9.99999974E-6 : f32
    %222 = vector.broadcast %cst_37 : f32 to vector<1x1x30xf32>
    %223 = arith.addf %219, %222 : vector<1x1x30xf32>
    %224 = math.rsqrt %223 : vector<1x1x30xf32>
    %225 = vector.broadcast %224 : vector<1x1x30xf32> to vector<2x31x30xf32>
    %226 = arith.mulf %221, %225 : vector<2x31x30xf32>
    %227 = math.absf %226 : vector<2x31x30xf32>
    %cst_38 = arith.constant 0.000000e+00 : f32
    %228 = vector.broadcast %cst_38 : f32 to vector<2x7x30xf32>
    %c0_39 = arith.constant 0 : index
    %c0_40 = arith.constant 0 : index
    %c0_41 = arith.constant 0 : index
    %229 = vector.load %arg14[%c0_39, %c0_40, %c0_41] : memref<2x45x30xf32, #tpu.memory_space<vmem>>, vector<2x7x30xf32>
    tpu.vector_store %arg14[%c0_39, %c0_40, %c0_41], %228 {strides = array<i32>} : memref<2x45x30xf32, #tpu.memory_space<vmem>>, vector<2x7x30xf32>,
    %cst_42 = arith.constant 0.000000e+00 : f32
    %230 = vector.broadcast %cst_42 : f32 to vector<2x7x30xf32>
    %c0_43 = arith.constant 0 : index
    %c38 = arith.constant 38 : index
    %c0_44 = arith.constant 0 : index
    %231 = vector.load %arg14[%c0_43, %c38, %c0_44] : memref<2x45x30xf32, #tpu.memory_space<vmem>>, vector<2x7x30xf32>
    tpu.vector_store %arg14[%c0_43, %c38, %c0_44], %230 {strides = array<i32>} : memref<2x45x30xf32, #tpu.memory_space<vmem>>, vector<2x7x30xf32>,
    %c0_45 = arith.constant 0 : index
    %c7 = arith.constant 7 : index
    %c0_46 = arith.constant 0 : index
    %232 = vector.load %arg14[%c0_45, %c7, %c0_46] : memref<2x45x30xf32, #tpu.memory_space<vmem>>, vector<2x31x30xf32>
    tpu.vector_store %arg14[%c0_45, %c7, %c0_46], %227 {strides = array<i32>} : memref<2x45x30xf32, #tpu.memory_space<vmem>>, vector<2x31x30xf32>,
    %c0_47 = arith.constant 0 : index
    %c0_48 = arith.constant 0 : index
    %c0_49 = arith.constant 0 : index
    %233 = vector.load %arg14[%c0_47, %c0_48, %c0_49] : memref<2x45x30xf32, #tpu.memory_space<vmem>>, vector<2x45x30xf32>
    %c0_50 = arith.constant 0 : index
    %c0_51 = arith.constant 0 : index
    %234 = vector.load %arg5[%c0_50, %c0_51] : memref<15x30xf32, #tpu.memory_space<vmem>>, vector<15x30xf32>
    %c0_52 = arith.constant 0 : index
    %c0_53 = arith.constant 0 : index
    %235 = vector.load %arg6[%c0_52, %c0_53] : memref<1x30xf32, #tpu.memory_space<vmem>>, vector<1x30xf32>
    %cst_54 = arith.constant 0.000000e+00 : f32
    %236 = vector.broadcast %cst_54 : f32 to vector<2x31x30xf32>
    %237 = vector.extract_strided_slice %233 {offsets = [0, 0, 0], sizes = [2, 31, 30], strides = [1, 1, 1]} : vector<2x45x30xf32> to vector<2x31x30xf32>
    %238 = vector.extract_strided_slice %234 {offsets = [0, 0], sizes = [1, 30], strides = [1, 1]} : vector<15x30xf32> to vector<1x30xf32>
    %239 = vector.shape_cast %238 : vector<1x30xf32> to vector<1x1x30xf32>
    %240 = vector.broadcast %239 : vector<1x1x30xf32> to vector<2x31x30xf32>
    %241 = arith.mulf %237, %240 : vector<2x31x30xf32>
    %242 = arith.addf %236, %241 : vector<2x31x30xf32>
    %243 = vector.extract_strided_slice %233 {offsets = [0, 1, 0], sizes = [2, 31, 30], strides = [1, 1, 1]} : vector<2x45x30xf32> to vector<2x31x30xf32>
    %244 = vector.extract_strided_slice %234 {offsets = [1, 0], sizes = [1, 30], strides = [1, 1]} : vector<15x30xf32> to vector<1x30xf32>
    %245 = vector.shape_cast %244 : vector<1x30xf32> to vector<1x1x30xf32>
    %246 = vector.broadcast %245 : vector<1x1x30xf32> to vector<2x31x30xf32>
    %247 = arith.mulf %243, %246 : vector<2x31x30xf32>
    %248 = arith.addf %242, %247 : vector<2x31x30xf32>
    %249 = vector.extract_strided_slice %233 {offsets = [0, 2, 0], sizes = [2, 31, 30], strides = [1, 1, 1]} : vector<2x45x30xf32> to vector<2x31x30xf32>
    %250 = vector.extract_strided_slice %234 {offsets = [2, 0], sizes = [1, 30], strides = [1, 1]} : vector<15x30xf32> to vector<1x30xf32>
    %251 = vector.shape_cast %250 : vector<1x30xf32> to vector<1x1x30xf32>
    %252 = vector.broadcast %251 : vector<1x1x30xf32> to vector<2x31x30xf32>
    %253 = arith.mulf %249, %252 : vector<2x31x30xf32>
    %254 = arith.addf %248, %253 : vector<2x31x30xf32>
    %255 = vector.extract_strided_slice %233 {offsets = [0, 3, 0], sizes = [2, 31, 30], strides = [1, 1, 1]} : vector<2x45x30xf32> to vector<2x31x30xf32>
    %256 = vector.extract_strided_slice %234 {offsets = [3, 0], sizes = [1, 30], strides = [1, 1]} : vector<15x30xf32> to vector<1x30xf32>
    %257 = vector.shape_cast %256 : vector<1x30xf32> to vector<1x1x30xf32>
    %258 = vector.broadcast %257 : vector<1x1x30xf32> to vector<2x31x30xf32>
    %259 = arith.mulf %255, %258 : vector<2x31x30xf32>
    %260 = arith.addf %254, %259 : vector<2x31x30xf32>
    %261 = vector.extract_strided_slice %233 {offsets = [0, 4, 0], sizes = [2, 31, 30], strides = [1, 1, 1]} : vector<2x45x30xf32> to vector<2x31x30xf32>
    %262 = vector.extract_strided_slice %234 {offsets = [4, 0], sizes = [1, 30], strides = [1, 1]} : vector<15x30xf32> to vector<1x30xf32>
    %263 = vector.shape_cast %262 : vector<1x30xf32> to vector<1x1x30xf32>
    %264 = vector.broadcast %263 : vector<1x1x30xf32> to vector<2x31x30xf32>
    %265 = arith.mulf %261, %264 : vector<2x31x30xf32>
    %266 = arith.addf %260, %265 : vector<2x31x30xf32>
    %267 = vector.extract_strided_slice %233 {offsets = [0, 5, 0], sizes = [2, 31, 30], strides = [1, 1, 1]} : vector<2x45x30xf32> to vector<2x31x30xf32>
    %268 = vector.extract_strided_slice %234 {offsets = [5, 0], sizes = [1, 30], strides = [1, 1]} : vector<15x30xf32> to vector<1x30xf32>
    %269 = vector.shape_cast %268 : vector<1x30xf32> to vector<1x1x30xf32>
    %270 = vector.broadcast %269 : vector<1x1x30xf32> to vector<2x31x30xf32>
    %271 = arith.mulf %267, %270 : vector<2x31x30xf32>
    %272 = arith.addf %266, %271 : vector<2x31x30xf32>
    %273 = vector.extract_strided_slice %233 {offsets = [0, 6, 0], sizes = [2, 31, 30], strides = [1, 1, 1]} : vector<2x45x30xf32> to vector<2x31x30xf32>
    %274 = vector.extract_strided_slice %234 {offsets = [6, 0], sizes = [1, 30], strides = [1, 1]} : vector<15x30xf32> to vector<1x30xf32>
    %275 = vector.shape_cast %274 : vector<1x30xf32> to vector<1x1x30xf32>
    %276 = vector.broadcast %275 : vector<1x1x30xf32> to vector<2x31x30xf32>
    %277 = arith.mulf %273, %276 : vector<2x31x30xf32>
    %278 = arith.addf %272, %277 : vector<2x31x30xf32>
    %279 = vector.extract_strided_slice %233 {offsets = [0, 7, 0], sizes = [2, 31, 30], strides = [1, 1, 1]} : vector<2x45x30xf32> to vector<2x31x30xf32>
    %280 = vector.extract_strided_slice %234 {offsets = [7, 0], sizes = [1, 30], strides = [1, 1]} : vector<15x30xf32> to vector<1x30xf32>
    %281 = vector.shape_cast %280 : vector<1x30xf32> to vector<1x1x30xf32>
    %282 = vector.broadcast %281 : vector<1x1x30xf32> to vector<2x31x30xf32>
    %283 = arith.mulf %279, %282 : vector<2x31x30xf32>
    %284 = arith.addf %278, %283 : vector<2x31x30xf32>
    %285 = vector.extract_strided_slice %233 {offsets = [0, 8, 0], sizes = [2, 31, 30], strides = [1, 1, 1]} : vector<2x45x30xf32> to vector<2x31x30xf32>
    %286 = vector.extract_strided_slice %234 {offsets = [8, 0], sizes = [1, 30], strides = [1, 1]} : vector<15x30xf32> to vector<1x30xf32>
    %287 = vector.shape_cast %286 : vector<1x30xf32> to vector<1x1x30xf32>
    %288 = vector.broadcast %287 : vector<1x1x30xf32> to vector<2x31x30xf32>
    %289 = arith.mulf %285, %288 : vector<2x31x30xf32>
    %290 = arith.addf %284, %289 : vector<2x31x30xf32>
    %291 = vector.extract_strided_slice %233 {offsets = [0, 9, 0], sizes = [2, 31, 30], strides = [1, 1, 1]} : vector<2x45x30xf32> to vector<2x31x30xf32>
    %292 = vector.extract_strided_slice %234 {offsets = [9, 0], sizes = [1, 30], strides = [1, 1]} : vector<15x30xf32> to vector<1x30xf32>
    %293 = vector.shape_cast %292 : vector<1x30xf32> to vector<1x1x30xf32>
    %294 = vector.broadcast %293 : vector<1x1x30xf32> to vector<2x31x30xf32>
    %295 = arith.mulf %291, %294 : vector<2x31x30xf32>
    %296 = arith.addf %290, %295 : vector<2x31x30xf32>
    %297 = vector.extract_strided_slice %233 {offsets = [0, 10, 0], sizes = [2, 31, 30], strides = [1, 1, 1]} : vector<2x45x30xf32> to vector<2x31x30xf32>
    %298 = vector.extract_strided_slice %234 {offsets = [10, 0], sizes = [1, 30], strides = [1, 1]} : vector<15x30xf32> to vector<1x30xf32>
    %299 = vector.shape_cast %298 : vector<1x30xf32> to vector<1x1x30xf32>
    %300 = vector.broadcast %299 : vector<1x1x30xf32> to vector<2x31x30xf32>
    %301 = arith.mulf %297, %300 : vector<2x31x30xf32>
    %302 = arith.addf %296, %301 : vector<2x31x30xf32>
    %303 = vector.extract_strided_slice %233 {offsets = [0, 11, 0], sizes = [2, 31, 30], strides = [1, 1, 1]} : vector<2x45x30xf32> to vector<2x31x30xf32>
    %304 = vector.extract_strided_slice %234 {offsets = [11, 0], sizes = [1, 30], strides = [1, 1]} : vector<15x30xf32> to vector<1x30xf32>
    %305 = vector.shape_cast %304 : vector<1x30xf32> to vector<1x1x30xf32>
    %306 = vector.broadcast %305 : vector<1x1x30xf32> to vector<2x31x30xf32>
    %307 = arith.mulf %303, %306 : vector<2x31x30xf32>
    %308 = arith.addf %302, %307 : vector<2x31x30xf32>
    %309 = vector.extract_strided_slice %233 {offsets = [0, 12, 0], sizes = [2, 31, 30], strides = [1, 1, 1]} : vector<2x45x30xf32> to vector<2x31x30xf32>
    %310 = vector.extract_strided_slice %234 {offsets = [12, 0], sizes = [1, 30], strides = [1, 1]} : vector<15x30xf32> to vector<1x30xf32>
    %311 = vector.shape_cast %310 : vector<1x30xf32> to vector<1x1x30xf32>
    %312 = vector.broadcast %311 : vector<1x1x30xf32> to vector<2x31x30xf32>
    %313 = arith.mulf %309, %312 : vector<2x31x30xf32>
    %314 = arith.addf %308, %313 : vector<2x31x30xf32>
    %315 = vector.extract_strided_slice %233 {offsets = [0, 13, 0], sizes = [2, 31, 30], strides = [1, 1, 1]} : vector<2x45x30xf32> to vector<2x31x30xf32>
    %316 = vector.extract_strided_slice %234 {offsets = [13, 0], sizes = [1, 30], strides = [1, 1]} : vector<15x30xf32> to vector<1x30xf32>
    %317 = vector.shape_cast %316 : vector<1x30xf32> to vector<1x1x30xf32>
    %318 = vector.broadcast %317 : vector<1x1x30xf32> to vector<2x31x30xf32>
    %319 = arith.mulf %315, %318 : vector<2x31x30xf32>
    %320 = arith.addf %314, %319 : vector<2x31x30xf32>
    %321 = vector.extract_strided_slice %233 {offsets = [0, 14, 0], sizes = [2, 31, 30], strides = [1, 1, 1]} : vector<2x45x30xf32> to vector<2x31x30xf32>
    %322 = vector.extract_strided_slice %234 {offsets = [14, 0], sizes = [1, 30], strides = [1, 1]} : vector<15x30xf32> to vector<1x30xf32>
    %323 = vector.shape_cast %322 : vector<1x30xf32> to vector<1x1x30xf32>
    %324 = vector.broadcast %323 : vector<1x1x30xf32> to vector<2x31x30xf32>
    %325 = arith.mulf %321, %324 : vector<2x31x30xf32>
    %326 = arith.addf %320, %325 : vector<2x31x30xf32>
    %327 = vector.shape_cast %235 : vector<1x30xf32> to vector<1x1x30xf32>
    %328 = vector.broadcast %327 : vector<1x1x30xf32> to vector<2x31x30xf32>
    %329 = arith.addf %326, %328 : vector<2x31x30xf32>
    %c0_55 = arith.constant 0 : index
    %c0_56 = arith.constant 0 : index
    %330 = vector.load %arg7[%c0_55, %c0_56] : memref<30x120xf32, #tpu.memory_space<vmem>>, vector<30x120xf32>
    %c0_57 = arith.constant 0 : index
    %c0_58 = arith.constant 0 : index
    %331 = vector.load %arg8[%c0_57, %c0_58] : memref<30x120xf32, #tpu.memory_space<vmem>>, vector<30x120xf32>
    %c0_59 = arith.constant 0 : index
    %c0_60 = arith.constant 0 : index
    %332 = vector.load %arg9[%c0_59, %c0_60] : memref<1x120xf32, #tpu.memory_space<vmem>>, vector<1x120xf32>
    %333 = vector.extract_strided_slice %329 {offsets = [0, 0, 0], sizes = [1, 31, 30], strides = [1, 1, 1]} : vector<2x31x30xf32> to vector<1x31x30xf32>
    %334 = vector.shape_cast %333 : vector<1x31x30xf32> to vector<31x30xf32>
    %cst_61 = arith.constant dense<0.000000e+00> : vector<31x120xf32>
    %335 = tpu.matmul %334, %330, %cst_61 {dimension_numbers = #tpu.dot_dimension_numbers<[1], [0], [0], [1], [0, 0, 1, 1], [], []>} : vector<31x30xf32>, vector<30x120xf32>, vector<31x120xf32> -> vector<31x120xf32>
    %336 = vector.broadcast %332 : vector<1x120xf32> to vector<31x120xf32>
    %337 = arith.addf %335, %336 : vector<31x120xf32>
    %338 = vector.extract_strided_slice %329 {offsets = [1, 0, 0], sizes = [1, 31, 30], strides = [1, 1, 1]} : vector<2x31x30xf32> to vector<1x31x30xf32>
    %339 = vector.shape_cast %338 : vector<1x31x30xf32> to vector<31x30xf32>
    %cst_62 = arith.constant dense<0.000000e+00> : vector<31x120xf32>
    %340 = tpu.matmul %339, %330, %cst_62 {dimension_numbers = #tpu.dot_dimension_numbers<[1], [0], [0], [1], [0, 0, 1, 1], [], []>} : vector<31x30xf32>, vector<30x120xf32>, vector<31x120xf32> -> vector<31x120xf32>
    %341 = vector.broadcast %332 : vector<1x120xf32> to vector<31x120xf32>
    %342 = arith.addf %340, %341 : vector<31x120xf32>
    %343 = vector.extract_strided_slice %337 {offsets = [0, 0], sizes = [1, 60], strides = [1, 1]} : vector<31x120xf32> to vector<1x60xf32>
    %344 = vector.extract_strided_slice %342 {offsets = [0, 0], sizes = [1, 60], strides = [1, 1]} : vector<31x120xf32> to vector<1x60xf32>
    %345 = tpu.concatenate %343, %344 in 0 : vector<1x60xf32>, vector<1x60xf32> -> vector<2x60xf32>
    %346 = vector.extract_strided_slice %337 {offsets = [10, 0], sizes = [1, 60], strides = [1, 1]} : vector<31x120xf32> to vector<1x60xf32>
    %347 = vector.extract_strided_slice %342 {offsets = [10, 0], sizes = [1, 60], strides = [1, 1]} : vector<31x120xf32> to vector<1x60xf32>
    %348 = tpu.concatenate %346, %347 in 0 : vector<1x60xf32>, vector<1x60xf32> -> vector<2x60xf32>
    %349 = vector.extract_strided_slice %337 {offsets = [20, 0], sizes = [1, 60], strides = [1, 1]} : vector<31x120xf32> to vector<1x60xf32>
    %350 = vector.extract_strided_slice %342 {offsets = [20, 0], sizes = [1, 60], strides = [1, 1]} : vector<31x120xf32> to vector<1x60xf32>
    %351 = tpu.concatenate %349, %350 in 0 : vector<1x60xf32>, vector<1x60xf32> -> vector<2x60xf32>
    %352 = vector.extract_strided_slice %337 {offsets = [30, 0], sizes = [1, 60], strides = [1, 1]} : vector<31x120xf32> to vector<1x60xf32>
    %353 = vector.extract_strided_slice %342 {offsets = [30, 0], sizes = [1, 60], strides = [1, 1]} : vector<31x120xf32> to vector<1x60xf32>
    %354 = tpu.concatenate %352, %353 in 0 : vector<1x60xf32>, vector<1x60xf32> -> vector<2x60xf32>
    %355 = vector.extract_strided_slice %337 {offsets = [0, 60], sizes = [1, 60], strides = [1, 1]} : vector<31x120xf32> to vector<1x60xf32>
    %356 = vector.extract_strided_slice %342 {offsets = [0, 60], sizes = [1, 60], strides = [1, 1]} : vector<31x120xf32> to vector<1x60xf32>
    %357 = tpu.concatenate %355, %356 in 0 : vector<1x60xf32>, vector<1x60xf32> -> vector<2x60xf32>
    %358 = vector.extract_strided_slice %337 {offsets = [10, 60], sizes = [1, 60], strides = [1, 1]} : vector<31x120xf32> to vector<1x60xf32>
    %359 = vector.extract_strided_slice %342 {offsets = [10, 60], sizes = [1, 60], strides = [1, 1]} : vector<31x120xf32> to vector<1x60xf32>
    %360 = tpu.concatenate %358, %359 in 0 : vector<1x60xf32>, vector<1x60xf32> -> vector<2x60xf32>
    %361 = vector.extract_strided_slice %337 {offsets = [20, 60], sizes = [1, 60], strides = [1, 1]} : vector<31x120xf32> to vector<1x60xf32>
    %362 = vector.extract_strided_slice %342 {offsets = [20, 60], sizes = [1, 60], strides = [1, 1]} : vector<31x120xf32> to vector<1x60xf32>
    %363 = tpu.concatenate %361, %362 in 0 : vector<1x60xf32>, vector<1x60xf32> -> vector<2x60xf32>
    %364 = vector.extract_strided_slice %337 {offsets = [30, 60], sizes = [1, 60], strides = [1, 1]} : vector<31x120xf32> to vector<1x60xf32>
    %365 = vector.extract_strided_slice %342 {offsets = [30, 60], sizes = [1, 60], strides = [1, 1]} : vector<31x120xf32> to vector<1x60xf32>
    %366 = tpu.concatenate %364, %365 in 0 : vector<1x60xf32>, vector<1x60xf32> -> vector<2x60xf32>
    %cst_63 = arith.constant 0.000000e+00 : f32
    %367 = vector.broadcast %cst_63 : f32 to vector<2x15xf32>
    %cst_64 = arith.constant 0.000000e+00 : f32
    %368 = vector.broadcast %cst_64 : f32 to vector<2x15xf32>
    %cst_65 = arith.constant 0.000000e+00 : f32
    %369 = vector.broadcast %cst_65 : f32 to vector<2x15xf32>
    %cst_66 = arith.constant 0.000000e+00 : f32
    %370 = vector.broadcast %cst_66 : f32 to vector<2x15xf32>
    %371 = tpu.concatenate %367, %369 in 1 : vector<2x15xf32>, vector<2x15xf32> -> vector<2x30xf32>
    %cst_67 = arith.constant dense<0.000000e+00> : vector<2x120xf32>
    %372 = tpu.matmul %371, %331, %cst_67 {dimension_numbers = #tpu.dot_dimension_numbers<[1], [0], [0], [1], [0, 0, 1, 1], [], []>} : vector<2x30xf32>, vector<30x120xf32>, vector<2x120xf32> -> vector<2x120xf32>
    %373 = vector.extract_strided_slice %372 {offsets = [0, 0], sizes = [2, 60], strides = [1, 1]} : vector<2x120xf32> to vector<2x60xf32>
    %374 = arith.addf %345, %373 : vector<2x60xf32>
    %375 = vector.extract_strided_slice %372 {offsets = [0, 60], sizes = [2, 60], strides = [1, 1]} : vector<2x120xf32> to vector<2x60xf32>
    %376 = arith.addf %366, %375 : vector<2x60xf32>
    %377 = vector.extract_strided_slice %374 {offsets = [0, 0], sizes = [2, 15], strides = [1, 1]} : vector<2x60xf32> to vector<2x15xf32>
    %cst_68 = arith.constant 0.000000e+00 : f32
    %378 = vector.broadcast %cst_68 : f32 to vector<2x15xf32>
    %379 = arith.subf %378, %377 : vector<2x15xf32>
    %380 = math.exp %379 : vector<2x15xf32>
    %cst_69 = arith.constant 1.000000e+00 : f32
    %381 = vector.broadcast %cst_69 : f32 to vector<2x15xf32>
    %382 = arith.addf %381, %380 : vector<2x15xf32>
    %cst_70 = arith.constant 1.000000e+00 : f32
    %383 = vector.broadcast %cst_70 : f32 to vector<2x15xf32>
    %384 = arith.divf %383, %382 : vector<2x15xf32>
    %385 = vector.extract_strided_slice %374 {offsets = [0, 15], sizes = [2, 15], strides = [1, 1]} : vector<2x60xf32> to vector<2x15xf32>
    %cst_71 = arith.constant 0.000000e+00 : f32
    %386 = vector.broadcast %cst_71 : f32 to vector<2x15xf32>
    %387 = arith.subf %386, %385 : vector<2x15xf32>
    %388 = math.exp %387 : vector<2x15xf32>
    %cst_72 = arith.constant 1.000000e+00 : f32
    %389 = vector.broadcast %cst_72 : f32 to vector<2x15xf32>
    %390 = arith.addf %389, %388 : vector<2x15xf32>
    %cst_73 = arith.constant 1.000000e+00 : f32
    %391 = vector.broadcast %cst_73 : f32 to vector<2x15xf32>
    %392 = arith.divf %391, %390 : vector<2x15xf32>
    %393 = vector.extract_strided_slice %374 {offsets = [0, 30], sizes = [2, 15], strides = [1, 1]} : vector<2x60xf32> to vector<2x15xf32>
    %394 = math.tanh %393 : vector<2x15xf32>
    %395 = vector.extract_strided_slice %374 {offsets = [0, 45], sizes = [2, 15], strides = [1, 1]} : vector<2x60xf32> to vector<2x15xf32>
    %cst_74 = arith.constant 0.000000e+00 : f32
    %396 = vector.broadcast %cst_74 : f32 to vector<2x15xf32>
    %397 = arith.subf %396, %395 : vector<2x15xf32>
    %398 = math.exp %397 : vector<2x15xf32>
    %cst_75 = arith.constant 1.000000e+00 : f32
    %399 = vector.broadcast %cst_75 : f32 to vector<2x15xf32>
    %400 = arith.addf %399, %398 : vector<2x15xf32>
    %cst_76 = arith.constant 1.000000e+00 : f32
    %401 = vector.broadcast %cst_76 : f32 to vector<2x15xf32>
    %402 = arith.divf %401, %400 : vector<2x15xf32>
    %403 = arith.mulf %392, %368 : vector<2x15xf32>
    %404 = arith.mulf %384, %394 : vector<2x15xf32>
    %405 = arith.addf %403, %404 : vector<2x15xf32>
    %406 = math.tanh %405 : vector<2x15xf32>
    %407 = arith.mulf %402, %406 : vector<2x15xf32>
    %408 = vector.extract_strided_slice %376 {offsets = [0, 0], sizes = [2, 15], strides = [1, 1]} : vector<2x60xf32> to vector<2x15xf32>
    %cst_77 = arith.constant 0.000000e+00 : f32
    %409 = vector.broadcast %cst_77 : f32 to vector<2x15xf32>
    %410 = arith.subf %409, %408 : vector<2x15xf32>
    %411 = math.exp %410 : vector<2x15xf32>
    %cst_78 = arith.constant 1.000000e+00 : f32
    %412 = vector.broadcast %cst_78 : f32 to vector<2x15xf32>
    %413 = arith.addf %412, %411 : vector<2x15xf32>
    %cst_79 = arith.constant 1.000000e+00 : f32
    %414 = vector.broadcast %cst_79 : f32 to vector<2x15xf32>
    %415 = arith.divf %414, %413 : vector<2x15xf32>
    %416 = vector.extract_strided_slice %376 {offsets = [0, 15], sizes = [2, 15], strides = [1, 1]} : vector<2x60xf32> to vector<2x15xf32>
    %cst_80 = arith.constant 0.000000e+00 : f32
    %417 = vector.broadcast %cst_80 : f32 to vector<2x15xf32>
    %418 = arith.subf %417, %416 : vector<2x15xf32>
    %419 = math.exp %418 : vector<2x15xf32>
    %cst_81 = arith.constant 1.000000e+00 : f32
    %420 = vector.broadcast %cst_81 : f32 to vector<2x15xf32>
    %421 = arith.addf %420, %419 : vector<2x15xf32>
    %cst_82 = arith.constant 1.000000e+00 : f32
    %422 = vector.broadcast %cst_82 : f32 to vector<2x15xf32>
    %423 = arith.divf %422, %421 : vector<2x15xf32>
    %424 = vector.extract_strided_slice %376 {offsets = [0, 30], sizes = [2, 15], strides = [1, 1]} : vector<2x60xf32> to vector<2x15xf32>
    %425 = math.tanh %424 : vector<2x15xf32>
    %426 = vector.extract_strided_slice %376 {offsets = [0, 45], sizes = [2, 15], strides = [1, 1]} : vector<2x60xf32> to vector<2x15xf32>
    %cst_83 = arith.constant 0.000000e+00 : f32
    %427 = vector.broadcast %cst_83 : f32 to vector<2x15xf32>
    %428 = arith.subf %427, %426 : vector<2x15xf32>
    %429 = math.exp %428 : vector<2x15xf32>
    %cst_84 = arith.constant 1.000000e+00 : f32
    %430 = vector.broadcast %cst_84 : f32 to vector<2x15xf32>
    %431 = arith.addf %430, %429 : vector<2x15xf32>
    %cst_85 = arith.constant 1.000000e+00 : f32
    %432 = vector.broadcast %cst_85 : f32 to vector<2x15xf32>
    %433 = arith.divf %432, %431 : vector<2x15xf32>
    %434 = arith.mulf %423, %370 : vector<2x15xf32>
    %435 = arith.mulf %415, %425 : vector<2x15xf32>
    %436 = arith.addf %434, %435 : vector<2x15xf32>
    %437 = math.tanh %436 : vector<2x15xf32>
    %438 = arith.mulf %433, %437 : vector<2x15xf32>
    %439 = tpu.concatenate %407, %438 in 1 : vector<2x15xf32>, vector<2x15xf32> -> vector<2x30xf32>
    %cst_86 = arith.constant dense<0.000000e+00> : vector<2x120xf32>
    %440 = tpu.matmul %439, %331, %cst_86 {dimension_numbers = #tpu.dot_dimension_numbers<[1], [0], [0], [1], [0, 0, 1, 1], [], []>} : vector<2x30xf32>, vector<30x120xf32>, vector<2x120xf32> -> vector<2x120xf32>
    %441 = vector.extract_strided_slice %440 {offsets = [0, 0], sizes = [2, 60], strides = [1, 1]} : vector<2x120xf32> to vector<2x60xf32>
    %442 = arith.addf %348, %441 : vector<2x60xf32>
    %443 = vector.extract_strided_slice %440 {offsets = [0, 60], sizes = [2, 60], strides = [1, 1]} : vector<2x120xf32> to vector<2x60xf32>
    %444 = arith.addf %363, %443 : vector<2x60xf32>
    %445 = vector.extract_strided_slice %442 {offsets = [0, 0], sizes = [2, 15], strides = [1, 1]} : vector<2x60xf32> to vector<2x15xf32>
    %cst_87 = arith.constant 0.000000e+00 : f32
    %446 = vector.broadcast %cst_87 : f32 to vector<2x15xf32>
    %447 = arith.subf %446, %445 : vector<2x15xf32>
    %448 = math.exp %447 : vector<2x15xf32>
    %cst_88 = arith.constant 1.000000e+00 : f32
    %449 = vector.broadcast %cst_88 : f32 to vector<2x15xf32>
    %450 = arith.addf %449, %448 : vector<2x15xf32>
    %cst_89 = arith.constant 1.000000e+00 : f32
    %451 = vector.broadcast %cst_89 : f32 to vector<2x15xf32>
    %452 = arith.divf %451, %450 : vector<2x15xf32>
    %453 = vector.extract_strided_slice %442 {offsets = [0, 15], sizes = [2, 15], strides = [1, 1]} : vector<2x60xf32> to vector<2x15xf32>
    %cst_90 = arith.constant 0.000000e+00 : f32
    %454 = vector.broadcast %cst_90 : f32 to vector<2x15xf32>
    %455 = arith.subf %454, %453 : vector<2x15xf32>
    %456 = math.exp %455 : vector<2x15xf32>
    %cst_91 = arith.constant 1.000000e+00 : f32
    %457 = vector.broadcast %cst_91 : f32 to vector<2x15xf32>
    %458 = arith.addf %457, %456 : vector<2x15xf32>
    %cst_92 = arith.constant 1.000000e+00 : f32
    %459 = vector.broadcast %cst_92 : f32 to vector<2x15xf32>
    %460 = arith.divf %459, %458 : vector<2x15xf32>
    %461 = vector.extract_strided_slice %442 {offsets = [0, 30], sizes = [2, 15], strides = [1, 1]} : vector<2x60xf32> to vector<2x15xf32>
    %462 = math.tanh %461 : vector<2x15xf32>
    %463 = vector.extract_strided_slice %442 {offsets = [0, 45], sizes = [2, 15], strides = [1, 1]} : vector<2x60xf32> to vector<2x15xf32>
    %cst_93 = arith.constant 0.000000e+00 : f32
    %464 = vector.broadcast %cst_93 : f32 to vector<2x15xf32>
    %465 = arith.subf %464, %463 : vector<2x15xf32>
    %466 = math.exp %465 : vector<2x15xf32>
    %cst_94 = arith.constant 1.000000e+00 : f32
    %467 = vector.broadcast %cst_94 : f32 to vector<2x15xf32>
    %468 = arith.addf %467, %466 : vector<2x15xf32>
    %cst_95 = arith.constant 1.000000e+00 : f32
    %469 = vector.broadcast %cst_95 : f32 to vector<2x15xf32>
    %470 = arith.divf %469, %468 : vector<2x15xf32>
    %471 = arith.mulf %460, %405 : vector<2x15xf32>
    %472 = arith.mulf %452, %462 : vector<2x15xf32>
    %473 = arith.addf %471, %472 : vector<2x15xf32>
    %474 = math.tanh %473 : vector<2x15xf32>
    %475 = arith.mulf %470, %474 : vector<2x15xf32>
    %476 = vector.extract_strided_slice %444 {offsets = [0, 0], sizes = [2, 15], strides = [1, 1]} : vector<2x60xf32> to vector<2x15xf32>
    %cst_96 = arith.constant 0.000000e+00 : f32
    %477 = vector.broadcast %cst_96 : f32 to vector<2x15xf32>
    %478 = arith.subf %477, %476 : vector<2x15xf32>
    %479 = math.exp %478 : vector<2x15xf32>
    %cst_97 = arith.constant 1.000000e+00 : f32
    %480 = vector.broadcast %cst_97 : f32 to vector<2x15xf32>
    %481 = arith.addf %480, %479 : vector<2x15xf32>
    %cst_98 = arith.constant 1.000000e+00 : f32
    %482 = vector.broadcast %cst_98 : f32 to vector<2x15xf32>
    %483 = arith.divf %482, %481 : vector<2x15xf32>
    %484 = vector.extract_strided_slice %444 {offsets = [0, 15], sizes = [2, 15], strides = [1, 1]} : vector<2x60xf32> to vector<2x15xf32>
    %cst_99 = arith.constant 0.000000e+00 : f32
    %485 = vector.broadcast %cst_99 : f32 to vector<2x15xf32>
    %486 = arith.subf %485, %484 : vector<2x15xf32>
    %487 = math.exp %486 : vector<2x15xf32>
    %cst_100 = arith.constant 1.000000e+00 : f32
    %488 = vector.broadcast %cst_100 : f32 to vector<2x15xf32>
    %489 = arith.addf %488, %487 : vector<2x15xf32>
    %cst_101 = arith.constant 1.000000e+00 : f32
    %490 = vector.broadcast %cst_101 : f32 to vector<2x15xf32>
    %491 = arith.divf %490, %489 : vector<2x15xf32>
    %492 = vector.extract_strided_slice %444 {offsets = [0, 30], sizes = [2, 15], strides = [1, 1]} : vector<2x60xf32> to vector<2x15xf32>
    %493 = math.tanh %492 : vector<2x15xf32>
    %494 = vector.extract_strided_slice %444 {offsets = [0, 45], sizes = [2, 15], strides = [1, 1]} : vector<2x60xf32> to vector<2x15xf32>
    %cst_102 = arith.constant 0.000000e+00 : f32
    %495 = vector.broadcast %cst_102 : f32 to vector<2x15xf32>
    %496 = arith.subf %495, %494 : vector<2x15xf32>
    %497 = math.exp %496 : vector<2x15xf32>
    %cst_103 = arith.constant 1.000000e+00 : f32
    %498 = vector.broadcast %cst_103 : f32 to vector<2x15xf32>
    %499 = arith.addf %498, %497 : vector<2x15xf32>
    %cst_104 = arith.constant 1.000000e+00 : f32
    %500 = vector.broadcast %cst_104 : f32 to vector<2x15xf32>
    %501 = arith.divf %500, %499 : vector<2x15xf32>
    %502 = arith.mulf %491, %436 : vector<2x15xf32>
    %503 = arith.mulf %483, %493 : vector<2x15xf32>
    %504 = arith.addf %502, %503 : vector<2x15xf32>
    %505 = math.tanh %504 : vector<2x15xf32>
    %506 = arith.mulf %501, %505 : vector<2x15xf32>
    %507 = tpu.concatenate %475, %506 in 1 : vector<2x15xf32>, vector<2x15xf32> -> vector<2x30xf32>
    %cst_105 = arith.constant dense<0.000000e+00> : vector<2x120xf32>
    %508 = tpu.matmul %507, %331, %cst_105 {dimension_numbers = #tpu.dot_dimension_numbers<[1], [0], [0], [1], [0, 0, 1, 1], [], []>} : vector<2x30xf32>, vector<30x120xf32>, vector<2x120xf32> -> vector<2x120xf32>
    %509 = vector.extract_strided_slice %508 {offsets = [0, 0], sizes = [2, 60], strides = [1, 1]} : vector<2x120xf32> to vector<2x60xf32>
    %510 = arith.addf %351, %509 : vector<2x60xf32>
    %511 = vector.extract_strided_slice %508 {offsets = [0, 60], sizes = [2, 60], strides = [1, 1]} : vector<2x120xf32> to vector<2x60xf32>
    %512 = arith.addf %360, %511 : vector<2x60xf32>
    %513 = vector.extract_strided_slice %510 {offsets = [0, 0], sizes = [2, 15], strides = [1, 1]} : vector<2x60xf32> to vector<2x15xf32>
    %cst_106 = arith.constant 0.000000e+00 : f32
    %514 = vector.broadcast %cst_106 : f32 to vector<2x15xf32>
    %515 = arith.subf %514, %513 : vector<2x15xf32>
    %516 = math.exp %515 : vector<2x15xf32>
    %cst_107 = arith.constant 1.000000e+00 : f32
    %517 = vector.broadcast %cst_107 : f32 to vector<2x15xf32>
    %518 = arith.addf %517, %516 : vector<2x15xf32>
    %cst_108 = arith.constant 1.000000e+00 : f32
    %519 = vector.broadcast %cst_108 : f32 to vector<2x15xf32>
    %520 = arith.divf %519, %518 : vector<2x15xf32>
    %521 = vector.extract_strided_slice %510 {offsets = [0, 15], sizes = [2, 15], strides = [1, 1]} : vector<2x60xf32> to vector<2x15xf32>
    %cst_109 = arith.constant 0.000000e+00 : f32
    %522 = vector.broadcast %cst_109 : f32 to vector<2x15xf32>
    %523 = arith.subf %522, %521 : vector<2x15xf32>
    %524 = math.exp %523 : vector<2x15xf32>
    %cst_110 = arith.constant 1.000000e+00 : f32
    %525 = vector.broadcast %cst_110 : f32 to vector<2x15xf32>
    %526 = arith.addf %525, %524 : vector<2x15xf32>
    %cst_111 = arith.constant 1.000000e+00 : f32
    %527 = vector.broadcast %cst_111 : f32 to vector<2x15xf32>
    %528 = arith.divf %527, %526 : vector<2x15xf32>
    %529 = vector.extract_strided_slice %510 {offsets = [0, 30], sizes = [2, 15], strides = [1, 1]} : vector<2x60xf32> to vector<2x15xf32>
    %530 = math.tanh %529 : vector<2x15xf32>
    %531 = vector.extract_strided_slice %510 {offsets = [0, 45], sizes = [2, 15], strides = [1, 1]} : vector<2x60xf32> to vector<2x15xf32>
    %cst_112 = arith.constant 0.000000e+00 : f32
    %532 = vector.broadcast %cst_112 : f32 to vector<2x15xf32>
    %533 = arith.subf %532, %531 : vector<2x15xf32>
    %534 = math.exp %533 : vector<2x15xf32>
    %cst_113 = arith.constant 1.000000e+00 : f32
    %535 = vector.broadcast %cst_113 : f32 to vector<2x15xf32>
    %536 = arith.addf %535, %534 : vector<2x15xf32>
    %cst_114 = arith.constant 1.000000e+00 : f32
    %537 = vector.broadcast %cst_114 : f32 to vector<2x15xf32>
    %538 = arith.divf %537, %536 : vector<2x15xf32>
    %539 = arith.mulf %528, %473 : vector<2x15xf32>
    %540 = arith.mulf %520, %530 : vector<2x15xf32>
    %541 = arith.addf %539, %540 : vector<2x15xf32>
    %542 = math.tanh %541 : vector<2x15xf32>
    %543 = arith.mulf %538, %542 : vector<2x15xf32>
    %544 = vector.extract_strided_slice %512 {offsets = [0, 0], sizes = [2, 15], strides = [1, 1]} : vector<2x60xf32> to vector<2x15xf32>
    %cst_115 = arith.constant 0.000000e+00 : f32
    %545 = vector.broadcast %cst_115 : f32 to vector<2x15xf32>
    %546 = arith.subf %545, %544 : vector<2x15xf32>
    %547 = math.exp %546 : vector<2x15xf32>
    %cst_116 = arith.constant 1.000000e+00 : f32
    %548 = vector.broadcast %cst_116 : f32 to vector<2x15xf32>
    %549 = arith.addf %548, %547 : vector<2x15xf32>
    %cst_117 = arith.constant 1.000000e+00 : f32
    %550 = vector.broadcast %cst_117 : f32 to vector<2x15xf32>
    %551 = arith.divf %550, %549 : vector<2x15xf32>
    %552 = vector.extract_strided_slice %512 {offsets = [0, 15], sizes = [2, 15], strides = [1, 1]} : vector<2x60xf32> to vector<2x15xf32>
    %cst_118 = arith.constant 0.000000e+00 : f32
    %553 = vector.broadcast %cst_118 : f32 to vector<2x15xf32>
    %554 = arith.subf %553, %552 : vector<2x15xf32>
    %555 = math.exp %554 : vector<2x15xf32>
    %cst_119 = arith.constant 1.000000e+00 : f32
    %556 = vector.broadcast %cst_119 : f32 to vector<2x15xf32>
    %557 = arith.addf %556, %555 : vector<2x15xf32>
    %cst_120 = arith.constant 1.000000e+00 : f32
    %558 = vector.broadcast %cst_120 : f32 to vector<2x15xf32>
    %559 = arith.divf %558, %557 : vector<2x15xf32>
    %560 = vector.extract_strided_slice %512 {offsets = [0, 30], sizes = [2, 15], strides = [1, 1]} : vector<2x60xf32> to vector<2x15xf32>
    %561 = math.tanh %560 : vector<2x15xf32>
    %562 = vector.extract_strided_slice %512 {offsets = [0, 45], sizes = [2, 15], strides = [1, 1]} : vector<2x60xf32> to vector<2x15xf32>
    %cst_121 = arith.constant 0.000000e+00 : f32
    %563 = vector.broadcast %cst_121 : f32 to vector<2x15xf32>
    %564 = arith.subf %563, %562 : vector<2x15xf32>
    %565 = math.exp %564 : vector<2x15xf32>
    %cst_122 = arith.constant 1.000000e+00 : f32
    %566 = vector.broadcast %cst_122 : f32 to vector<2x15xf32>
    %567 = arith.addf %566, %565 : vector<2x15xf32>
    %cst_123 = arith.constant 1.000000e+00 : f32
    %568 = vector.broadcast %cst_123 : f32 to vector<2x15xf32>
    %569 = arith.divf %568, %567 : vector<2x15xf32>
    %570 = arith.mulf %559, %504 : vector<2x15xf32>
    %571 = arith.mulf %551, %561 : vector<2x15xf32>
    %572 = arith.addf %570, %571 : vector<2x15xf32>
    %573 = math.tanh %572 : vector<2x15xf32>
    %574 = arith.mulf %569, %573 : vector<2x15xf32>
    %575 = tpu.concatenate %543, %574 in 1 : vector<2x15xf32>, vector<2x15xf32> -> vector<2x30xf32>
    %cst_124 = arith.constant dense<0.000000e+00> : vector<2x120xf32>
    %576 = tpu.matmul %575, %331, %cst_124 {dimension_numbers = #tpu.dot_dimension_numbers<[1], [0], [0], [1], [0, 0, 1, 1], [], []>} : vector<2x30xf32>, vector<30x120xf32>, vector<2x120xf32> -> vector<2x120xf32>
    %577 = vector.extract_strided_slice %576 {offsets = [0, 0], sizes = [2, 60], strides = [1, 1]} : vector<2x120xf32> to vector<2x60xf32>
    %578 = arith.addf %354, %577 : vector<2x60xf32>
    %579 = vector.extract_strided_slice %576 {offsets = [0, 60], sizes = [2, 60], strides = [1, 1]} : vector<2x120xf32> to vector<2x60xf32>
    %580 = arith.addf %357, %579 : vector<2x60xf32>
    %581 = vector.extract_strided_slice %578 {offsets = [0, 0], sizes = [2, 15], strides = [1, 1]} : vector<2x60xf32> to vector<2x15xf32>
    %cst_125 = arith.constant 0.000000e+00 : f32
    %582 = vector.broadcast %cst_125 : f32 to vector<2x15xf32>
    %583 = arith.subf %582, %581 : vector<2x15xf32>
    %584 = math.exp %583 : vector<2x15xf32>
    %cst_126 = arith.constant 1.000000e+00 : f32
    %585 = vector.broadcast %cst_126 : f32 to vector<2x15xf32>
    %586 = arith.addf %585, %584 : vector<2x15xf32>
    %cst_127 = arith.constant 1.000000e+00 : f32
    %587 = vector.broadcast %cst_127 : f32 to vector<2x15xf32>
    %588 = arith.divf %587, %586 : vector<2x15xf32>
    %589 = vector.extract_strided_slice %578 {offsets = [0, 15], sizes = [2, 15], strides = [1, 1]} : vector<2x60xf32> to vector<2x15xf32>
    %cst_128 = arith.constant 0.000000e+00 : f32
    %590 = vector.broadcast %cst_128 : f32 to vector<2x15xf32>
    %591 = arith.subf %590, %589 : vector<2x15xf32>
    %592 = math.exp %591 : vector<2x15xf32>
    %cst_129 = arith.constant 1.000000e+00 : f32
    %593 = vector.broadcast %cst_129 : f32 to vector<2x15xf32>
    %594 = arith.addf %593, %592 : vector<2x15xf32>
    %cst_130 = arith.constant 1.000000e+00 : f32
    %595 = vector.broadcast %cst_130 : f32 to vector<2x15xf32>
    %596 = arith.divf %595, %594 : vector<2x15xf32>
    %597 = vector.extract_strided_slice %578 {offsets = [0, 30], sizes = [2, 15], strides = [1, 1]} : vector<2x60xf32> to vector<2x15xf32>
    %598 = math.tanh %597 : vector<2x15xf32>
    %599 = vector.extract_strided_slice %578 {offsets = [0, 45], sizes = [2, 15], strides = [1, 1]} : vector<2x60xf32> to vector<2x15xf32>
    %cst_131 = arith.constant 0.000000e+00 : f32
    %600 = vector.broadcast %cst_131 : f32 to vector<2x15xf32>
    %601 = arith.subf %600, %599 : vector<2x15xf32>
    %602 = math.exp %601 : vector<2x15xf32>
    %cst_132 = arith.constant 1.000000e+00 : f32
    %603 = vector.broadcast %cst_132 : f32 to vector<2x15xf32>
    %604 = arith.addf %603, %602 : vector<2x15xf32>
    %cst_133 = arith.constant 1.000000e+00 : f32
    %605 = vector.broadcast %cst_133 : f32 to vector<2x15xf32>
    %606 = arith.divf %605, %604 : vector<2x15xf32>
    %607 = arith.mulf %596, %541 : vector<2x15xf32>
    %608 = arith.mulf %588, %598 : vector<2x15xf32>
    %609 = arith.addf %607, %608 : vector<2x15xf32>
    %610 = math.tanh %609 : vector<2x15xf32>
    %611 = arith.mulf %606, %610 : vector<2x15xf32>
    %612 = vector.extract_strided_slice %580 {offsets = [0, 0], sizes = [2, 15], strides = [1, 1]} : vector<2x60xf32> to vector<2x15xf32>
    %cst_134 = arith.constant 0.000000e+00 : f32
    %613 = vector.broadcast %cst_134 : f32 to vector<2x15xf32>
    %614 = arith.subf %613, %612 : vector<2x15xf32>
    %615 = math.exp %614 : vector<2x15xf32>
    %cst_135 = arith.constant 1.000000e+00 : f32
    %616 = vector.broadcast %cst_135 : f32 to vector<2x15xf32>
    %617 = arith.addf %616, %615 : vector<2x15xf32>
    %cst_136 = arith.constant 1.000000e+00 : f32
    %618 = vector.broadcast %cst_136 : f32 to vector<2x15xf32>
    %619 = arith.divf %618, %617 : vector<2x15xf32>
    %620 = vector.extract_strided_slice %580 {offsets = [0, 15], sizes = [2, 15], strides = [1, 1]} : vector<2x60xf32> to vector<2x15xf32>
    %cst_137 = arith.constant 0.000000e+00 : f32
    %621 = vector.broadcast %cst_137 : f32 to vector<2x15xf32>
    %622 = arith.subf %621, %620 : vector<2x15xf32>
    %623 = math.exp %622 : vector<2x15xf32>
    %cst_138 = arith.constant 1.000000e+00 : f32
    %624 = vector.broadcast %cst_138 : f32 to vector<2x15xf32>
    %625 = arith.addf %624, %623 : vector<2x15xf32>
    %cst_139 = arith.constant 1.000000e+00 : f32
    %626 = vector.broadcast %cst_139 : f32 to vector<2x15xf32>
    %627 = arith.divf %626, %625 : vector<2x15xf32>
    %628 = vector.extract_strided_slice %580 {offsets = [0, 30], sizes = [2, 15], strides = [1, 1]} : vector<2x60xf32> to vector<2x15xf32>
    %629 = math.tanh %628 : vector<2x15xf32>
    %630 = vector.extract_strided_slice %580 {offsets = [0, 45], sizes = [2, 15], strides = [1, 1]} : vector<2x60xf32> to vector<2x15xf32>
    %cst_140 = arith.constant 0.000000e+00 : f32
    %631 = vector.broadcast %cst_140 : f32 to vector<2x15xf32>
    %632 = arith.subf %631, %630 : vector<2x15xf32>
    %633 = math.exp %632 : vector<2x15xf32>
    %cst_141 = arith.constant 1.000000e+00 : f32
    %634 = vector.broadcast %cst_141 : f32 to vector<2x15xf32>
    %635 = arith.addf %634, %633 : vector<2x15xf32>
    %cst_142 = arith.constant 1.000000e+00 : f32
    %636 = vector.broadcast %cst_142 : f32 to vector<2x15xf32>
    %637 = arith.divf %636, %635 : vector<2x15xf32>
    %638 = arith.mulf %627, %572 : vector<2x15xf32>
    %639 = arith.mulf %619, %629 : vector<2x15xf32>
    %640 = arith.addf %638, %639 : vector<2x15xf32>
    %641 = math.tanh %640 : vector<2x15xf32>
    %642 = arith.mulf %637, %641 : vector<2x15xf32>
    %643 = tpu.concatenate %407, %642 in 1 : vector<2x15xf32>, vector<2x15xf32> -> vector<2x30xf32>
    %644 = tpu.concatenate %475, %574 in 1 : vector<2x15xf32>, vector<2x15xf32> -> vector<2x30xf32>
    %645 = tpu.concatenate %543, %506 in 1 : vector<2x15xf32>, vector<2x15xf32> -> vector<2x30xf32>
    %646 = tpu.concatenate %611, %438 in 1 : vector<2x15xf32>, vector<2x15xf32> -> vector<2x30xf32>
    %647 = tpu.concatenate %643, %644, %645, %646 in 1 : vector<2x30xf32>, vector<2x30xf32>, vector<2x30xf32>, vector<2x30xf32> -> vector<2x120xf32>
    %cst_143 = arith.constant dense<0.000000e+00> : vector<120xf32>
    %648 = vector.multi_reduction <add>, %647, %cst_143 [0] : vector<2x120xf32> to vector<120xf32>
    %649 = vector.shape_cast %648 : vector<120xf32> to vector<1x120xf32>
    %cst_144 = arith.constant 2.000000e+00 : f32
    %650 = vector.broadcast %cst_144 : f32 to vector<1x120xf32>
    %651 = arith.divf %649, %650 : vector<1x120xf32>
    %652 = vector.broadcast %651 : vector<1x120xf32> to vector<2x120xf32>
    %653 = arith.subf %647, %652 : vector<2x120xf32>
    %654 = arith.mulf %653, %653 : vector<2x120xf32>
    %cst_145 = arith.constant dense<0.000000e+00> : vector<120xf32>
    %655 = vector.multi_reduction <add>, %654, %cst_145 [0] : vector<2x120xf32> to vector<120xf32>
    %656 = vector.shape_cast %655 : vector<120xf32> to vector<1x120xf32>
    %cst_146 = arith.constant 2.000000e+00 : f32
    %657 = vector.broadcast %cst_146 : f32 to vector<1x120xf32>
    %658 = arith.divf %656, %657 : vector<1x120xf32>
    %659 = vector.broadcast %651 : vector<1x120xf32> to vector<2x120xf32>
    %660 = arith.subf %647, %659 : vector<2x120xf32>
    %cst_147 = arith.constant 9.99999974E-6 : f32
    %661 = vector.broadcast %cst_147 : f32 to vector<1x120xf32>
    %662 = arith.addf %658, %661 : vector<1x120xf32>
    %663 = math.rsqrt %662 : vector<1x120xf32>
    %664 = vector.broadcast %663 : vector<1x120xf32> to vector<2x120xf32>
    %665 = arith.mulf %660, %664 : vector<2x120xf32>
    %c0_148 = arith.constant 0 : index
    %c0_149 = arith.constant 0 : index
    %666 = vector.load %arg10[%c0_148, %c0_149] : memref<120x2xf32, #tpu.memory_space<vmem>>, vector<120x2xf32>
    %cst_150 = arith.constant dense<0.000000e+00> : vector<2x2xf32>
    %667 = tpu.matmul %665, %666, %cst_150 {dimension_numbers = #tpu.dot_dimension_numbers<[1], [0], [0], [1], [0, 0, 1, 1], [], []>} : vector<2x120xf32>, vector<120x2xf32>, vector<2x2xf32> -> vector<2x2xf32>
    %c0_151 = arith.constant 0 : index
    %c0_152 = arith.constant 0 : index
    %668 = vector.load %arg11[%c0_151, %c0_152] : memref<1x2xf32, #tpu.memory_space<vmem>>, vector<1x2xf32>
    %669 = vector.broadcast %668 : vector<1x2xf32> to vector<2x2xf32>
    %670 = arith.addf %667, %669 : vector<2x2xf32>
    %c0_153 = arith.constant 0 : index
    %c0_154 = arith.constant 0 : index
    %671 = vector.load %arg12[%c0_153, %c0_154] : memref<2x2xf32, #tpu.memory_space<vmem>>, vector<2x2xf32>
    tpu.vector_store %arg12[%c0_153, %c0_154], %670 {strides = array<i32>} : memref<2x2xf32, #tpu.memory_space<vmem>>, vector<2x2xf32>,
    return
  }
  func.func @transform_0(%arg0: i32) -> (i32, i32, i32) {
    %c0_i32 = arith.constant 0 : i32
    %c0_i32_0 = arith.constant 0 : i32
    %c0_i32_1 = arith.constant 0 : i32
    %c0_i32_2 = arith.constant 0 : i32
    return %c0_i32, %c0_i32_0, %c0_i32_1 : i32, i32, i32
  }
  func.func @transform_1(%arg0: i32) -> (i32, i32) {
    %c0_i32 = arith.constant 0 : i32
    %c0_i32_0 = arith.constant 0 : i32
    %c0_i32_1 = arith.constant 0 : i32
    return %c0_i32, %c0_i32_0 : i32, i32
  }
  func.func @transform_2(%arg0: i32) -> (i32, i32) {
    %c0_i32 = arith.constant 0 : i32
    %c0_i32_0 = arith.constant 0 : i32
    %c0_i32_1 = arith.constant 0 : i32
    return %c0_i32, %c0_i32_0 : i32, i32
  }
  func.func @transform_3(%arg0: i32) -> (i32, i32) {
    %c0_i32 = arith.constant 0 : i32
    %c0_i32_0 = arith.constant 0 : i32
    %c0_i32_1 = arith.constant 0 : i32
    return %c0_i32, %c0_i32_0 : i32, i32
  }
  func.func @transform_4(%arg0: i32) -> (i32, i32) {
    %c0_i32 = arith.constant 0 : i32
    %c0_i32_0 = arith.constant 0 : i32
    %c0_i32_1 = arith.constant 0 : i32
    return %c0_i32, %c0_i32_0 : i32, i32
  }
  func.func @transform_5(%arg0: i32) -> (i32, i32) {
    %c0_i32 = arith.constant 0 : i32
    %c0_i32_0 = arith.constant 0 : i32
    %c0_i32_1 = arith.constant 0 : i32
    return %c0_i32, %c0_i32_0 : i32, i32
  }
  func.func @transform_6(%arg0: i32) -> (i32, i32) {
    %c0_i32 = arith.constant 0 : i32
    %c0_i32_0 = arith.constant 0 : i32
    %c0_i32_1 = arith.constant 0 : i32
    return %c0_i32, %c0_i32_0 : i32, i32
  }
  func.func @transform_7(%arg0: i32) -> (i32, i32) {
    %c0_i32 = arith.constant 0 : i32
    %c0_i32_0 = arith.constant 0 : i32
    %c0_i32_1 = arith.constant 0 : i32
    return %c0_i32, %c0_i32_0 : i32, i32
  }
  func.func @transform_8(%arg0: i32) -> (i32, i32) {
    %c0_i32 = arith.constant 0 : i32
    %c0_i32_0 = arith.constant 0 : i32
    %c0_i32_1 = arith.constant 0 : i32
    return %c0_i32, %c0_i32_0 : i32, i32
  }
  func.func @transform_9(%arg0: i32) -> (i32, i32) {
    %c0_i32 = arith.constant 0 : i32
    %c0_i32_0 = arith.constant 0 : i32
    %c0_i32_1 = arith.constant 0 : i32
    return %c0_i32, %c0_i32_0 : i32, i32
  }
  func.func @transform_10(%arg0: i32) -> (i32, i32) {
    %c0_i32 = arith.constant 0 : i32
    %c0_i32_0 = arith.constant 0 : i32
    %c0_i32_1 = arith.constant 0 : i32
    return %c0_i32, %c0_i32_0 : i32, i32
  }
  func.func @transform_11(%arg0: i32) -> (i32, i32) {
    %c0_i32 = arith.constant 0 : i32
    %c0_i32_0 = arith.constant 0 : i32
    %c0_i32_1 = arith.constant 0 : i32
    return %c0_i32, %c0_i32_0 : i32, i32
  }
}

</mosaic_0001>

<llo_original>
// kernel: tpu_custom_call.1
$region0: #{tpu_custom_call.1}
  #allocation0 [shape = 'u32[]', space=smem, size = 0x4, offset = 0x4, fixed_abs, tag = 'smem constant byte address 0x4 - core index']
  #allocation1 [shape = 'u32[144,128]{1,0:T(1,128)}', space=vmem, size = 0x12000, scoped, tag = 'internal scratch']
  #allocation2 [shape = 'f32[2,55,30]{2,1,0:T(8,128)}', space=vmem, size = 0xe000, scoped, tag = 'scratch operand']
  #allocation3 [shape = 'f32[2,45,30]{2,1,0:T(8,128)}', space=vmem, size = 0xc000, scoped, tag = 'scratch operand']
  %s0 = inlined_call_operand.vmem [shape: f32[2,31,4], index: 0, kind: input, shape index: {}]
  %s1 = inlined_call_operand.vmem [shape: f32[4,30], index: 1, kind: input, shape index: {}]
  %s2 = inlined_call_operand.vmem [shape: f32[1,30], index: 2, kind: input, shape index: {}]
  %s3 = inlined_call_operand.vmem [shape: f32[25,30], index: 3, kind: input, shape index: {}]
  %s4 = inlined_call_operand.vmem [shape: f32[15,30], index: 4, kind: input, shape index: {}]
  %s5 = inlined_call_operand.vmem [shape: f32[1,30], index: 5, kind: input, shape index: {}]
  %s6 = inlined_call_operand.vmem [shape: f32[30,120], index: 6, kind: input, shape index: {}]
  %s7 = inlined_call_operand.vmem [shape: f32[30,120], index: 7, kind: input, shape index: {}]
  %s8 = inlined_call_operand.vmem [shape: f32[1,120], index: 8, kind: input, shape index: {}]
  %s9 = inlined_call_operand.vmem [shape: f32[120,2], index: 9, kind: input, shape index: {}]
  %s10 = inlined_call_operand.vmem [shape: f32[1,2], index: 10, kind: input, shape index: {}]
  %s11 = inlined_call_operand.hbm [shape: f32[2,2], index: 11, kind: output, shape index: {}]
  %s12 = sld [smem:[#allocation0]]
  $region54: #{tpu_custom_call.1} parent=0
    _
  %s14 = ssub.s32 1, %s12
  %s15 = scalar_select 0, %s14, %s12
  $region1: #{tpu_custom_call.1} parent=0
    #allocation4 [shape = 'u8[1024]{0}', space=vmem, size = 0x400, scoped, tag = 'output window, operand 0, single buffered']
    #allocation5 [shape = 's32[1]{0}', space=sflag, size = 0x4, scoped, tag = 'scoped memory for tpu_custom_call.1']
    %16 = vsyncpa [#allocation5], 0
    // Predicated region
    $region2: #{tpu_custom_call.1} parent=1 // pred_check
      _
    $region3: #{tpu_custom_call.1} parent=1 // pred_check_branch
      %18 = sbr.rel (0) target = $region5
    $region4: #{tpu_custom_call.1} parent=1 // pred_region
      _
    $region5: #{tpu_custom_call.1} parent=1 // pred_fallthru
      _
    // Predicated region
    $region6: #{tpu_custom_call.1} parent=1 // pred_check
      _
    $region7: #{tpu_custom_call.1} parent=1 // pred_check_branch
      %20 = sbr.rel (0) target = $region9
    $region8: #{tpu_custom_call.1} parent=1 // pred_region
      _
    $region9: #{tpu_custom_call.1} parent=1 // pred_fallthru
      _
    // Predicated region
    $region10: #{tpu_custom_call.1} parent=1 // pred_check
      _
    $region11: #{tpu_custom_call.1} parent=1 // pred_check_branch
      %22 = sbr.rel (0) target = $region13
    $region12: #{tpu_custom_call.1} parent=1 // pred_region
      _
    $region13: #{tpu_custom_call.1} parent=1 // pred_fallthru
      _
    // Predicated region
    $region14: #{tpu_custom_call.1} parent=1 // pred_check
      _
    $region15: #{tpu_custom_call.1} parent=1 // pred_check_branch
      %24 = sbr.rel (0) target = $region17
    $region16: #{tpu_custom_call.1} parent=1 // pred_region
      _
    $region17: #{tpu_custom_call.1} parent=1 // pred_fallthru
      _
    // Predicated region
    $region18: #{tpu_custom_call.1} parent=1 // pred_check
      _
    $region19: #{tpu_custom_call.1} parent=1 // pred_check_branch
      %26 = sbr.rel (0) target = $region21
    $region20: #{tpu_custom_call.1} parent=1 // pred_region
      _
    $region21: #{tpu_custom_call.1} parent=1 // pred_fallthru
      _
    // Predicated region
    $region22: #{tpu_custom_call.1} parent=1 // pred_check
      _
    $region23: #{tpu_custom_call.1} parent=1 // pred_check_branch
      %28 = sbr.rel (0) target = $region25
    $region24: #{tpu_custom_call.1} parent=1 // pred_region
      _
    $region25: #{tpu_custom_call.1} parent=1 // pred_fallthru
      _
    // Predicated region
    $region26: #{tpu_custom_call.1} parent=1 // pred_check
      _
    $region27: #{tpu_custom_call.1} parent=1 // pred_check_branch
      %30 = sbr.rel (0) target = $region29
    $region28: #{tpu_custom_call.1} parent=1 // pred_region
      _
    $region29: #{tpu_custom_call.1} parent=1 // pred_fallthru
      _
    // Predicated region
    $region30: #{tpu_custom_call.1} parent=1 // pred_check
      _
    $region31: #{tpu_custom_call.1} parent=1 // pred_check_branch
      %32 = sbr.rel (0) target = $region33
    $region32: #{tpu_custom_call.1} parent=1 // pred_region
      _
    $region33: #{tpu_custom_call.1} parent=1 // pred_fallthru
      _
    // Predicated region
    $region34: #{tpu_custom_call.1} parent=1 // pred_check
      _
    $region35: #{tpu_custom_call.1} parent=1 // pred_check_branch
      %34 = sbr.rel (0) target = $region37
    $region36: #{tpu_custom_call.1} parent=1 // pred_region
      _
    $region37: #{tpu_custom_call.1} parent=1 // pred_fallthru
      _
    // Predicated region
    $region38: #{tpu_custom_call.1} parent=1 // pred_check
      _
    $region39: #{tpu_custom_call.1} parent=1 // pred_check_branch
      %36 = sbr.rel (0) target = $region41
    $region40: #{tpu_custom_call.1} parent=1 // pred_region
      _
    $region41: #{tpu_custom_call.1} parent=1 // pred_fallthru
      _
    // Predicated region
    $region42: #{tpu_custom_call.1} parent=1 // pred_check
      _
    $region43: #{tpu_custom_call.1} parent=1 // pred_check_branch
      %38 = sbr.rel (0) target = $region45
    $region44: #{tpu_custom_call.1} parent=1 // pred_region
      _
    $region45: #{tpu_custom_call.1} parent=1 // pred_fallthru
      _
    %v39 = vld [vmem:[%s0] sm:$0xff]
    %v40 = vld [vmem:[%s0 + $0x8] sm:$0xff]
    %v41 = vld [vmem:[%s0 + $0x10] sm:$0xff]
    %v42 = vld [vmem:[%s0 + $0x18] sm:$0x7f]
    %v43 = vld [vmem:[%s0 + $0x20] sm:$0xff]
    %v44 = vld [vmem:[%s0 + $0x28] sm:$0xff]
    %v45 = vld [vmem:[%s0 + $0x30] sm:$0xff]
    %v46 = vld [vmem:[%s0 + $0x38] sm:$0x7f]
    %v47 = vld [vmem:[%s1] sm:$0xf]
    %v48 = vld [vmem:[%s2] sm:$0x1]
    %v50 = vlaneseq
    %v51 = vshrl.u32 %v50, 7
    %v52 = vsub.s32 0, %v51
    %v53 = vrot.slane %v48, %v52
    %vm55 = vcmask 31744
    %v57 = vsel %vm55, %v39, 0
    %v60 = vsel %vm55, %v40, 0
    %v63 = vsel %vm55, %v41, 0
    %v66 = vsel %vm55, %v42, 0
    %vm68 = vcmask 1043456
    %v70 = vsel %vm68, %v47, 0
    %72 = vmatprep.subr.mxu0 0.0
    %73 = vmatpush1.msra.mxu0 %v70
    %74 = vmatprep.subr.mxu0 0.0
    %75 = vmatpush1.msra.mxu0 0.0
    %76 = vmatprep.subr.mxu0 0.0
    %77 = vmatpush1.msra.mxu0 0.0
    %78 = vmatprep.subr.mxu0 0.0
    %79 = vmatpush1.msra.mxu0 0.0
    %80 = vmatprep.subr.mxu0 0.0
    %81 = vmatpush1.msra.mxu0 0.0
    %82 = vmatprep.subr.mxu0 0.0
    %83 = vmatpush1.msra.mxu0 0.0
    %84 = vmatprep.subr.mxu0 0.0
    %85 = vmatpush1.msra.mxu0 0.0
    %86 = vmatprep.subr.mxu0 0.0
    %87 = vmatpush1.msra.mxu0 0.0
    %88 = vmatprep.subr.mxu0 0.0
    %89 = vmatpush1.msra.mxu0 0.0
    %90 = vmatprep.subr.mxu0 0.0
    %91 = vmatpush1.msra.mxu0 0.0
    %92 = vmatprep.subr.mxu0 0.0
    %93 = vmatpush1.msra.mxu0 0.0
    %94 = vmatprep.subr.mxu0 0.0
    %95 = vmatpush1.msra.mxu0 0.0
    %96 = vmatprep.subr.mxu0 0.0
    %97 = vmatpush1.msra.mxu0 0.0
    %98 = vmatprep.subr.mxu0 0.0
    %99 = vmatpush1.msra.mxu0 0.0
    %100 = vmatprep.subr.mxu0 0.0
    %101 = vmatpush1.msra.mxu0 0.0
    %102 = vmatprep.subr.mxu0 0.0
    %103 = vmatpush1.msra.mxu0 0.0
    %104 = vmatprep.subr.mxu0 0.0
    %105 = vmatpush1.msra.mxu0 0.0
    %106 = vmatprep.subr.mxu0 0.0
    %107 = vmatpush1.msra.mxu0 0.0
    %108 = vmatprep.subr.mxu0 0.0
    %109 = vmatpush1.msra.mxu0 0.0
    %110 = vmatprep.subr.mxu0 0.0
    %111 = vmatpush1.msra.mxu0 0.0
    %112 = vmatprep.subr.mxu0 0.0
    %113 = vmatpush1.msra.mxu0 0.0
    %114 = vmatprep.subr.mxu0 0.0
    %115 = vmatpush1.msra.mxu0 0.0
    %116 = vmatprep.subr.mxu0 0.0
    %117 = vmatpush1.msra.mxu0 0.0
    %118 = vmatprep.subr.mxu0 0.0
    %119 = vmatpush1.msra.mxu0 0.0
    %120 = vmatprep.subr.mxu0 0.0
    %121 = vmatpush1.msra.mxu0 0.0
    %122 = vmatprep.subr.mxu0 0.0
    %123 = vmatpush1.msra.mxu0 0.0
    %124 = vmatprep.subr.mxu0 0.0
    %125 = vmatpush1.msra.mxu0 0.0
    %126 = vmatprep.subr.mxu0 0.0
    %127 = vmatpush1.msra.mxu0 0.0
    %128 = vmatprep.subr.mxu0 0.0
    %129 = vmatpush1.msra.mxu0 0.0
    %130 = vmatprep.subr.mxu0 0.0
    %131 = vmatpush1.msra.mxu0 0.0
    %132 = vmatprep.subr.mxu0 0.0
    %133 = vmatpush1.msra.mxu0 0.0
    %134 = vmatprep.subr.mxu0 0.0
    %135 = vmatpush1.msra.mxu0 0.0
    %136 = vmatprep.mubr.f32.mxu0 0.0
    %137 = vmatmul.mubr.f32.gmra.mrb[0].mxu0 %v57
    %v138 = vpop.f32.mrb[0].mxu0
    %v139 = vadd.f32 %v53, %v138
    %v140 = vpop.f32.mrb[0].mxu0
    %141 = vmatprep.mubr.f32.mxu0 0.0
    %142 = vmatmul.mubr.f32.gmra.mrb[0].mxu0 %v60
    %v143 = vpop.f32.mrb[0].mxu0
    %v144 = vadd.f32 %v53, %v143
    %v145 = vpop.f32.mrb[0].mxu0
    %146 = vmatprep.mubr.f32.mxu0 0.0
    %147 = vmatmul.mubr.f32.gmra.mrb[0].mxu0 %v63
    %v148 = vpop.f32.mrb[0].mxu0
    %v149 = vadd.f32 %v53, %v148
    %v150 = vpop.f32.mrb[0].mxu0
    %151 = vmatprep.mubr.f32.mxu0 0.0
    %152 = vmatmul.mubr.f32.gmra.mrb[0].mxu0 %v66
    %v153 = vpop.f32.mrb[0].mxu0
    %v154 = vadd.f32 %v53, %v153
    %v155 = vpop.f32.mrb[0].mxu0
    %156 = vdwg.mxu0
    %v158 = vsel %vm55, %v43, 0
    %v161 = vsel %vm55, %v44, 0
    %v164 = vsel %vm55, %v45, 0
    %v167 = vsel %vm55, %v46, 0
    %169 = vmatprep.subr.mxu0 0.0
    %170 = vmatpush1.msra.mxu0 %v70
    %171 = vmatprep.subr.mxu0 0.0
    %172 = vmatpush1.msra.mxu0 0.0
    %173 = vmatprep.subr.mxu0 0.0
    %174 = vmatpush1.msra.mxu0 0.0
    %175 = vmatprep.subr.mxu0 0.0
    %176 = vmatpush1.msra.mxu0 0.0
    %177 = vmatprep.subr.mxu0 0.0
    %178 = vmatpush1.msra.mxu0 0.0
    %179 = vmatprep.subr.mxu0 0.0
    %180 = vmatpush1.msra.mxu0 0.0
    %181 = vmatprep.subr.mxu0 0.0
    %182 = vmatpush1.msra.mxu0 0.0
    %183 = vmatprep.subr.mxu0 0.0
    %184 = vmatpush1.msra.mxu0 0.0
    %185 = vmatprep.subr.mxu0 0.0
    %186 = vmatpush1.msra.mxu0 0.0
    %187 = vmatprep.subr.mxu0 0.0
    %188 = vmatpush1.msra.mxu0 0.0
    %189 = vmatprep.subr.mxu0 0.0
    %190 = vmatpush1.msra.mxu0 0.0
    %191 = vmatprep.subr.mxu0 0.0
    %192 = vmatpush1.msra.mxu0 0.0
    %193 = vmatprep.subr.mxu0 0.0
    %194 = vmatpush1.msra.mxu0 0.0
    %195 = vmatprep.subr.mxu0 0.0
    %196 = vmatpush1.msra.mxu0 0.0
    %197 = vmatprep.subr.mxu0 0.0
    %198 = vmatpush1.msra.mxu0 0.0
    %199 = vmatprep.subr.mxu0 0.0
    %200 = vmatpush1.msra.mxu0 0.0
    %201 = vmatprep.subr.mxu0 0.0
    %202 = vmatpush1.msra.mxu0 0.0
    %203 = vmatprep.subr.mxu0 0.0
    %204 = vmatpush1.msra.mxu0 0.0
    %205 = vmatprep.subr.mxu0 0.0
    %206 = vmatpush1.msra.mxu0 0.0
    %207 = vmatprep.subr.mxu0 0.0
    %208 = vmatpush1.msra.mxu0 0.0
    %209 = vmatprep.subr.mxu0 0.0
    %210 = vmatpush1.msra.mxu0 0.0
    %211 = vmatprep.subr.mxu0 0.0
    %212 = vmatpush1.msra.mxu0 0.0
    %213 = vmatprep.subr.mxu0 0.0
    %214 = vmatpush1.msra.mxu0 0.0
    %215 = vmatprep.subr.mxu0 0.0
    %216 = vmatpush1.msra.mxu0 0.0
    %217 = vmatprep.subr.mxu0 0.0
    %218 = vmatpush1.msra.mxu0 0.0
    %219 = vmatprep.subr.mxu0 0.0
    %220 = vmatpush1.msra.mxu0 0.0
    %221 = vmatprep.subr.mxu0 0.0
    %222 = vmatpush1.msra.mxu0 0.0
    %223 = vmatprep.subr.mxu0 0.0
    %224 = vmatpush1.msra.mxu0 0.0
    %225 = vmatprep.subr.mxu0 0.0
    %226 = vmatpush1.msra.mxu0 0.0
    %227 = vmatprep.subr.mxu0 0.0
    %228 = vmatpush1.msra.mxu0 0.0
    %229 = vmatprep.subr.mxu0 0.0
    %230 = vmatpush1.msra.mxu0 0.0
    %231 = vmatprep.subr.mxu0 0.0
    %232 = vmatpush1.msra.mxu0 0.0
    %233 = vmatprep.mubr.f32.mxu0 0.0
    %234 = vmatmul.mubr.f32.gmra.mrb[0].mxu0 %v158
    %v235 = vpop.f32.mrb[0].mxu0
    %v236 = vadd.f32 %v53, %v235
    %v237 = vpop.f32.mrb[0].mxu0
    %238 = vmatprep.mubr.f32.mxu0 0.0
    %239 = vmatmul.mubr.f32.gmra.mrb[0].mxu0 %v161
    %v240 = vpop.f32.mrb[0].mxu0
    %v241 = vadd.f32 %v53, %v240
    %v242 = vpop.f32.mrb[0].mxu0
    %243 = vmatprep.mubr.f32.mxu0 0.0
    %244 = vmatmul.mubr.f32.gmra.mrb[0].mxu0 %v164
    %v245 = vpop.f32.mrb[0].mxu0
    %v246 = vadd.f32 %v53, %v245
    %v247 = vpop.f32.mrb[0].mxu0
    %248 = vmatprep.mubr.f32.mxu0 0.0
    %249 = vmatmul.mubr.f32.gmra.mrb[0].mxu0 %v167
    %v250 = vpop.f32.mrb[0].mxu0
    %v251 = vadd.f32 %v53, %v250
    %v252 = vpop.f32.mrb[0].mxu0
    %253 = vdwg.mxu0
    %vm254 = vcmask 244736
    %v255 = vsel %vm254, %v139, 0.0
    %v256 = vsel %vm254, %v144, 0.0
    %v257 = vadd.f32 %v255, %v256
    %v258 = vsel %vm254, %v149, 0.0
    %v259 = vadd.f32 %v257, %v258
    %vm260 = vcmask 243712
    %v261 = vsel %vm260, %v154, 0.0
    %v262 = vadd.f32 %v259, %v261
    %v263 = vrot.slane %v262, 4
    %v264 = vadd.f32 %v262, %v263
    %v265 = vrot.slane %v264, 2
    %v266 = vadd.f32 %v264, %v265
    %v267 = vrot.slane %v266, 1
    %v268 = vadd.f32 %v266, %v267
    %v269 = vadd.f32 %v268, 0.0
    %v270 = vsel %vm254, %v236, 0.0
    %v271 = vsel %vm254, %v241, 0.0
    %v272 = vadd.f32 %v270, %v271
    %v273 = vsel %vm254, %v246, 0.0
    %v274 = vadd.f32 %v272, %v273
    %v275 = vsel %vm260, %v251, 0.0
    %v276 = vadd.f32 %v274, %v275
    %v277 = vrot.slane %v276, 4
    %v278 = vadd.f32 %v276, %v277
    %v279 = vrot.slane %v278, 2
    %v280 = vadd.f32 %v278, %v279
    %v281 = vrot.slane %v280, 1
    %v282 = vadd.f32 %v280, %v281
    %v283 = vadd.f32 %v269, %v282
    %v284 = vrcp.pop 62.0
    %v285 = vmul.f32 %v283, %v284
    %v286 = vsub.f32 %v139, %v285
    %v287 = vsub.f32 %v144, %v285
    %v288 = vsub.f32 %v149, %v285
    %v289 = vsub.f32 %v154, %v285
    %v290 = vmul.f32 %v286, %v286
    %v291 = vmul.f32 %v287, %v287
    %v292 = vmul.f32 %v288, %v288
    %v293 = vmul.f32 %v289, %v289
    %v294 = vsel %vm254, %v290, 0.0
    %v295 = vsel %vm254, %v291, 0.0
    %v296 = vadd.f32 %v294, %v295
    %v297 = vsel %vm254, %v292, 0.0
    %v298 = vadd.f32 %v296, %v297
    %v299 = vsel %vm260, %v293, 0.0
    %v300 = vadd.f32 %v298, %v299
    %v301 = vrot.slane %v300, 4
    %v302 = vadd.f32 %v300, %v301
    %v303 = vrot.slane %v302, 2
    %v304 = vadd.f32 %v302, %v303
    %v305 = vrot.slane %v304, 1
    %v306 = vadd.f32 %v304, %v305
    %v307 = vadd.f32 %v306, 0.0
    %v308 = vsub.f32 %v236, %v285
    %v309 = vsub.f32 %v241, %v285
    %v310 = vsub.f32 %v246, %v285
    %v311 = vsub.f32 %v251, %v285
    %v312 = vmul.f32 %v308, %v308
    %v313 = vmul.f32 %v309, %v309
    %v314 = vmul.f32 %v310, %v310
    %v315 = vmul.f32 %v311, %v311
    %v316 = vsel %vm254, %v312, 0.0
    %v317 = vsel %vm254, %v313, 0.0
    %v318 = vadd.f32 %v316, %v317
    %v319 = vsel %vm254, %v314, 0.0
    %v320 = vadd.f32 %v318, %v319
    %v321 = vsel %vm260, %v315, 0.0
    %v322 = vadd.f32 %v320, %v321
    %v323 = vrot.slane %v322, 4
    %v324 = vadd.f32 %v322, %v323
    %v325 = vrot.slane %v324, 2
    %v326 = vadd.f32 %v324, %v325
    %v327 = vrot.slane %v326, 1
    %v328 = vadd.f32 %v326, %v327
    %v329 = vadd.f32 %v307, %v328
    %v330 = vmul.f32 %v329, %v284
    %v331 = vadd.f32 %v330, 1e-05
    %v332 = vrsqrt.pop %v331
    %333 = vst.msk [vmem:[#allocation2] sm:$0xff] %vm254, 0.0
    %vm334 = vcmask 240640
    %335 = vst.msk [vmem:[#allocation2 + $0x8] sm:$0xf] %vm334, 0.0
    %336 = vst.msk [vmem:[#allocation2 + $0x38] sm:$0xff] %vm254, 0.0
    %337 = vst.msk [vmem:[#allocation2 + $0x40] sm:$0xf] %vm334, 0.0
    %338 = vst.msk [vmem:[#allocation2 + $0x2b] sm:$0xff] %vm254, 0.0
    %339 = vst.msk [vmem:[#allocation2 + $0x33] sm:$0xf] %vm334, 0.0
    %340 = vst.msk [vmem:[#allocation2 + $0x63] sm:$0xff] %vm254, 0.0
    %341 = vst.msk [vmem:[#allocation2 + $0x6b] sm:$0xf] %vm334, 0.0
    %v342 = vmul.f32 %v286, %v332
    %v343 = vmul.f32 %v287, %v332
    %v344 = vmul.f32 %v288, %v332
    %v345 = vmul.f32 %v289, %v332
    %346 = vst.msk [vmem:[#allocation2 + $0xc] sm:$0xff] %vm254, %v342
    %347 = vst.msk [vmem:[#allocation2 + $0x14] sm:$0xff] %vm254, %v343
    %348 = vst.msk [vmem:[#allocation2 + $0x1c] sm:$0xff] %vm254, %v344
    %349 = vst.msk [vmem:[#allocation2 + $0x24] sm:$0x7f] %vm260, %v345
    %v350 = vmul.f32 %v308, %v332
    %v351 = vmul.f32 %v309, %v332
    %v352 = vmul.f32 %v310, %v332
    %v353 = vmul.f32 %v311, %v332
    %s354 = scalar_lea.vmem [#allocation2], 56
    %355 = vst.msk [vmem:[%s354 + $0xc] sm:$0xff] %vm254, %v350
    %356 = vst.msk [vmem:[%s354 + $0x14] sm:$0xff] %vm254, %v351
    %357 = vst.msk [vmem:[%s354 + $0x1c] sm:$0xff] %vm254, %v352
    %358 = vst.msk [vmem:[%s354 + $0x24] sm:$0x7f] %vm260, %v353
    %v359 = vld [vmem:[#allocation2] sm:$0xff]
    %v360 = vld [vmem:[#allocation2 + $0x8] sm:$0xff]
    %v361 = vld [vmem:[#allocation2 + $0x10] sm:$0xff]
    %v362 = vld [vmem:[#allocation2 + $0x18] sm:$0xff]
    %v363 = vld [vmem:[#allocation2 + $0x20] sm:$0xff]
    %v364 = vld [vmem:[#allocation2 + $0x28] sm:$0xff]
    %v365 = vld [vmem:[#allocation2 + $0x30] sm:$0x7f]
    %v366 = vld [vmem:[#allocation2 + $0x38] sm:$0xff]
    %v367 = vld [vmem:[#allocation2 + $0x40] sm:$0xff]
    %v368 = vld [vmem:[#allocation2 + $0x48] sm:$0xff]
    %v369 = vld [vmem:[#allocation2 + $0x50] sm:$0xff]
    %v370 = vld [vmem:[#allocation2 + $0x58] sm:$0xff]
    %v371 = vld [vmem:[#allocation2 + $0x60] sm:$0xff]
    %v372 = vld [vmem:[#allocation2 + $0x68] sm:$0x7f]
    %v373 = vld [vmem:[%s3] sm:$0xff]
    %v374 = vld [vmem:[%s3 + $0x8] sm:$0xff]
    %v375 = vld [vmem:[%s3 + $0x10] sm:$0xff]
    %v376 = vld [vmem:[%s3 + $0x18] sm:$0x1]
    %v377 = vlaneseq
    %v378 = vshrl.u32 %v377, 7
    %v379 = vsub.s32 0, %v378
    %v380 = vrot.slane %v373, %v379
    %v381 = vmul.f32 %v359, %v380
    %v382 = vmul.f32 %v360, %v380
    %v383 = vmul.f32 %v361, %v380
    %v384 = vmul.f32 %v362, %v380
    %v385 = vmul.f32 %v366, %v380
    %v386 = vmul.f32 %v367, %v380
    %v387 = vmul.f32 %v368, %v380
    %v388 = vmul.f32 %v369, %v380
    %v389 = vadd.f32 %v381, 0.0
    %v390 = vadd.f32 %v382, 0.0
    %v391 = vadd.f32 %v383, 0.0
    %v392 = vadd.f32 %v384, 0.0
    %v393 = vadd.f32 %v385, 0.0
    %v394 = vadd.f32 %v386, 0.0
    %v395 = vadd.f32 %v387, 0.0
    %v396 = vadd.f32 %v388, 0.0
    %v397 = vlaneseq
    %v398 = vshrl.u32 %v397, 7
    %v399 = vsub.s32 1, %v398
    %v400 = vrot.slane %v373, %v399
    %v401 = vmul.f32 %v359, %v400
    %v402 = vmul.f32 %v360, %v400
    %v403 = vmul.f32 %v361, %v400
    %v404 = vmul.f32 %v362, %v400
    %v405 = vmul.f32 %v366, %v400
    %v406 = vmul.f32 %v367, %v400
    %v407 = vmul.f32 %v368, %v400
    %v408 = vmul.f32 %v369, %v400
    %vm417 = vcmask 1046528
    %v418 = vrot.slane %v401, 1
    %v419 = vrot.slane %v402, 1
    %v420 = vsel %vm417, %v418, %v419
    %v421 = vrot.slane %v403, 1
    %v422 = vsel %vm417, %v419, %v421
    %v423 = vrot.slane %v404, 1
    %v424 = vsel %vm417, %v421, %v423
    %v425 = vrot.slane %v405, 1
    %v426 = vrot.slane %v406, 1
    %v427 = vsel %vm417, %v425, %v426
    %v428 = vrot.slane %v407, 1
    %v429 = vsel %vm417, %v426, %v428
    %v430 = vrot.slane %v408, 1
    %v431 = vsel %vm417, %v428, %v430
    %v440 = vadd.f32 %v389, %v420
    %v441 = vadd.f32 %v390, %v422
    %v442 = vadd.f32 %v391, %v424
    %v443 = vadd.f32 %v392, %v423
    %v444 = vadd.f32 %v393, %v427
    %v445 = vadd.f32 %v394, %v429
    %v446 = vadd.f32 %v395, %v431
    %v447 = vadd.f32 %v396, %v430
    %v448 = vlaneseq
    %v449 = vshrl.u32 %v448, 7
    %v450 = vsub.s32 2, %v449
    %v451 = vrot.slane %v373, %v450
    %v452 = vmul.f32 %v359, %v451
    %v453 = vmul.f32 %v360, %v451
    %v454 = vmul.f32 %v361, %v451
    %v455 = vmul.f32 %v362, %v451
    %v456 = vmul.f32 %v363, %v451
    %v457 = vmul.f32 %v366, %v451
    %v458 = vmul.f32 %v367, %v451
    %v459 = vmul.f32 %v368, %v451
    %v460 = vmul.f32 %v369, %v451
    %v461 = vmul.f32 %v370, %v451
    %vm472 = vcmask 1045504
    %v473 = vrot.slane %v452, 2
    %v474 = vrot.slane %v453, 2
    %v475 = vsel %vm472, %v473, %v474
    %v476 = vrot.slane %v454, 2
    %v477 = vsel %vm472, %v474, %v476
    %v478 = vrot.slane %v455, 2
    %v479 = vsel %vm472, %v476, %v478
    %v480 = vrot.slane %v456, 2
    %v481 = vsel %vm472, %v478, %v480
    %v482 = vrot.slane %v457, 2
    %v483 = vrot.slane %v458, 2
    %v484 = vsel %vm472, %v482, %v483
    %v485 = vrot.slane %v459, 2
    %v486 = vsel %vm472, %v483, %v485
    %v487 = vrot.slane %v460, 2
    %v488 = vsel %vm472, %v485, %v487
    %v489 = vrot.slane %v461, 2
    %v490 = vsel %vm472, %v487, %v489
    %v499 = vadd.f32 %v440, %v475
    %v500 = vadd.f32 %v441, %v477
    %v501 = vadd.f32 %v442, %v479
    %v502 = vadd.f32 %v443, %v481
    %v503 = vadd.f32 %v444, %v484
    %v504 = vadd.f32 %v445, %v486
    %v505 = vadd.f32 %v446, %v488
    %v506 = vadd.f32 %v447, %v490
    %v507 = vlaneseq
    %v508 = vshrl.u32 %v507, 7
    %v509 = vsub.s32 3, %v508
    %v510 = vrot.slane %v373, %v509
    %v511 = vmul.f32 %v359, %v510
    %v512 = vmul.f32 %v360, %v510
    %v513 = vmul.f32 %v361, %v510
    %v514 = vmul.f32 %v362, %v510
    %v515 = vmul.f32 %v363, %v510
    %v516 = vmul.f32 %v366, %v510
    %v517 = vmul.f32 %v367, %v510
    %v518 = vmul.f32 %v368, %v510
    %v519 = vmul.f32 %v369, %v510
    %v520 = vmul.f32 %v370, %v510
    %vm531 = vcmask 1044480
    %v532 = vrot.slane %v511, 3
    %v533 = vrot.slane %v512, 3
    %v534 = vsel %vm531, %v532, %v533
    %v535 = vrot.slane %v513, 3
    %v536 = vsel %vm531, %v533, %v535
    %v537 = vrot.slane %v514, 3
    %v538 = vsel %vm531, %v535, %v537
    %v539 = vrot.slane %v515, 3
    %v540 = vsel %vm531, %v537, %v539
    %v541 = vrot.slane %v516, 3
    %v542 = vrot.slane %v517, 3
    %v543 = vsel %vm531, %v541, %v542
    %v544 = vrot.slane %v518, 3
    %v545 = vsel %vm531, %v542, %v544
    %v546 = vrot.slane %v519, 3
    %v547 = vsel %vm531, %v544, %v546
    %v548 = vrot.slane %v520, 3
    %v549 = vsel %vm531, %v546, %v548
    %v558 = vadd.f32 %v499, %v534
    %v559 = vadd.f32 %v500, %v536
    %v560 = vadd.f32 %v501, %v538
    %v561 = vadd.f32 %v502, %v540
    %v562 = vadd.f32 %v503, %v543
    %v563 = vadd.f32 %v504, %v545
    %v564 = vadd.f32 %v505, %v547
    %v565 = vadd.f32 %v506, %v549
    %v566 = vlaneseq
    %v567 = vshrl.u32 %v566, 7
    %v568 = vsub.s32 4, %v567
    %v569 = vrot.slane %v373, %v568
    %v570 = vmul.f32 %v359, %v569
    %v571 = vmul.f32 %v360, %v569
    %v572 = vmul.f32 %v361, %v569
    %v573 = vmul.f32 %v362, %v569
    %v574 = vmul.f32 %v363, %v569
    %v575 = vmul.f32 %v366, %v569
    %v576 = vmul.f32 %v367, %v569
    %v577 = vmul.f32 %v368, %v569
    %v578 = vmul.f32 %v369, %v569
    %v579 = vmul.f32 %v370, %v569
    %v590 = vrot.slane %v570, 4
    %v591 = vrot.slane %v571, 4
    %v592 = vsel %vm68, %v590, %v591
    %v593 = vrot.slane %v572, 4
    %v594 = vsel %vm68, %v591, %v593
    %v595 = vrot.slane %v573, 4
    %v596 = vsel %vm68, %v593, %v595
    %v597 = vrot.slane %v574, 4
    %v598 = vsel %vm68, %v595, %v597
    %v599 = vrot.slane %v575, 4
    %v600 = vrot.slane %v576, 4
    %v601 = vsel %vm68, %v599, %v600
    %v602 = vrot.slane %v577, 4
    %v603 = vsel %vm68, %v600, %v602
    %v604 = vrot.slane %v578, 4
    %v605 = vsel %vm68, %v602, %v604
    %v606 = vrot.slane %v579, 4
    %v607 = vsel %vm68, %v604, %v606
    %v616 = vadd.f32 %v558, %v592
    %v617 = vadd.f32 %v559, %v594
    %v618 = vadd.f32 %v560, %v596
    %v619 = vadd.f32 %v561, %v598
    %v620 = vadd.f32 %v562, %v601
    %v621 = vadd.f32 %v563, %v603
    %v622 = vadd.f32 %v564, %v605
    %v623 = vadd.f32 %v565, %v607
    %v624 = vlaneseq
    %v625 = vshrl.u32 %v624, 7
    %v626 = vsub.s32 5, %v625
    %v627 = vrot.slane %v373, %v626
    %v628 = vmul.f32 %v359, %v627
    %v629 = vmul.f32 %v360, %v627
    %v630 = vmul.f32 %v361, %v627
    %v631 = vmul.f32 %v362, %v627
    %v632 = vmul.f32 %v363, %v627
    %v633 = vmul.f32 %v366, %v627
    %v634 = vmul.f32 %v367, %v627
    %v635 = vmul.f32 %v368, %v627
    %v636 = vmul.f32 %v369, %v627
    %v637 = vmul.f32 %v370, %v627
    %vm648 = vcmask 1042432
    %v649 = vrot.slane %v628, 5
    %v650 = vrot.slane %v629, 5
    %v651 = vsel %vm648, %v649, %v650
    %v652 = vrot.slane %v630, 5
    %v653 = vsel %vm648, %v650, %v652
    %v654 = vrot.slane %v631, 5
    %v655 = vsel %vm648, %v652, %v654
    %v656 = vrot.slane %v632, 5
    %v657 = vsel %vm648, %v654, %v656
    %v658 = vrot.slane %v633, 5
    %v659 = vrot.slane %v634, 5
    %v660 = vsel %vm648, %v658, %v659
    %v661 = vrot.slane %v635, 5
    %v662 = vsel %vm648, %v659, %v661
    %v663 = vrot.slane %v636, 5
    %v664 = vsel %vm648, %v661, %v663
    %v665 = vrot.slane %v637, 5
    %v666 = vsel %vm648, %v663, %v665
    %v675 = vadd.f32 %v616, %v651
    %v676 = vadd.f32 %v617, %v653
    %v677 = vadd.f32 %v618, %v655
    %v678 = vadd.f32 %v619, %v657
    %v679 = vadd.f32 %v620, %v660
    %v680 = vadd.f32 %v621, %v662
    %v681 = vadd.f32 %v622, %v664
    %v682 = vadd.f32 %v623, %v666
    %v683 = vlaneseq
    %v684 = vshrl.u32 %v683, 7
    %v685 = vsub.s32 6, %v684
    %v686 = vrot.slane %v373, %v685
    %v687 = vmul.f32 %v359, %v686
    %v688 = vmul.f32 %v360, %v686
    %v689 = vmul.f32 %v361, %v686
    %v690 = vmul.f32 %v362, %v686
    %v691 = vmul.f32 %v363, %v686
    %v692 = vmul.f32 %v366, %v686
    %v693 = vmul.f32 %v367, %v686
    %v694 = vmul.f32 %v368, %v686
    %v695 = vmul.f32 %v369, %v686
    %v696 = vmul.f32 %v370, %v686
    %vm707 = vcmask 1041408
    %v708 = vrot.slane %v687, 6
    %v709 = vrot.slane %v688, 6
    %v710 = vsel %vm707, %v708, %v709
    %v711 = vrot.slane %v689, 6
    %v712 = vsel %vm707, %v709, %v711
    %v713 = vrot.slane %v690, 6
    %v714 = vsel %vm707, %v711, %v713
    %v715 = vrot.slane %v691, 6
    %v716 = vsel %vm707, %v713, %v715
    %v717 = vrot.slane %v692, 6
    %v718 = vrot.slane %v693, 6
    %v719 = vsel %vm707, %v717, %v718
    %v720 = vrot.slane %v694, 6
    %v721 = vsel %vm707, %v718, %v720
    %v722 = vrot.slane %v695, 6
    %v723 = vsel %vm707, %v720, %v722
    %v724 = vrot.slane %v696, 6
    %v725 = vsel %vm707, %v722, %v724
    %v734 = vadd.f32 %v675, %v710
    %v735 = vadd.f32 %v676, %v712
    %v736 = vadd.f32 %v677, %v714
    %v737 = vadd.f32 %v678, %v716
    %v738 = vadd.f32 %v679, %v719
    %v739 = vadd.f32 %v680, %v721
    %v740 = vadd.f32 %v681, %v723
    %v741 = vadd.f32 %v682, %v725
    %v742 = vlaneseq
    %v743 = vshrl.u32 %v742, 7
    %v744 = vsub.s32 7, %v743
    %v745 = vrot.slane %v373, %v744
    %v746 = vmul.f32 %v359, %v745
    %v747 = vmul.f32 %v360, %v745
    %v748 = vmul.f32 %v361, %v745
    %v749 = vmul.f32 %v362, %v745
    %v750 = vmul.f32 %v363, %v745
    %v751 = vmul.f32 %v366, %v745
    %v752 = vmul.f32 %v367, %v745
    %v753 = vmul.f32 %v368, %v745
    %v754 = vmul.f32 %v369, %v745
    %v755 = vmul.f32 %v370, %v745
    %vm766 = vcmask 1040384
    %v767 = vrot.slane %v746, 7
    %v768 = vrot.slane %v747, 7
    %v769 = vsel %vm766, %v767, %v768
    %v770 = vrot.slane %v748, 7
    %v771 = vsel %vm766, %v768, %v770
    %v772 = vrot.slane %v749, 7
    %v773 = vsel %vm766, %v770, %v772
    %v774 = vrot.slane %v750, 7
    %v775 = vsel %vm766, %v772, %v774
    %v776 = vrot.slane %v751, 7
    %v777 = vrot.slane %v752, 7
    %v778 = vsel %vm766, %v776, %v777
    %v779 = vrot.slane %v753, 7
    %v780 = vsel %vm766, %v777, %v779
    %v781 = vrot.slane %v754, 7
    %v782 = vsel %vm766, %v779, %v781
    %v783 = vrot.slane %v755, 7
    %v784 = vsel %vm766, %v781, %v783
    %v793 = vadd.f32 %v734, %v769
    %v794 = vadd.f32 %v735, %v771
    %v795 = vadd.f32 %v736, %v773
    %v796 = vadd.f32 %v737, %v775
    %v797 = vadd.f32 %v738, %v778
    %v798 = vadd.f32 %v739, %v780
    %v799 = vadd.f32 %v740, %v782
    %v800 = vadd.f32 %v741, %v784
    %v801 = vlaneseq
    %v802 = vshrl.u32 %v801, 7
    %v803 = vsub.s32 0, %v802
    %v804 = vrot.slane %v374, %v803
    %v805 = vmul.f32 %v360, %v804
    %v806 = vmul.f32 %v361, %v804
    %v807 = vmul.f32 %v362, %v804
    %v808 = vmul.f32 %v363, %v804
    %v809 = vmul.f32 %v367, %v804
    %v810 = vmul.f32 %v368, %v804
    %v811 = vmul.f32 %v369, %v804
    %v812 = vmul.f32 %v370, %v804
    %v813 = vadd.f32 %v793, %v805
    %v814 = vadd.f32 %v794, %v806
    %v815 = vadd.f32 %v795, %v807
    %v816 = vadd.f32 %v796, %v808
    %v817 = vadd.f32 %v797, %v809
    %v818 = vadd.f32 %v798, %v810
    %v819 = vadd.f32 %v799, %v811
    %v820 = vadd.f32 %v800, %v812
    %v821 = vlaneseq
    %v822 = vshrl.u32 %v821, 7
    %v823 = vsub.s32 1, %v822
    %v824 = vrot.slane %v374, %v823
    %v825 = vmul.f32 %v360, %v824
    %v826 = vmul.f32 %v361, %v824
    %v827 = vmul.f32 %v362, %v824
    %v828 = vmul.f32 %v363, %v824
    %v829 = vmul.f32 %v367, %v824
    %v830 = vmul.f32 %v368, %v824
    %v831 = vmul.f32 %v369, %v824
    %v832 = vmul.f32 %v370, %v824
    %v841 = vrot.slane %v825, 1
    %v842 = vrot.slane %v826, 1
    %v843 = vsel %vm417, %v841, %v842
    %v844 = vrot.slane %v827, 1
    %v845 = vsel %vm417, %v842, %v844
    %v846 = vrot.slane %v828, 1
    %v847 = vsel %vm417, %v844, %v846
    %v848 = vrot.slane %v829, 1
    %v849 = vrot.slane %v830, 1
    %v850 = vsel %vm417, %v848, %v849
    %v851 = vrot.slane %v831, 1
    %v852 = vsel %vm417, %v849, %v851
    %v853 = vrot.slane %v832, 1
    %v854 = vsel %vm417, %v851, %v853
    %v863 = vadd.f32 %v813, %v843
    %v864 = vadd.f32 %v814, %v845
    %v865 = vadd.f32 %v815, %v847
    %v866 = vadd.f32 %v816, %v846
    %v867 = vadd.f32 %v817, %v850
    %v868 = vadd.f32 %v818, %v852
    %v869 = vadd.f32 %v819, %v854
    %v870 = vadd.f32 %v820, %v853
    %v871 = vlaneseq
    %v872 = vshrl.u32 %v871, 7
    %v873 = vsub.s32 2, %v872
    %v874 = vrot.slane %v374, %v873
    %v875 = vmul.f32 %v360, %v874
    %v876 = vmul.f32 %v361, %v874
    %v877 = vmul.f32 %v362, %v874
    %v878 = vmul.f32 %v363, %v874
    %v879 = vmul.f32 %v364, %v874
    %v880 = vmul.f32 %v367, %v874
    %v881 = vmul.f32 %v368, %v874
    %v882 = vmul.f32 %v369, %v874
    %v883 = vmul.f32 %v370, %v874
    %v884 = vmul.f32 %v371, %v874
    %v895 = vrot.slane %v875, 2
    %v896 = vrot.slane %v876, 2
    %v897 = vsel %vm472, %v895, %v896
    %v898 = vrot.slane %v877, 2
    %v899 = vsel %vm472, %v896, %v898
    %v900 = vrot.slane %v878, 2
    %v901 = vsel %vm472, %v898, %v900
    %v902 = vrot.slane %v879, 2
    %v903 = vsel %vm472, %v900, %v902
    %v904 = vrot.slane %v880, 2
    %v905 = vrot.slane %v881, 2
    %v906 = vsel %vm472, %v904, %v905
    %v907 = vrot.slane %v882, 2
    %v908 = vsel %vm472, %v905, %v907
    %v909 = vrot.slane %v883, 2
    %v910 = vsel %vm472, %v907, %v909
    %v911 = vrot.slane %v884, 2
    %v912 = vsel %vm472, %v909, %v911
    %v921 = vadd.f32 %v863, %v897
    %v922 = vadd.f32 %v864, %v899
    %v923 = vadd.f32 %v865, %v901
    %v924 = vadd.f32 %v866, %v903
    %v925 = vadd.f32 %v867, %v906
    %v926 = vadd.f32 %v868, %v908
    %v927 = vadd.f32 %v869, %v910
    %v928 = vadd.f32 %v870, %v912
    %v929 = vlaneseq
    %v930 = vshrl.u32 %v929, 7
    %v931 = vsub.s32 3, %v930
    %v932 = vrot.slane %v374, %v931
    %v933 = vmul.f32 %v360, %v932
    %v934 = vmul.f32 %v361, %v932
    %v935 = vmul.f32 %v362, %v932
    %v936 = vmul.f32 %v363, %v932
    %v937 = vmul.f32 %v364, %v932
    %v938 = vmul.f32 %v367, %v932
    %v939 = vmul.f32 %v368, %v932
    %v940 = vmul.f32 %v369, %v932
    %v941 = vmul.f32 %v370, %v932
    %v942 = vmul.f32 %v371, %v932
    %v953 = vrot.slane %v933, 3
    %v954 = vrot.slane %v934, 3
    %v955 = vsel %vm531, %v953, %v954
    %v956 = vrot.slane %v935, 3
    %v957 = vsel %vm531, %v954, %v956
    %v958 = vrot.slane %v936, 3
    %v959 = vsel %vm531, %v956, %v958
    %v960 = vrot.slane %v937, 3
    %v961 = vsel %vm531, %v958, %v960
    %v962 = vrot.slane %v938, 3
    %v963 = vrot.slane %v939, 3
    %v964 = vsel %vm531, %v962, %v963
    %v965 = vrot.slane %v940, 3
    %v966 = vsel %vm531, %v963, %v965
    %v967 = vrot.slane %v941, 3
    %v968 = vsel %vm531, %v965, %v967
    %v969 = vrot.slane %v942, 3
    %v970 = vsel %vm531, %v967, %v969
    %v979 = vadd.f32 %v921, %v955
    %v980 = vadd.f32 %v922, %v957
    %v981 = vadd.f32 %v923, %v959
    %v982 = vadd.f32 %v924, %v961
    %v983 = vadd.f32 %v925, %v964
    %v984 = vadd.f32 %v926, %v966
    %v985 = vadd.f32 %v927, %v968
    %v986 = vadd.f32 %v928, %v970
    %v987 = vlaneseq
    %v988 = vshrl.u32 %v987, 7
    %v989 = vsub.s32 4, %v988
    %v990 = vrot.slane %v374, %v989
    %v991 = vmul.f32 %v360, %v990
    %v992 = vmul.f32 %v361, %v990
    %v993 = vmul.f32 %v362, %v990
    %v994 = vmul.f32 %v363, %v990
    %v995 = vmul.f32 %v364, %v990
    %v996 = vmul.f32 %v367, %v990
    %v997 = vmul.f32 %v368, %v990
    %v998 = vmul.f32 %v369, %v990
    %v999 = vmul.f32 %v370, %v990
    %v1000 = vmul.f32 %v371, %v990
    %v1011 = vrot.slane %v991, 4
    %v1012 = vrot.slane %v992, 4
    %v1013 = vsel %vm68, %v1011, %v1012
    %v1014 = vrot.slane %v993, 4
    %v1015 = vsel %vm68, %v1012, %v1014
    %v1016 = vrot.slane %v994, 4
    %v1017 = vsel %vm68, %v1014, %v1016
    %v1018 = vrot.slane %v995, 4
    %v1019 = vsel %vm68, %v1016, %v1018
    %v1020 = vrot.slane %v996, 4
    %v1021 = vrot.slane %v997, 4
    %v1022 = vsel %vm68, %v1020, %v1021
    %v1023 = vrot.slane %v998, 4
    %v1024 = vsel %vm68, %v1021, %v1023
    %v1025 = vrot.slane %v999, 4
    %v1026 = vsel %vm68, %v1023, %v1025
    %v1027 = vrot.slane %v1000, 4
    %v1028 = vsel %vm68, %v1025, %v1027
    %v1037 = vadd.f32 %v979, %v1013
    %v1038 = vadd.f32 %v980, %v1015
    %v1039 = vadd.f32 %v981, %v1017
    %v1040 = vadd.f32 %v982, %v1019
    %v1041 = vadd.f32 %v983, %v1022
    %v1042 = vadd.f32 %v984, %v1024
    %v1043 = vadd.f32 %v985, %v1026
    %v1044 = vadd.f32 %v986, %v1028
    %v1045 = vlaneseq
    %v1046 = vshrl.u32 %v1045, 7
    %v1047 = vsub.s32 5, %v1046
    %v1048 = vrot.slane %v374, %v1047
    %v1049 = vmul.f32 %v360, %v1048
    %v1050 = vmul.f32 %v361, %v1048
    %v1051 = vmul.f32 %v362, %v1048
    %v1052 = vmul.f32 %v363, %v1048
    %v1053 = vmul.f32 %v364, %v1048
    %v1054 = vmul.f32 %v367, %v1048
    %v1055 = vmul.f32 %v368, %v1048
    %v1056 = vmul.f32 %v369, %v1048
    %v1057 = vmul.f32 %v370, %v1048
    %v1058 = vmul.f32 %v371, %v1048
    %v1069 = vrot.slane %v1049, 5
    %v1070 = vrot.slane %v1050, 5
    %v1071 = vsel %vm648, %v1069, %v1070
    %v1072 = vrot.slane %v1051, 5
    %v1073 = vsel %vm648, %v1070, %v1072
    %v1074 = vrot.slane %v1052, 5
    %v1075 = vsel %vm648, %v1072, %v1074
    %v1076 = vrot.slane %v1053, 5
    %v1077 = vsel %vm648, %v1074, %v1076
    %v1078 = vrot.slane %v1054, 5
    %v1079 = vrot.slane %v1055, 5
    %v1080 = vsel %vm648, %v1078, %v1079
    %v1081 = vrot.slane %v1056, 5
    %v1082 = vsel %vm648, %v1079, %v1081
    %v1083 = vrot.slane %v1057, 5
    %v1084 = vsel %vm648, %v1081, %v1083
    %v1085 = vrot.slane %v1058, 5
    %v1086 = vsel %vm648, %v1083, %v1085
    %v1095 = vadd.f32 %v1037, %v1071
    %v1096 = vadd.f32 %v1038, %v1073
    %v1097 = vadd.f32 %v1039, %v1075
    %v1098 = vadd.f32 %v1040, %v1077
    %v1099 = vadd.f32 %v1041, %v1080
    %v1100 = vadd.f32 %v1042, %v1082
    %v1101 = vadd.f32 %v1043, %v1084
    %v1102 = vadd.f32 %v1044, %v1086
    %v1103 = vlaneseq
    %v1104 = vshrl.u32 %v1103, 7
    %v1105 = vsub.s32 6, %v1104
    %v1106 = vrot.slane %v374, %v1105
    %v1107 = vmul.f32 %v360, %v1106
    %v1108 = vmul.f32 %v361, %v1106
    %v1109 = vmul.f32 %v362, %v1106
    %v1110 = vmul.f32 %v363, %v1106
    %v1111 = vmul.f32 %v364, %v1106
    %v1112 = vmul.f32 %v367, %v1106
    %v1113 = vmul.f32 %v368, %v1106
    %v1114 = vmul.f32 %v369, %v1106
    %v1115 = vmul.f32 %v370, %v1106
    %v1116 = vmul.f32 %v371, %v1106
    %v1127 = vrot.slane %v1107, 6
    %v1128 = vrot.slane %v1108, 6
    %v1129 = vsel %vm707, %v1127, %v1128
    %v1130 = vrot.slane %v1109, 6
    %v1131 = vsel %vm707, %v1128, %v1130
    %v1132 = vrot.slane %v1110, 6
    %v1133 = vsel %vm707, %v1130, %v1132
    %v1134 = vrot.slane %v1111, 6
    %v1135 = vsel %vm707, %v1132, %v1134
    %v1136 = vrot.slane %v1112, 6
    %v1137 = vrot.slane %v1113, 6
    %v1138 = vsel %vm707, %v1136, %v1137
    %v1139 = vrot.slane %v1114, 6
    %v1140 = vsel %vm707, %v1137, %v1139
    %v1141 = vrot.slane %v1115, 6
    %v1142 = vsel %vm707, %v1139, %v1141
    %v1143 = vrot.slane %v1116, 6
    %v1144 = vsel %vm707, %v1141, %v1143
    %v1153 = vadd.f32 %v1095, %v1129
    %v1154 = vadd.f32 %v1096, %v1131
    %v1155 = vadd.f32 %v1097, %v1133
    %v1156 = vadd.f32 %v1098, %v1135
    %v1157 = vadd.f32 %v1099, %v1138
    %v1158 = vadd.f32 %v1100, %v1140
    %v1159 = vadd.f32 %v1101, %v1142
    %v1160 = vadd.f32 %v1102, %v1144
    %v1161 = vlaneseq
    %v1162 = vshrl.u32 %v1161, 7
    %v1163 = vsub.s32 7, %v1162
    %v1164 = vrot.slane %v374, %v1163
    %v1165 = vmul.f32 %v360, %v1164
    %v1166 = vmul.f32 %v361, %v1164
    %v1167 = vmul.f32 %v362, %v1164
    %v1168 = vmul.f32 %v363, %v1164
    %v1169 = vmul.f32 %v364, %v1164
    %v1170 = vmul.f32 %v367, %v1164
    %v1171 = vmul.f32 %v368, %v1164
    %v1172 = vmul.f32 %v369, %v1164
    %v1173 = vmul.f32 %v370, %v1164
    %v1174 = vmul.f32 %v371, %v1164
    %v1185 = vrot.slane %v1165, 7
    %v1186 = vrot.slane %v1166, 7
    %v1187 = vsel %vm766, %v1185, %v1186
    %v1188 = vrot.slane %v1167, 7
    %v1189 = vsel %vm766, %v1186, %v1188
    %v1190 = vrot.slane %v1168, 7
    %v1191 = vsel %vm766, %v1188, %v1190
    %v1192 = vrot.slane %v1169, 7
    %v1193 = vsel %vm766, %v1190, %v1192
    %v1194 = vrot.slane %v1170, 7
    %v1195 = vrot.slane %v1171, 7
    %v1196 = vsel %vm766, %v1194, %v1195
    %v1197 = vrot.slane %v1172, 7
    %v1198 = vsel %vm766, %v1195, %v1197
    %v1199 = vrot.slane %v1173, 7
    %v1200 = vsel %vm766, %v1197, %v1199
    %v1201 = vrot.slane %v1174, 7
    %v1202 = vsel %vm766, %v1199, %v1201
    %v1211 = vadd.f32 %v1153, %v1187
    %v1212 = vadd.f32 %v1154, %v1189
    %v1213 = vadd.f32 %v1155, %v1191
    %v1214 = vadd.f32 %v1156, %v1193
    %v1215 = vadd.f32 %v1157, %v1196
    %v1216 = vadd.f32 %v1158, %v1198
    %v1217 = vadd.f32 %v1159, %v1200
    %v1218 = vadd.f32 %v1160, %v1202
    %v1219 = vlaneseq
    %v1220 = vshrl.u32 %v1219, 7
    %v1221 = vsub.s32 0, %v1220
    %v1222 = vrot.slane %v375, %v1221
    %v1223 = vmul.f32 %v361, %v1222
    %v1224 = vmul.f32 %v362, %v1222
    %v1225 = vmul.f32 %v363, %v1222
    %v1226 = vmul.f32 %v364, %v1222
    %v1227 = vmul.f32 %v368, %v1222
    %v1228 = vmul.f32 %v369, %v1222
    %v1229 = vmul.f32 %v370, %v1222
    %v1230 = vmul.f32 %v371, %v1222
    %v1231 = vadd.f32 %v1211, %v1223
    %v1232 = vadd.f32 %v1212, %v1224
    %v1233 = vadd.f32 %v1213, %v1225
    %v1234 = vadd.f32 %v1214, %v1226
    %v1235 = vadd.f32 %v1215, %v1227
    %v1236 = vadd.f32 %v1216, %v1228
    %v1237 = vadd.f32 %v1217, %v1229
    %v1238 = vadd.f32 %v1218, %v1230
    %v1239 = vlaneseq
    %v1240 = vshrl.u32 %v1239, 7
    %v1241 = vsub.s32 1, %v1240
    %v1242 = vrot.slane %v375, %v1241
    %v1243 = vmul.f32 %v361, %v1242
    %v1244 = vmul.f32 %v362, %v1242
    %v1245 = vmul.f32 %v363, %v1242
    %v1246 = vmul.f32 %v364, %v1242
    %v1247 = vmul.f32 %v368, %v1242
    %v1248 = vmul.f32 %v369, %v1242
    %v1249 = vmul.f32 %v370, %v1242
    %v1250 = vmul.f32 %v371, %v1242
    %v1259 = vrot.slane %v1243, 1
    %v1260 = vrot.slane %v1244, 1
    %v1261 = vsel %vm417, %v1259, %v1260
    %v1262 = vrot.slane %v1245, 1
    %v1263 = vsel %vm417, %v1260, %v1262
    %v1264 = vrot.slane %v1246, 1
    %v1265 = vsel %vm417, %v1262, %v1264
    %v1266 = vrot.slane %v1247, 1
    %v1267 = vrot.slane %v1248, 1
    %v1268 = vsel %vm417, %v1266, %v1267
    %v1269 = vrot.slane %v1249, 1
    %v1270 = vsel %vm417, %v1267, %v1269
    %v1271 = vrot.slane %v1250, 1
    %v1272 = vsel %vm417, %v1269, %v1271
    %v1281 = vadd.f32 %v1231, %v1261
    %v1282 = vadd.f32 %v1232, %v1263
    %v1283 = vadd.f32 %v1233, %v1265
    %v1284 = vadd.f32 %v1234, %v1264
    %v1285 = vadd.f32 %v1235, %v1268
    %v1286 = vadd.f32 %v1236, %v1270
    %v1287 = vadd.f32 %v1237, %v1272
    %v1288 = vadd.f32 %v1238, %v1271
    %v1289 = vlaneseq
    %v1290 = vshrl.u32 %v1289, 7
    %v1291 = vsub.s32 2, %v1290
    %v1292 = vrot.slane %v375, %v1291
    %v1293 = vmul.f32 %v361, %v1292
    %v1294 = vmul.f32 %v362, %v1292
    %v1295 = vmul.f32 %v363, %v1292
    %v1296 = vmul.f32 %v364, %v1292
    %v1297 = vmul.f32 %v365, %v1292
    %v1298 = vmul.f32 %v368, %v1292
    %v1299 = vmul.f32 %v369, %v1292
    %v1300 = vmul.f32 %v370, %v1292
    %v1301 = vmul.f32 %v371, %v1292
    %v1302 = vmul.f32 %v372, %v1292
    %v1313 = vrot.slane %v1293, 2
    %v1314 = vrot.slane %v1294, 2
    %v1315 = vsel %vm472, %v1313, %v1314
    %v1316 = vrot.slane %v1295, 2
    %v1317 = vsel %vm472, %v1314, %v1316
    %v1318 = vrot.slane %v1296, 2
    %v1319 = vsel %vm472, %v1316, %v1318
    %v1320 = vrot.slane %v1297, 2
    %v1321 = vsel %vm472, %v1318, %v1320
    %v1322 = vrot.slane %v1298, 2
    %v1323 = vrot.slane %v1299, 2
    %v1324 = vsel %vm472, %v1322, %v1323
    %v1325 = vrot.slane %v1300, 2
    %v1326 = vsel %vm472, %v1323, %v1325
    %v1327 = vrot.slane %v1301, 2
    %v1328 = vsel %vm472, %v1325, %v1327
    %v1329 = vrot.slane %v1302, 2
    %v1330 = vsel %vm472, %v1327, %v1329
    %v1339 = vadd.f32 %v1281, %v1315
    %v1340 = vadd.f32 %v1282, %v1317
    %v1341 = vadd.f32 %v1283, %v1319
    %v1342 = vadd.f32 %v1284, %v1321
    %v1343 = vadd.f32 %v1285, %v1324
    %v1344 = vadd.f32 %v1286, %v1326
    %v1345 = vadd.f32 %v1287, %v1328
    %v1346 = vadd.f32 %v1288, %v1330
    %v1347 = vlaneseq
    %v1348 = vshrl.u32 %v1347, 7
    %v1349 = vsub.s32 3, %v1348
    %v1350 = vrot.slane %v375, %v1349
    %v1351 = vmul.f32 %v361, %v1350
    %v1352 = vmul.f32 %v362, %v1350
    %v1353 = vmul.f32 %v363, %v1350
    %v1354 = vmul.f32 %v364, %v1350
    %v1355 = vmul.f32 %v365, %v1350
    %v1356 = vmul.f32 %v368, %v1350
    %v1357 = vmul.f32 %v369, %v1350
    %v1358 = vmul.f32 %v370, %v1350
    %v1359 = vmul.f32 %v371, %v1350
    %v1360 = vmul.f32 %v372, %v1350
    %v1371 = vrot.slane %v1351, 3
    %v1372 = vrot.slane %v1352, 3
    %v1373 = vsel %vm531, %v1371, %v1372
    %v1374 = vrot.slane %v1353, 3
    %v1375 = vsel %vm531, %v1372, %v1374
    %v1376 = vrot.slane %v1354, 3
    %v1377 = vsel %vm531, %v1374, %v1376
    %v1378 = vrot.slane %v1355, 3
    %v1379 = vsel %vm531, %v1376, %v1378
    %v1380 = vrot.slane %v1356, 3
    %v1381 = vrot.slane %v1357, 3
    %v1382 = vsel %vm531, %v1380, %v1381
    %v1383 = vrot.slane %v1358, 3
    %v1384 = vsel %vm531, %v1381, %v1383
    %v1385 = vrot.slane %v1359, 3
    %v1386 = vsel %vm531, %v1383, %v1385
    %v1387 = vrot.slane %v1360, 3
    %v1388 = vsel %vm531, %v1385, %v1387
    %v1397 = vadd.f32 %v1339, %v1373
    %v1398 = vadd.f32 %v1340, %v1375
    %v1399 = vadd.f32 %v1341, %v1377
    %v1400 = vadd.f32 %v1342, %v1379
    %v1401 = vadd.f32 %v1343, %v1382
    %v1402 = vadd.f32 %v1344, %v1384
    %v1403 = vadd.f32 %v1345, %v1386
    %v1404 = vadd.f32 %v1346, %v1388
    %v1405 = vlaneseq
    %v1406 = vshrl.u32 %v1405, 7
    %v1407 = vsub.s32 4, %v1406
    %v1408 = vrot.slane %v375, %v1407
    %v1409 = vmul.f32 %v361, %v1408
    %v1410 = vmul.f32 %v362, %v1408
    %v1411 = vmul.f32 %v363, %v1408
    %v1412 = vmul.f32 %v364, %v1408
    %v1413 = vmul.f32 %v365, %v1408
    %v1414 = vmul.f32 %v368, %v1408
    %v1415 = vmul.f32 %v369, %v1408
    %v1416 = vmul.f32 %v370, %v1408
    %v1417 = vmul.f32 %v371, %v1408
    %v1418 = vmul.f32 %v372, %v1408
    %v1429 = vrot.slane %v1409, 4
    %v1430 = vrot.slane %v1410, 4
    %v1431 = vsel %vm68, %v1429, %v1430
    %v1432 = vrot.slane %v1411, 4
    %v1433 = vsel %vm68, %v1430, %v1432
    %v1434 = vrot.slane %v1412, 4
    %v1435 = vsel %vm68, %v1432, %v1434
    %v1436 = vrot.slane %v1413, 4
    %v1437 = vsel %vm68, %v1434, %v1436
    %v1438 = vrot.slane %v1414, 4
    %v1439 = vrot.slane %v1415, 4
    %v1440 = vsel %vm68, %v1438, %v1439
    %v1441 = vrot.slane %v1416, 4
    %v1442 = vsel %vm68, %v1439, %v1441
    %v1443 = vrot.slane %v1417, 4
    %v1444 = vsel %vm68, %v1441, %v1443
    %v1445 = vrot.slane %v1418, 4
    %v1446 = vsel %vm68, %v1443, %v1445
    %v1455 = vadd.f32 %v1397, %v1431
    %v1456 = vadd.f32 %v1398, %v1433
    %v1457 = vadd.f32 %v1399, %v1435
    %v1458 = vadd.f32 %v1400, %v1437
    %v1459 = vadd.f32 %v1401, %v1440
    %v1460 = vadd.f32 %v1402, %v1442
    %v1461 = vadd.f32 %v1403, %v1444
    %v1462 = vadd.f32 %v1404, %v1446
    %v1463 = vlaneseq
    %v1464 = vshrl.u32 %v1463, 7
    %v1465 = vsub.s32 5, %v1464
    %v1466 = vrot.slane %v375, %v1465
    %v1467 = vmul.f32 %v361, %v1466
    %v1468 = vmul.f32 %v362, %v1466
    %v1469 = vmul.f32 %v363, %v1466
    %v1470 = vmul.f32 %v364, %v1466
    %v1471 = vmul.f32 %v365, %v1466
    %v1472 = vmul.f32 %v368, %v1466
    %v1473 = vmul.f32 %v369, %v1466
    %v1474 = vmul.f32 %v370, %v1466
    %v1475 = vmul.f32 %v371, %v1466
    %v1476 = vmul.f32 %v372, %v1466
    %v1487 = vrot.slane %v1467, 5
    %v1488 = vrot.slane %v1468, 5
    %v1489 = vsel %vm648, %v1487, %v1488
    %v1490 = vrot.slane %v1469, 5
    %v1491 = vsel %vm648, %v1488, %v1490
    %v1492 = vrot.slane %v1470, 5
    %v1493 = vsel %vm648, %v1490, %v1492
    %v1494 = vrot.slane %v1471, 5
    %v1495 = vsel %vm648, %v1492, %v1494
    %v1496 = vrot.slane %v1472, 5
    %v1497 = vrot.slane %v1473, 5
    %v1498 = vsel %vm648, %v1496, %v1497
    %v1499 = vrot.slane %v1474, 5
    %v1500 = vsel %vm648, %v1497, %v1499
    %v1501 = vrot.slane %v1475, 5
    %v1502 = vsel %vm648, %v1499, %v1501
    %v1503 = vrot.slane %v1476, 5
    %v1504 = vsel %vm648, %v1501, %v1503
    %v1513 = vadd.f32 %v1455, %v1489
    %v1514 = vadd.f32 %v1456, %v1491
    %v1515 = vadd.f32 %v1457, %v1493
    %v1516 = vadd.f32 %v1458, %v1495
    %v1517 = vadd.f32 %v1459, %v1498
    %v1518 = vadd.f32 %v1460, %v1500
    %v1519 = vadd.f32 %v1461, %v1502
    %v1520 = vadd.f32 %v1462, %v1504
    %v1521 = vlaneseq
    %v1522 = vshrl.u32 %v1521, 7
    %v1523 = vsub.s32 6, %v1522
    %v1524 = vrot.slane %v375, %v1523
    %v1525 = vmul.f32 %v361, %v1524
    %v1526 = vmul.f32 %v362, %v1524
    %v1527 = vmul.f32 %v363, %v1524
    %v1528 = vmul.f32 %v364, %v1524
    %v1529 = vmul.f32 %v365, %v1524
    %v1530 = vmul.f32 %v368, %v1524
    %v1531 = vmul.f32 %v369, %v1524
    %v1532 = vmul.f32 %v370, %v1524
    %v1533 = vmul.f32 %v371, %v1524
    %v1534 = vmul.f32 %v372, %v1524
    %v1545 = vrot.slane %v1525, 6
    %v1546 = vrot.slane %v1526, 6
    %v1547 = vsel %vm707, %v1545, %v1546
    %v1548 = vrot.slane %v1527, 6
    %v1549 = vsel %vm707, %v1546, %v1548
    %v1550 = vrot.slane %v1528, 6
    %v1551 = vsel %vm707, %v1548, %v1550
    %v1552 = vrot.slane %v1529, 6
    %v1553 = vsel %vm707, %v1550, %v1552
    %v1554 = vrot.slane %v1530, 6
    %v1555 = vrot.slane %v1531, 6
    %v1556 = vsel %vm707, %v1554, %v1555
    %v1557 = vrot.slane %v1532, 6
    %v1558 = vsel %vm707, %v1555, %v1557
    %v1559 = vrot.slane %v1533, 6
    %v1560 = vsel %vm707, %v1557, %v1559
    %v1561 = vrot.slane %v1534, 6
    %v1562 = vsel %vm707, %v1559, %v1561
    %v1571 = vadd.f32 %v1513, %v1547
    %v1572 = vadd.f32 %v1514, %v1549
    %v1573 = vadd.f32 %v1515, %v1551
    %v1574 = vadd.f32 %v1516, %v1553
    %v1575 = vadd.f32 %v1517, %v1556
    %v1576 = vadd.f32 %v1518, %v1558
    %v1577 = vadd.f32 %v1519, %v1560
    %v1578 = vadd.f32 %v1520, %v1562
    %v1579 = vlaneseq
    %v1580 = vshrl.u32 %v1579, 7
    %v1581 = vsub.s32 7, %v1580
    %v1582 = vrot.slane %v375, %v1581
    %v1583 = vmul.f32 %v361, %v1582
    %v1584 = vmul.f32 %v362, %v1582
    %v1585 = vmul.f32 %v363, %v1582
    %v1586 = vmul.f32 %v364, %v1582
    %v1587 = vmul.f32 %v365, %v1582
    %v1588 = vmul.f32 %v368, %v1582
    %v1589 = vmul.f32 %v369, %v1582
    %v1590 = vmul.f32 %v370, %v1582
    %v1591 = vmul.f32 %v371, %v1582
    %v1592 = vmul.f32 %v372, %v1582
    %v1603 = vrot.slane %v1583, 7
    %v1604 = vrot.slane %v1584, 7
    %v1605 = vsel %vm766, %v1603, %v1604
    %v1606 = vrot.slane %v1585, 7
    %v1607 = vsel %vm766, %v1604, %v1606
    %v1608 = vrot.slane %v1586, 7
    %v1609 = vsel %vm766, %v1606, %v1608
    %v1610 = vrot.slane %v1587, 7
    %v1611 = vsel %vm766, %v1608, %v1610
    %v1612 = vrot.slane %v1588, 7
    %v1613 = vrot.slane %v1589, 7
    %v1614 = vsel %vm766, %v1612, %v1613
    %v1615 = vrot.slane %v1590, 7
    %v1616 = vsel %vm766, %v1613, %v1615
    %v1617 = vrot.slane %v1591, 7
    %v1618 = vsel %vm766, %v1615, %v1617
    %v1619 = vrot.slane %v1592, 7
    %v1620 = vsel %vm766, %v1617, %v1619
    %v1629 = vadd.f32 %v1571, %v1605
    %v1630 = vadd.f32 %v1572, %v1607
    %v1631 = vadd.f32 %v1573, %v1609
    %v1632 = vadd.f32 %v1574, %v1611
    %v1633 = vadd.f32 %v1575, %v1614
    %v1634 = vadd.f32 %v1576, %v1616
    %v1635 = vadd.f32 %v1577, %v1618
    %v1636 = vadd.f32 %v1578, %v1620
    %v1637 = vlaneseq
    %v1638 = vshrl.u32 %v1637, 7
    %v1639 = vsub.s32 0, %v1638
    %v1640 = vrot.slane %v376, %v1639
    %v1641 = vmul.f32 %v362, %v1640
    %v1642 = vmul.f32 %v363, %v1640
    %v1643 = vmul.f32 %v364, %v1640
    %v1644 = vmul.f32 %v365, %v1640
    %v1645 = vmul.f32 %v369, %v1640
    %v1646 = vmul.f32 %v370, %v1640
    %v1647 = vmul.f32 %v371, %v1640
    %v1648 = vmul.f32 %v372, %v1640
    %v1649 = vadd.f32 %v1629, %v1641
    %v1650 = vadd.f32 %v1630, %v1642
    %v1651 = vadd.f32 %v1631, %v1643
    %v1652 = vadd.f32 %v1632, %v1644
    %v1653 = vadd.f32 %v1633, %v1645
    %v1654 = vadd.f32 %v1634, %v1646
    %v1655 = vadd.f32 %v1635, %v1647
    %v1656 = vadd.f32 %v1636, %v1648
    %v1657 = vsel %vm254, %v1649, 0.0
    %v1658 = vsel %vm254, %v1650, 0.0
    %v1659 = vadd.f32 %v1657, %v1658
    %v1660 = vsel %vm254, %v1651, 0.0
    %v1661 = vadd.f32 %v1659, %v1660
    %v1662 = vsel %vm260, %v1652, 0.0
    %v1663 = vadd.f32 %v1661, %v1662
    %v1664 = vsel %vm254, %v1653, 0.0
    %v1665 = vadd.f32 %v1663, %v1664
    %v1666 = vsel %vm254, %v1654, 0.0
    %v1667 = vadd.f32 %v1665, %v1666
    %v1668 = vsel %vm254, %v1655, 0.0
    %v1669 = vadd.f32 %v1667, %v1668
    %v1670 = vsel %vm260, %v1656, 0.0
    %v1671 = vadd.f32 %v1669, %v1670
    %v1672 = vrot.slane %v1671, 4
    %v1673 = vadd.f32 %v1671, %v1672
    %v1674 = vrot.slane %v1673, 2
    %v1675 = vadd.f32 %v1673, %v1674
    %v1676 = vrot.slane %v1675, 1
    %v1677 = vadd.f32 %v1675, %v1676
    %v1678 = vmul.f32 %v1677, %v284
    %v1679 = vsub.f32 %v1649, %v1678
    %v1680 = vsub.f32 %v1650, %v1678
    %v1681 = vsub.f32 %v1651, %v1678
    %v1682 = vsub.f32 %v1652, %v1678
    %v1683 = vsub.f32 %v1653, %v1678
    %v1684 = vsub.f32 %v1654, %v1678
    %v1685 = vsub.f32 %v1655, %v1678
    %v1686 = vsub.f32 %v1656, %v1678
    %v1687 = vmul.f32 %v1679, %v1679
    %v1688 = vmul.f32 %v1680, %v1680
    %v1689 = vmul.f32 %v1681, %v1681
    %v1690 = vmul.f32 %v1682, %v1682
    %v1691 = vmul.f32 %v1683, %v1683
    %v1692 = vmul.f32 %v1684, %v1684
    %v1693 = vmul.f32 %v1685, %v1685
    %v1694 = vmul.f32 %v1686, %v1686
    %v1695 = vsel %vm254, %v1687, 0.0
    %v1696 = vsel %vm254, %v1688, 0.0
    %v1697 = vadd.f32 %v1695, %v1696
    %v1698 = vsel %vm254, %v1689, 0.0
    %v1699 = vadd.f32 %v1697, %v1698
    %v1700 = vsel %vm260, %v1690, 0.0
    %v1701 = vadd.f32 %v1699, %v1700
    %v1702 = vsel %vm254, %v1691, 0.0
    %v1703 = vadd.f32 %v1701, %v1702
    %v1704 = vsel %vm254, %v1692, 0.0
    %v1705 = vadd.f32 %v1703, %v1704
    %v1706 = vsel %vm254, %v1693, 0.0
    %v1707 = vadd.f32 %v1705, %v1706
    %v1708 = vsel %vm260, %v1694, 0.0
    %v1709 = vadd.f32 %v1707, %v1708
    %v1710 = vrot.slane %v1709, 4
    %v1711 = vadd.f32 %v1709, %v1710
    %v1712 = vrot.slane %v1711, 2
    %v1713 = vadd.f32 %v1711, %v1712
    %v1714 = vrot.slane %v1713, 1
    %v1715 = vadd.f32 %v1713, %v1714
    %v1716 = vmul.f32 %v1715, %v284
    %v1717 = vadd.f32 %v1716, 1e-05
    %v1718 = vrsqrt.pop %v1717
    %v1719 = vmul.f32 %v1679, %v1718
    %v1720 = vmul.f32 %v1680, %v1718
    %v1721 = vmul.f32 %v1681, %v1718
    %v1722 = vmul.f32 %v1682, %v1718
    %v1723 = vmul.f32 %v1683, %v1718
    %v1724 = vmul.f32 %v1684, %v1718
    %v1725 = vmul.f32 %v1685, %v1718
    %v1726 = vmul.f32 %v1686, %v1718
    %v1727 = vand.u32 2147483647, %v1719
    %v1728 = vand.u32 2147483647, %v1720
    %v1729 = vand.u32 2147483647, %v1721
    %v1730 = vand.u32 2147483647, %v1722
    %v1731 = vand.u32 2147483647, %v1723
    %v1732 = vand.u32 2147483647, %v1724
    %v1733 = vand.u32 2147483647, %v1725
    %v1734 = vand.u32 2147483647, %v1726
    %1735 = vst.msk [vmem:[#allocation3] sm:$0x7f] %vm260, 0.0
    %1736 = vst.msk [vmem:[#allocation3 + $0x30] sm:$0x7f] %vm260, 0.0
    %1737 = vst.msk [vmem:[#allocation3 + $0x26] sm:$0x7f] %vm260, 0.0
    %1738 = vst.msk [vmem:[#allocation3 + $0x56] sm:$0x7f] %vm260, 0.0
    %1739 = vst.msk [vmem:[#allocation3 + $0x7] sm:$0xff] %vm254, %v1727
    %1740 = vst.msk [vmem:[#allocation3 + $0xf] sm:$0xff] %vm254, %v1728
    %1741 = vst.msk [vmem:[#allocation3 + $0x17] sm:$0xff] %vm254, %v1729
    %1742 = vst.msk [vmem:[#allocation3 + $0x1f] sm:$0x7f] %vm260, %v1730
    %1743 = vst.msk [vmem:[#allocation3 + $0x37] sm:$0xff] %vm254, %v1731
    %1744 = vst.msk [vmem:[#allocation3 + $0x3f] sm:$0xff] %vm254, %v1732
    %1745 = vst.msk [vmem:[#allocation3 + $0x47] sm:$0xff] %vm254, %v1733
    %1746 = vst.msk [vmem:[#allocation3 + $0x4f] sm:$0x7f] %vm260, %v1734
    %v1747 = vld [vmem:[#allocation3] sm:$0xff]
    %v1748 = vld [vmem:[#allocation3 + $0x8] sm:$0xff]
    %v1749 = vld [vmem:[#allocation3 + $0x10] sm:$0xff]
    %v1750 = vld [vmem:[#allocation3 + $0x18] sm:$0xff]
    %v1751 = vld [vmem:[#allocation3 + $0x20] sm:$0xff]
    %v1752 = vld [vmem:[#allocation3 + $0x28] sm:$0x1f]
    %v1753 = vld [vmem:[#allocation3 + $0x30] sm:$0xff]
    %v1754 = vld [vmem:[#allocation3 + $0x38] sm:$0xff]
    %v1755 = vld [vmem:[#allocation3 + $0x40] sm:$0xff]
    %v1756 = vld [vmem:[#allocation3 + $0x48] sm:$0xff]
    %v1757 = vld [vmem:[#allocation3 + $0x50] sm:$0xff]
    %v1758 = vld [vmem:[#allocation3 + $0x58] sm:$0x1f]
    %v1759 = vld [vmem:[%s4] sm:$0xff]
    %v1760 = vld [vmem:[%s4 + $0x8] sm:$0x7f]
    %v1761 = vld [vmem:[%s5] sm:$0x1]
    %v1762 = vlaneseq
    %v1763 = vshrl.u32 %v1762, 7
    %v1764 = vsub.s32 0, %v1763
    %v1765 = vrot.slane %v1759, %v1764
    %v1766 = vmul.f32 %v1747, %v1765
    %v1767 = vmul.f32 %v1748, %v1765
    %v1768 = vmul.f32 %v1749, %v1765
    %v1769 = vmul.f32 %v1750, %v1765
    %v1770 = vmul.f32 %v1753, %v1765
    %v1771 = vmul.f32 %v1754, %v1765
    %v1772 = vmul.f32 %v1755, %v1765
    %v1773 = vmul.f32 %v1756, %v1765
    %v1774 = vadd.f32 %v1766, 0.0
    %v1775 = vadd.f32 %v1767, 0.0
    %v1776 = vadd.f32 %v1768, 0.0
    %v1777 = vadd.f32 %v1769, 0.0
    %v1778 = vadd.f32 %v1770, 0.0
    %v1779 = vadd.f32 %v1771, 0.0
    %v1780 = vadd.f32 %v1772, 0.0
    %v1781 = vadd.f32 %v1773, 0.0
    %v1782 = vlaneseq
    %v1783 = vshrl.u32 %v1782, 7
    %v1784 = vsub.s32 1, %v1783
    %v1785 = vrot.slane %v1759, %v1784
    %v1786 = vmul.f32 %v1747, %v1785
    %v1787 = vmul.f32 %v1748, %v1785
    %v1788 = vmul.f32 %v1749, %v1785
    %v1789 = vmul.f32 %v1750, %v1785
    %v1790 = vmul.f32 %v1753, %v1785
    %v1791 = vmul.f32 %v1754, %v1785
    %v1792 = vmul.f32 %v1755, %v1785
    %v1793 = vmul.f32 %v1756, %v1785
    %v1802 = vrot.slane %v1786, 1
    %v1803 = vrot.slane %v1787, 1
    %v1804 = vsel %vm417, %v1802, %v1803
    %v1805 = vrot.slane %v1788, 1
    %v1806 = vsel %vm417, %v1803, %v1805
    %v1807 = vrot.slane %v1789, 1
    %v1808 = vsel %vm417, %v1805, %v1807
    %v1809 = vrot.slane %v1790, 1
    %v1810 = vrot.slane %v1791, 1
    %v1811 = vsel %vm417, %v1809, %v1810
    %v1812 = vrot.slane %v1792, 1
    %v1813 = vsel %vm417, %v1810, %v1812
    %v1814 = vrot.slane %v1793, 1
    %v1815 = vsel %vm417, %v1812, %v1814
    %v1824 = vadd.f32 %v1774, %v1804
    %v1825 = vadd.f32 %v1775, %v1806
    %v1826 = vadd.f32 %v1776, %v1808
    %v1827 = vadd.f32 %v1777, %v1807
    %v1828 = vadd.f32 %v1778, %v1811
    %v1829 = vadd.f32 %v1779, %v1813
    %v1830 = vadd.f32 %v1780, %v1815
    %v1831 = vadd.f32 %v1781, %v1814
    %v1832 = vlaneseq
    %v1833 = vshrl.u32 %v1832, 7
    %v1834 = vsub.s32 2, %v1833
    %v1835 = vrot.slane %v1759, %v1834
    %v1836 = vmul.f32 %v1747, %v1835
    %v1837 = vmul.f32 %v1748, %v1835
    %v1838 = vmul.f32 %v1749, %v1835
    %v1839 = vmul.f32 %v1750, %v1835
    %v1840 = vmul.f32 %v1751, %v1835
    %v1841 = vmul.f32 %v1753, %v1835
    %v1842 = vmul.f32 %v1754, %v1835
    %v1843 = vmul.f32 %v1755, %v1835
    %v1844 = vmul.f32 %v1756, %v1835
    %v1845 = vmul.f32 %v1757, %v1835
    %v1856 = vrot.slane %v1836, 2
    %v1857 = vrot.slane %v1837, 2
    %v1858 = vsel %vm472, %v1856, %v1857
    %v1859 = vrot.slane %v1838, 2
    %v1860 = vsel %vm472, %v1857, %v1859
    %v1861 = vrot.slane %v1839, 2
    %v1862 = vsel %vm472, %v1859, %v1861
    %v1863 = vrot.slane %v1840, 2
    %v1864 = vsel %vm472, %v1861, %v1863
    %v1865 = vrot.slane %v1841, 2
    %v1866 = vrot.slane %v1842, 2
    %v1867 = vsel %vm472, %v1865, %v1866
    %v1868 = vrot.slane %v1843, 2
    %v1869 = vsel %vm472, %v1866, %v1868
    %v1870 = vrot.slane %v1844, 2
    %v1871 = vsel %vm472, %v1868, %v1870
    %v1872 = vrot.slane %v1845, 2
    %v1873 = vsel %vm472, %v1870, %v1872
    %v1882 = vadd.f32 %v1824, %v1858
    %v1883 = vadd.f32 %v1825, %v1860
    %v1884 = vadd.f32 %v1826, %v1862
    %v1885 = vadd.f32 %v1827, %v1864
    %v1886 = vadd.f32 %v1828, %v1867
    %v1887 = vadd.f32 %v1829, %v1869
    %v1888 = vadd.f32 %v1830, %v1871
    %v1889 = vadd.f32 %v1831, %v1873
    %v1890 = vlaneseq
    %v1891 = vshrl.u32 %v1890, 7
    %v1892 = vsub.s32 3, %v1891
    %v1893 = vrot.slane %v1759, %v1892
    %v1894 = vmul.f32 %v1747, %v1893
    %v1895 = vmul.f32 %v1748, %v1893
    %v1896 = vmul.f32 %v1749, %v1893
    %v1897 = vmul.f32 %v1750, %v1893
    %v1898 = vmul.f32 %v1751, %v1893
    %v1899 = vmul.f32 %v1753, %v1893
    %v1900 = vmul.f32 %v1754, %v1893
    %v1901 = vmul.f32 %v1755, %v1893
    %v1902 = vmul.f32 %v1756, %v1893
    %v1903 = vmul.f32 %v1757, %v1893
    %v1914 = vrot.slane %v1894, 3
    %v1915 = vrot.slane %v1895, 3
    %v1916 = vsel %vm531, %v1914, %v1915
    %v1917 = vrot.slane %v1896, 3
    %v1918 = vsel %vm531, %v1915, %v1917
    %v1919 = vrot.slane %v1897, 3
    %v1920 = vsel %vm531, %v1917, %v1919
    %v1921 = vrot.slane %v1898, 3
    %v1922 = vsel %vm531, %v1919, %v1921
    %v1923 = vrot.slane %v1899, 3
    %v1924 = vrot.slane %v1900, 3
    %v1925 = vsel %vm531, %v1923, %v1924
    %v1926 = vrot.slane %v1901, 3
    %v1927 = vsel %vm531, %v1924, %v1926
    %v1928 = vrot.slane %v1902, 3
    %v1929 = vsel %vm531, %v1926, %v1928
    %v1930 = vrot.slane %v1903, 3
    %v1931 = vsel %vm531, %v1928, %v1930
    %v1940 = vadd.f32 %v1882, %v1916
    %v1941 = vadd.f32 %v1883, %v1918
    %v1942 = vadd.f32 %v1884, %v1920
    %v1943 = vadd.f32 %v1885, %v1922
    %v1944 = vadd.f32 %v1886, %v1925
    %v1945 = vadd.f32 %v1887, %v1927
    %v1946 = vadd.f32 %v1888, %v1929
    %v1947 = vadd.f32 %v1889, %v1931
    %v1948 = vlaneseq
    %v1949 = vshrl.u32 %v1948, 7
    %v1950 = vsub.s32 4, %v1949
    %v1951 = vrot.slane %v1759, %v1950
    %v1952 = vmul.f32 %v1747, %v1951
    %v1953 = vmul.f32 %v1748, %v1951
    %v1954 = vmul.f32 %v1749, %v1951
    %v1955 = vmul.f32 %v1750, %v1951
    %v1956 = vmul.f32 %v1751, %v1951
    %v1957 = vmul.f32 %v1753, %v1951
    %v1958 = vmul.f32 %v1754, %v1951
    %v1959 = vmul.f32 %v1755, %v1951
    %v1960 = vmul.f32 %v1756, %v1951
    %v1961 = vmul.f32 %v1757, %v1951
    %v1972 = vrot.slane %v1952, 4
    %v1973 = vrot.slane %v1953, 4
    %v1974 = vsel %vm68, %v1972, %v1973
    %v1975 = vrot.slane %v1954, 4
    %v1976 = vsel %vm68, %v1973, %v1975
    %v1977 = vrot.slane %v1955, 4
    %v1978 = vsel %vm68, %v1975, %v1977
    %v1979 = vrot.slane %v1956, 4
    %v1980 = vsel %vm68, %v1977, %v1979
    %v1981 = vrot.slane %v1957, 4
    %v1982 = vrot.slane %v1958, 4
    %v1983 = vsel %vm68, %v1981, %v1982
    %v1984 = vrot.slane %v1959, 4
    %v1985 = vsel %vm68, %v1982, %v1984
    %v1986 = vrot.slane %v1960, 4
    %v1987 = vsel %vm68, %v1984, %v1986
    %v1988 = vrot.slane %v1961, 4
    %v1989 = vsel %vm68, %v1986, %v1988
    %v1998 = vadd.f32 %v1940, %v1974
    %v1999 = vadd.f32 %v1941, %v1976
    %v2000 = vadd.f32 %v1942, %v1978
    %v2001 = vadd.f32 %v1943, %v1980
    %v2002 = vadd.f32 %v1944, %v1983
    %v2003 = vadd.f32 %v1945, %v1985
    %v2004 = vadd.f32 %v1946, %v1987
    %v2005 = vadd.f32 %v1947, %v1989
    %v2006 = vlaneseq
    %v2007 = vshrl.u32 %v2006, 7
    %v2008 = vsub.s32 5, %v2007
    %v2009 = vrot.slane %v1759, %v2008
    %v2010 = vmul.f32 %v1747, %v2009
    %v2011 = vmul.f32 %v1748, %v2009
    %v2012 = vmul.f32 %v1749, %v2009
    %v2013 = vmul.f32 %v1750, %v2009
    %v2014 = vmul.f32 %v1751, %v2009
    %v2015 = vmul.f32 %v1753, %v2009
    %v2016 = vmul.f32 %v1754, %v2009
    %v2017 = vmul.f32 %v1755, %v2009
    %v2018 = vmul.f32 %v1756, %v2009
    %v2019 = vmul.f32 %v1757, %v2009
    %v2030 = vrot.slane %v2010, 5
    %v2031 = vrot.slane %v2011, 5
    %v2032 = vsel %vm648, %v2030, %v2031
    %v2033 = vrot.slane %v2012, 5
    %v2034 = vsel %vm648, %v2031, %v2033
    %v2035 = vrot.slane %v2013, 5
    %v2036 = vsel %vm648, %v2033, %v2035
    %v2037 = vrot.slane %v2014, 5
    %v2038 = vsel %vm648, %v2035, %v2037
    %v2039 = vrot.slane %v2015, 5
    %v2040 = vrot.slane %v2016, 5
    %v2041 = vsel %vm648, %v2039, %v2040
    %v2042 = vrot.slane %v2017, 5
    %v2043 = vsel %vm648, %v2040, %v2042
    %v2044 = vrot.slane %v2018, 5
    %v2045 = vsel %vm648, %v2042, %v2044
    %v2046 = vrot.slane %v2019, 5
    %v2047 = vsel %vm648, %v2044, %v2046
    %v2056 = vadd.f32 %v1998, %v2032
    %v2057 = vadd.f32 %v1999, %v2034
    %v2058 = vadd.f32 %v2000, %v2036
    %v2059 = vadd.f32 %v2001, %v2038
    %v2060 = vadd.f32 %v2002, %v2041
    %v2061 = vadd.f32 %v2003, %v2043
    %v2062 = vadd.f32 %v2004, %v2045
    %v2063 = vadd.f32 %v2005, %v2047
    %v2064 = vlaneseq
    %v2065 = vshrl.u32 %v2064, 7
    %v2066 = vsub.s32 6, %v2065
    %v2067 = vrot.slane %v1759, %v2066
    %v2068 = vmul.f32 %v1747, %v2067
    %v2069 = vmul.f32 %v1748, %v2067
    %v2070 = vmul.f32 %v1749, %v2067
    %v2071 = vmul.f32 %v1750, %v2067
    %v2072 = vmul.f32 %v1751, %v2067
    %v2073 = vmul.f32 %v1753, %v2067
    %v2074 = vmul.f32 %v1754, %v2067
    %v2075 = vmul.f32 %v1755, %v2067
    %v2076 = vmul.f32 %v1756, %v2067
    %v2077 = vmul.f32 %v1757, %v2067
    %v2088 = vrot.slane %v2068, 6
    %v2089 = vrot.slane %v2069, 6
    %v2090 = vsel %vm707, %v2088, %v2089
    %v2091 = vrot.slane %v2070, 6
    %v2092 = vsel %vm707, %v2089, %v2091
    %v2093 = vrot.slane %v2071, 6
    %v2094 = vsel %vm707, %v2091, %v2093
    %v2095 = vrot.slane %v2072, 6
    %v2096 = vsel %vm707, %v2093, %v2095
    %v2097 = vrot.slane %v2073, 6
    %v2098 = vrot.slane %v2074, 6
    %v2099 = vsel %vm707, %v2097, %v2098
    %v2100 = vrot.slane %v2075, 6
    %v2101 = vsel %vm707, %v2098, %v2100
    %v2102 = vrot.slane %v2076, 6
    %v2103 = vsel %vm707, %v2100, %v2102
    %v2104 = vrot.slane %v2077, 6
    %v2105 = vsel %vm707, %v2102, %v2104
    %v2114 = vadd.f32 %v2056, %v2090
    %v2115 = vadd.f32 %v2057, %v2092
    %v2116 = vadd.f32 %v2058, %v2094
    %v2117 = vadd.f32 %v2059, %v2096
    %v2118 = vadd.f32 %v2060, %v2099
    %v2119 = vadd.f32 %v2061, %v2101
    %v2120 = vadd.f32 %v2062, %v2103
    %v2121 = vadd.f32 %v2063, %v2105
    %v2122 = vlaneseq
    %v2123 = vshrl.u32 %v2122, 7
    %v2124 = vsub.s32 7, %v2123
    %v2125 = vrot.slane %v1759, %v2124
    %v2126 = vmul.f32 %v1747, %v2125
    %v2127 = vmul.f32 %v1748, %v2125
    %v2128 = vmul.f32 %v1749, %v2125
    %v2129 = vmul.f32 %v1750, %v2125
    %v2130 = vmul.f32 %v1751, %v2125
    %v2131 = vmul.f32 %v1753, %v2125
    %v2132 = vmul.f32 %v1754, %v2125
    %v2133 = vmul.f32 %v1755, %v2125
    %v2134 = vmul.f32 %v1756, %v2125
    %v2135 = vmul.f32 %v1757, %v2125
    %v2146 = vrot.slane %v2126, 7
    %v2147 = vrot.slane %v2127, 7
    %v2148 = vsel %vm766, %v2146, %v2147
    %v2149 = vrot.slane %v2128, 7
    %v2150 = vsel %vm766, %v2147, %v2149
    %v2151 = vrot.slane %v2129, 7
    %v2152 = vsel %vm766, %v2149, %v2151
    %v2153 = vrot.slane %v2130, 7
    %v2154 = vsel %vm766, %v2151, %v2153
    %v2155 = vrot.slane %v2131, 7
    %v2156 = vrot.slane %v2132, 7
    %v2157 = vsel %vm766, %v2155, %v2156
    %v2158 = vrot.slane %v2133, 7
    %v2159 = vsel %vm766, %v2156, %v2158
    %v2160 = vrot.slane %v2134, 7
    %v2161 = vsel %vm766, %v2158, %v2160
    %v2162 = vrot.slane %v2135, 7
    %v2163 = vsel %vm766, %v2160, %v2162
    %v2172 = vadd.f32 %v2114, %v2148
    %v2173 = vadd.f32 %v2115, %v2150
    %v2174 = vadd.f32 %v2116, %v2152
    %v2175 = vadd.f32 %v2117, %v2154
    %v2176 = vadd.f32 %v2118, %v2157
    %v2177 = vadd.f32 %v2119, %v2159
    %v2178 = vadd.f32 %v2120, %v2161
    %v2179 = vadd.f32 %v2121, %v2163
    %v2180 = vlaneseq
    %v2181 = vshrl.u32 %v2180, 7
    %v2182 = vsub.s32 0, %v2181
    %v2183 = vrot.slane %v1760, %v2182
    %v2184 = vmul.f32 %v1748, %v2183
    %v2185 = vmul.f32 %v1749, %v2183
    %v2186 = vmul.f32 %v1750, %v2183
    %v2187 = vmul.f32 %v1751, %v2183
    %v2188 = vmul.f32 %v1754, %v2183
    %v2189 = vmul.f32 %v1755, %v2183
    %v2190 = vmul.f32 %v1756, %v2183
    %v2191 = vmul.f32 %v1757, %v2183
    %v2192 = vadd.f32 %v2172, %v2184
    %v2193 = vadd.f32 %v2173, %v2185
    %v2194 = vadd.f32 %v2174, %v2186
    %v2195 = vadd.f32 %v2175, %v2187
    %v2196 = vadd.f32 %v2176, %v2188
    %v2197 = vadd.f32 %v2177, %v2189
    %v2198 = vadd.f32 %v2178, %v2190
    %v2199 = vadd.f32 %v2179, %v2191
    %v2200 = vlaneseq
    %v2201 = vshrl.u32 %v2200, 7
    %v2202 = vsub.s32 1, %v2201
    %v2203 = vrot.slane %v1760, %v2202
    %v2204 = vmul.f32 %v1748, %v2203
    %v2205 = vmul.f32 %v1749, %v2203
    %v2206 = vmul.f32 %v1750, %v2203
    %v2207 = vmul.f32 %v1751, %v2203
    %v2208 = vmul.f32 %v1754, %v2203
    %v2209 = vmul.f32 %v1755, %v2203
    %v2210 = vmul.f32 %v1756, %v2203
    %v2211 = vmul.f32 %v1757, %v2203
    %v2220 = vrot.slane %v2204, 1
    %v2221 = vrot.slane %v2205, 1
    %v2222 = vsel %vm417, %v2220, %v2221
    %v2223 = vrot.slane %v2206, 1
    %v2224 = vsel %vm417, %v2221, %v2223
    %v2225 = vrot.slane %v2207, 1
    %v2226 = vsel %vm417, %v2223, %v2225
    %v2227 = vrot.slane %v2208, 1
    %v2228 = vrot.slane %v2209, 1
    %v2229 = vsel %vm417, %v2227, %v2228
    %v2230 = vrot.slane %v2210, 1
    %v2231 = vsel %vm417, %v2228, %v2230
    %v2232 = vrot.slane %v2211, 1
    %v2233 = vsel %vm417, %v2230, %v2232
    %v2242 = vadd.f32 %v2192, %v2222
    %v2243 = vadd.f32 %v2193, %v2224
    %v2244 = vadd.f32 %v2194, %v2226
    %v2245 = vadd.f32 %v2195, %v2225
    %v2246 = vadd.f32 %v2196, %v2229
    %v2247 = vadd.f32 %v2197, %v2231
    %v2248 = vadd.f32 %v2198, %v2233
    %v2249 = vadd.f32 %v2199, %v2232
    %v2250 = vlaneseq
    %v2251 = vshrl.u32 %v2250, 7
    %v2252 = vsub.s32 2, %v2251
    %v2253 = vrot.slane %v1760, %v2252
    %v2254 = vmul.f32 %v1748, %v2253
    %v2255 = vmul.f32 %v1749, %v2253
    %v2256 = vmul.f32 %v1750, %v2253
    %v2257 = vmul.f32 %v1751, %v2253
    %v2258 = vmul.f32 %v1752, %v2253
    %v2259 = vmul.f32 %v1754, %v2253
    %v2260 = vmul.f32 %v1755, %v2253
    %v2261 = vmul.f32 %v1756, %v2253
    %v2262 = vmul.f32 %v1757, %v2253
    %v2263 = vmul.f32 %v1758, %v2253
    %v2274 = vrot.slane %v2254, 2
    %v2275 = vrot.slane %v2255, 2
    %v2276 = vsel %vm472, %v2274, %v2275
    %v2277 = vrot.slane %v2256, 2
    %v2278 = vsel %vm472, %v2275, %v2277
    %v2279 = vrot.slane %v2257, 2
    %v2280 = vsel %vm472, %v2277, %v2279
    %v2281 = vrot.slane %v2258, 2
    %v2282 = vsel %vm472, %v2279, %v2281
    %v2283 = vrot.slane %v2259, 2
    %v2284 = vrot.slane %v2260, 2
    %v2285 = vsel %vm472, %v2283, %v2284
    %v2286 = vrot.slane %v2261, 2
    %v2287 = vsel %vm472, %v2284, %v2286
    %v2288 = vrot.slane %v2262, 2
    %v2289 = vsel %vm472, %v2286, %v2288
    %v2290 = vrot.slane %v2263, 2
    %v2291 = vsel %vm472, %v2288, %v2290
    %v2300 = vadd.f32 %v2242, %v2276
    %v2301 = vadd.f32 %v2243, %v2278
    %v2302 = vadd.f32 %v2244, %v2280
    %v2303 = vadd.f32 %v2245, %v2282
    %v2304 = vadd.f32 %v2246, %v2285
    %v2305 = vadd.f32 %v2247, %v2287
    %v2306 = vadd.f32 %v2248, %v2289
    %v2307 = vadd.f32 %v2249, %v2291
    %v2308 = vlaneseq
    %v2309 = vshrl.u32 %v2308, 7
    %v2310 = vsub.s32 3, %v2309
    %v2311 = vrot.slane %v1760, %v2310
    %v2312 = vmul.f32 %v1748, %v2311
    %v2313 = vmul.f32 %v1749, %v2311
    %v2314 = vmul.f32 %v1750, %v2311
    %v2315 = vmul.f32 %v1751, %v2311
    %v2316 = vmul.f32 %v1752, %v2311
    %v2317 = vmul.f32 %v1754, %v2311
    %v2318 = vmul.f32 %v1755, %v2311
    %v2319 = vmul.f32 %v1756, %v2311
    %v2320 = vmul.f32 %v1757, %v2311
    %v2321 = vmul.f32 %v1758, %v2311
    %v2332 = vrot.slane %v2312, 3
    %v2333 = vrot.slane %v2313, 3
    %v2334 = vsel %vm531, %v2332, %v2333
    %v2335 = vrot.slane %v2314, 3
    %v2336 = vsel %vm531, %v2333, %v2335
    %v2337 = vrot.slane %v2315, 3
    %v2338 = vsel %vm531, %v2335, %v2337
    %v2339 = vrot.slane %v2316, 3
    %v2340 = vsel %vm531, %v2337, %v2339
    %v2341 = vrot.slane %v2317, 3
    %v2342 = vrot.slane %v2318, 3
    %v2343 = vsel %vm531, %v2341, %v2342
    %v2344 = vrot.slane %v2319, 3
    %v2345 = vsel %vm531, %v2342, %v2344
    %v2346 = vrot.slane %v2320, 3
    %v2347 = vsel %vm531, %v2344, %v2346
    %v2348 = vrot.slane %v2321, 3
    %v2349 = vsel %vm531, %v2346, %v2348
    %v2358 = vadd.f32 %v2300, %v2334
    %v2359 = vadd.f32 %v2301, %v2336
    %v2360 = vadd.f32 %v2302, %v2338
    %v2361 = vadd.f32 %v2303, %v2340
    %v2362 = vadd.f32 %v2304, %v2343
    %v2363 = vadd.f32 %v2305, %v2345
    %v2364 = vadd.f32 %v2306, %v2347
    %v2365 = vadd.f32 %v2307, %v2349
    %v2366 = vlaneseq
    %v2367 = vshrl.u32 %v2366, 7
    %v2368 = vsub.s32 4, %v2367
    %v2369 = vrot.slane %v1760, %v2368
    %v2370 = vmul.f32 %v1748, %v2369
    %v2371 = vmul.f32 %v1749, %v2369
    %v2372 = vmul.f32 %v1750, %v2369
    %v2373 = vmul.f32 %v1751, %v2369
    %v2374 = vmul.f32 %v1752, %v2369
    %v2375 = vmul.f32 %v1754, %v2369
    %v2376 = vmul.f32 %v1755, %v2369
    %v2377 = vmul.f32 %v1756, %v2369
    %v2378 = vmul.f32 %v1757, %v2369
    %v2379 = vmul.f32 %v1758, %v2369
    %v2390 = vrot.slane %v2370, 4
    %v2391 = vrot.slane %v2371, 4
    %v2392 = vsel %vm68, %v2390, %v2391
    %v2393 = vrot.slane %v2372, 4
    %v2394 = vsel %vm68, %v2391, %v2393
    %v2395 = vrot.slane %v2373, 4
    %v2396 = vsel %vm68, %v2393, %v2395
    %v2397 = vrot.slane %v2374, 4
    %v2398 = vsel %vm68, %v2395, %v2397
    %v2399 = vrot.slane %v2375, 4
    %v2400 = vrot.slane %v2376, 4
    %v2401 = vsel %vm68, %v2399, %v2400
    %v2402 = vrot.slane %v2377, 4
    %v2403 = vsel %vm68, %v2400, %v2402
    %v2404 = vrot.slane %v2378, 4
    %v2405 = vsel %vm68, %v2402, %v2404
    %v2406 = vrot.slane %v2379, 4
    %v2407 = vsel %vm68, %v2404, %v2406
    %v2416 = vadd.f32 %v2358, %v2392
    %v2417 = vadd.f32 %v2359, %v2394
    %v2418 = vadd.f32 %v2360, %v2396
    %v2419 = vadd.f32 %v2361, %v2398
    %v2420 = vadd.f32 %v2362, %v2401
    %v2421 = vadd.f32 %v2363, %v2403
    %v2422 = vadd.f32 %v2364, %v2405
    %v2423 = vadd.f32 %v2365, %v2407
    %v2424 = vlaneseq
    %v2425 = vshrl.u32 %v2424, 7
    %v2426 = vsub.s32 5, %v2425
    %v2427 = vrot.slane %v1760, %v2426
    %v2428 = vmul.f32 %v1748, %v2427
    %v2429 = vmul.f32 %v1749, %v2427
    %v2430 = vmul.f32 %v1750, %v2427
    %v2431 = vmul.f32 %v1751, %v2427
    %v2432 = vmul.f32 %v1752, %v2427
    %v2433 = vmul.f32 %v1754, %v2427
    %v2434 = vmul.f32 %v1755, %v2427
    %v2435 = vmul.f32 %v1756, %v2427
    %v2436 = vmul.f32 %v1757, %v2427
    %v2437 = vmul.f32 %v1758, %v2427
    %v2448 = vrot.slane %v2428, 5
    %v2449 = vrot.slane %v2429, 5
    %v2450 = vsel %vm648, %v2448, %v2449
    %v2451 = vrot.slane %v2430, 5
    %v2452 = vsel %vm648, %v2449, %v2451
    %v2453 = vrot.slane %v2431, 5
    %v2454 = vsel %vm648, %v2451, %v2453
    %v2455 = vrot.slane %v2432, 5
    %v2456 = vsel %vm648, %v2453, %v2455
    %v2457 = vrot.slane %v2433, 5
    %v2458 = vrot.slane %v2434, 5
    %v2459 = vsel %vm648, %v2457, %v2458
    %v2460 = vrot.slane %v2435, 5
    %v2461 = vsel %vm648, %v2458, %v2460
    %v2462 = vrot.slane %v2436, 5
    %v2463 = vsel %vm648, %v2460, %v2462
    %v2464 = vrot.slane %v2437, 5
    %v2465 = vsel %vm648, %v2462, %v2464
    %v2474 = vadd.f32 %v2416, %v2450
    %v2475 = vadd.f32 %v2417, %v2452
    %v2476 = vadd.f32 %v2418, %v2454
    %v2477 = vadd.f32 %v2419, %v2456
    %v2478 = vadd.f32 %v2420, %v2459
    %v2479 = vadd.f32 %v2421, %v2461
    %v2480 = vadd.f32 %v2422, %v2463
    %v2481 = vadd.f32 %v2423, %v2465
    %v2482 = vlaneseq
    %v2483 = vshrl.u32 %v2482, 7
    %v2484 = vsub.s32 6, %v2483
    %v2485 = vrot.slane %v1760, %v2484
    %v2486 = vmul.f32 %v1748, %v2485
    %v2487 = vmul.f32 %v1749, %v2485
    %v2488 = vmul.f32 %v1750, %v2485
    %v2489 = vmul.f32 %v1751, %v2485
    %v2490 = vmul.f32 %v1752, %v2485
    %v2491 = vmul.f32 %v1754, %v2485
    %v2492 = vmul.f32 %v1755, %v2485
    %v2493 = vmul.f32 %v1756, %v2485
    %v2494 = vmul.f32 %v1757, %v2485
    %v2495 = vmul.f32 %v1758, %v2485
    %v2506 = vrot.slane %v2486, 6
    %v2507 = vrot.slane %v2487, 6
    %v2508 = vsel %vm707, %v2506, %v2507
    %v2509 = vrot.slane %v2488, 6
    %v2510 = vsel %vm707, %v2507, %v2509
    %v2511 = vrot.slane %v2489, 6
    %v2512 = vsel %vm707, %v2509, %v2511
    %v2513 = vrot.slane %v2490, 6
    %v2514 = vsel %vm707, %v2511, %v2513
    %v2515 = vrot.slane %v2491, 6
    %v2516 = vrot.slane %v2492, 6
    %v2517 = vsel %vm707, %v2515, %v2516
    %v2518 = vrot.slane %v2493, 6
    %v2519 = vsel %vm707, %v2516, %v2518
    %v2520 = vrot.slane %v2494, 6
    %v2521 = vsel %vm707, %v2518, %v2520
    %v2522 = vrot.slane %v2495, 6
    %v2523 = vsel %vm707, %v2520, %v2522
    %v2532 = vadd.f32 %v2474, %v2508
    %v2533 = vadd.f32 %v2475, %v2510
    %v2534 = vadd.f32 %v2476, %v2512
    %v2535 = vadd.f32 %v2477, %v2514
    %v2536 = vadd.f32 %v2478, %v2517
    %v2537 = vadd.f32 %v2479, %v2519
    %v2538 = vadd.f32 %v2480, %v2521
    %v2539 = vadd.f32 %v2481, %v2523
    %v2541 = vlaneseq
    %v2542 = vshrl.u32 %v2541, 7
    %v2543 = vsub.s32 0, %v2542
    %v2544 = vrot.slane %v1761, %v2543
    %v2546 = vadd.f32 %v2532, %v2544
    %v2547 = vadd.f32 %v2533, %v2544
    %v2548 = vadd.f32 %v2534, %v2544
    %v2549 = vadd.f32 %v2535, %v2544
    %v2550 = vadd.f32 %v2536, %v2544
    %v2551 = vadd.f32 %v2537, %v2544
    %v2552 = vadd.f32 %v2538, %v2544
    %v2553 = vadd.f32 %v2539, %v2544
    %v2554 = vld [vmem:[%s6] sm:$0xff]
    %v2555 = vld [vmem:[%s6 + $0x8] sm:$0xff]
    %v2556 = vld [vmem:[%s6 + $0x10] sm:$0xff]
    %v2557 = vld [vmem:[%s6 + $0x18] sm:$0x3f]
    %v2558 = vld [vmem:[%s7] sm:$0xff]
    %v2559 = vld [vmem:[%s7 + $0x8] sm:$0xff]
    %v2560 = vld [vmem:[%s7 + $0x10] sm:$0xff]
    %v2561 = vld [vmem:[%s7 + $0x18] sm:$0x3f]
    %v2562 = vld [vmem:[%s8] sm:$0x1]
    %v2564 = vlaneseq
    %v2565 = vshrl.u32 %v2564, 7
    %v2566 = vsub.s32 0, %v2565
    %v2567 = vrot.slane %v2562, %v2566
    %v2570 = vsel %vm254, %v2546, 0
    %v2573 = vsel %vm254, %v2547, 0
    %v2576 = vsel %vm254, %v2548, 0
    %v2579 = vsel %vm254, %v2549, 0
    %v2582 = vsel %vm472, %v2557, 0
    %2584 = vmatprep.subr.mxu0 0.0
    %2585 = vmatpush1.msra.mxu0 %v2554
    %2586 = vmatprep.subr.mxu0 0.0
    %2587 = vmatpush1.msra.mxu0 %v2555
    %2588 = vmatprep.subr.mxu0 0.0
    %2589 = vmatpush1.msra.mxu0 %v2556
    %2590 = vmatprep.subr.mxu0 0.0
    %2591 = vmatpush1.msra.mxu0 %v2582
    %2592 = vmatprep.subr.mxu0 0.0
    %2593 = vmatpush1.msra.mxu0 0.0
    %2594 = vmatprep.subr.mxu0 0.0
    %2595 = vmatpush1.msra.mxu0 0.0
    %2596 = vmatprep.subr.mxu0 0.0
    %2597 = vmatpush1.msra.mxu0 0.0
    %2598 = vmatprep.subr.mxu0 0.0
    %2599 = vmatpush1.msra.mxu0 0.0
    %2600 = vmatprep.subr.mxu0 0.0
    %2601 = vmatpush1.msra.mxu0 0.0
    %2602 = vmatprep.subr.mxu0 0.0
    %2603 = vmatpush1.msra.mxu0 0.0
    %2604 = vmatprep.subr.mxu0 0.0
    %2605 = vmatpush1.msra.mxu0 0.0
    %2606 = vmatprep.subr.mxu0 0.0
    %2607 = vmatpush1.msra.mxu0 0.0
    %2608 = vmatprep.subr.mxu0 0.0
    %2609 = vmatpush1.msra.mxu0 0.0
    %2610 = vmatprep.subr.mxu0 0.0
    %2611 = vmatpush1.msra.mxu0 0.0
    %2612 = vmatprep.subr.mxu0 0.0
    %2613 = vmatpush1.msra.mxu0 0.0
    %2614 = vmatprep.subr.mxu0 0.0
    %2615 = vmatpush1.msra.mxu0 0.0
    %2616 = vmatprep.subr.mxu0 0.0
    %2617 = vmatpush1.msra.mxu0 0.0
    %2618 = vmatprep.subr.mxu0 0.0
    %2619 = vmatpush1.msra.mxu0 0.0
    %2620 = vmatprep.subr.mxu0 0.0
    %2621 = vmatpush1.msra.mxu0 0.0
    %2622 = vmatprep.subr.mxu0 0.0
    %2623 = vmatpush1.msra.mxu0 0.0
    %2624 = vmatprep.subr.mxu0 0.0
    %2625 = vmatpush1.msra.mxu0 0.0
    %2626 = vmatprep.subr.mxu0 0.0
    %2627 = vmatpush1.msra.mxu0 0.0
    %2628 = vmatprep.subr.mxu0 0.0
    %2629 = vmatpush1.msra.mxu0 0.0
    %2630 = vmatprep.subr.mxu0 0.0
    %2631 = vmatpush1.msra.mxu0 0.0
    %2632 = vmatprep.subr.mxu0 0.0
    %2633 = vmatpush1.msra.mxu0 0.0
    %2634 = vmatprep.subr.mxu0 0.0
    %2635 = vmatpush1.msra.mxu0 0.0
    %2636 = vmatprep.subr.mxu0 0.0
    %2637 = vmatpush1.msra.mxu0 0.0
    %2638 = vmatprep.subr.mxu0 0.0
    %2639 = vmatpush1.msra.mxu0 0.0
    %2640 = vmatprep.subr.mxu0 0.0
    %2641 = vmatpush1.msra.mxu0 0.0
    %2642 = vmatprep.subr.mxu0 0.0
    %2643 = vmatpush1.msra.mxu0 0.0
    %2644 = vmatprep.subr.mxu0 0.0
    %2645 = vmatpush1.msra.mxu0 0.0
    %2646 = vmatprep.subr.mxu0 0.0
    %2647 = vmatpush1.msra.mxu0 0.0
    %2648 = vmatprep.mubr.f32.mxu0 0.0
    %2649 = vmatmul.mubr.f32.gmra.mrb[0].mxu0 %v2570
    %v2650 = vpop.f32.mrb[0].mxu0
    %v2651 = vadd.f32 %v2567, %v2650
    %v2652 = vpop.f32.mrb[0].mxu0
    %2653 = vmatprep.mubr.f32.mxu0 0.0
    %2654 = vmatmul.mubr.f32.gmra.mrb[0].mxu0 %v2573
    %v2655 = vpop.f32.mrb[0].mxu0
    %v2656 = vadd.f32 %v2567, %v2655
    %v2657 = vpop.f32.mrb[0].mxu0
    %2658 = vmatprep.mubr.f32.mxu0 0.0
    %2659 = vmatmul.mubr.f32.gmra.mrb[0].mxu0 %v2576
    %v2660 = vpop.f32.mrb[0].mxu0
    %v2661 = vadd.f32 %v2567, %v2660
    %v2662 = vpop.f32.mrb[0].mxu0
    %2663 = vmatprep.mubr.f32.mxu0 0.0
    %2664 = vmatmul.mubr.f32.gmra.mrb[0].mxu0 %v2579
    %v2665 = vpop.f32.mrb[0].mxu0
    %v2666 = vadd.f32 %v2567, %v2665
    %v2667 = vpop.f32.mrb[0].mxu0
    %2668 = vdwg.mxu0
    %v2670 = vsel %vm254, %v2550, 0
    %v2673 = vsel %vm254, %v2551, 0
    %v2676 = vsel %vm254, %v2552, 0
    %v2679 = vsel %vm254, %v2553, 0
    %2681 = vmatprep.subr.mxu0 0.0
    %2682 = vmatpush1.msra.mxu0 %v2554
    %2683 = vmatprep.subr.mxu0 0.0
    %2684 = vmatpush1.msra.mxu0 %v2555
    %2685 = vmatprep.subr.mxu0 0.0
    %2686 = vmatpush1.msra.mxu0 %v2556
    %2687 = vmatprep.subr.mxu0 0.0
    %2688 = vmatpush1.msra.mxu0 %v2582
    %2689 = vmatprep.subr.mxu0 0.0
    %2690 = vmatpush1.msra.mxu0 0.0
    %2691 = vmatprep.subr.mxu0 0.0
    %2692 = vmatpush1.msra.mxu0 0.0
    %2693 = vmatprep.subr.mxu0 0.0
    %2694 = vmatpush1.msra.mxu0 0.0
    %2695 = vmatprep.subr.mxu0 0.0
    %2696 = vmatpush1.msra.mxu0 0.0
    %2697 = vmatprep.subr.mxu0 0.0
    %2698 = vmatpush1.msra.mxu0 0.0
    %2699 = vmatprep.subr.mxu0 0.0
    %2700 = vmatpush1.msra.mxu0 0.0
    %2701 = vmatprep.subr.mxu0 0.0
    %2702 = vmatpush1.msra.mxu0 0.0
    %2703 = vmatprep.subr.mxu0 0.0
    %2704 = vmatpush1.msra.mxu0 0.0
    %2705 = vmatprep.subr.mxu0 0.0
    %2706 = vmatpush1.msra.mxu0 0.0
    %2707 = vmatprep.subr.mxu0 0.0
    %2708 = vmatpush1.msra.mxu0 0.0
    %2709 = vmatprep.subr.mxu0 0.0
    %2710 = vmatpush1.msra.mxu0 0.0
    %2711 = vmatprep.subr.mxu0 0.0
    %2712 = vmatpush1.msra.mxu0 0.0
    %2713 = vmatprep.subr.mxu0 0.0
    %2714 = vmatpush1.msra.mxu0 0.0
    %2715 = vmatprep.subr.mxu0 0.0
    %2716 = vmatpush1.msra.mxu0 0.0
    %2717 = vmatprep.subr.mxu0 0.0
    %2718 = vmatpush1.msra.mxu0 0.0
    %2719 = vmatprep.subr.mxu0 0.0
    %2720 = vmatpush1.msra.mxu0 0.0
    %2721 = vmatprep.subr.mxu0 0.0
    %2722 = vmatpush1.msra.mxu0 0.0
    %2723 = vmatprep.subr.mxu0 0.0
    %2724 = vmatpush1.msra.mxu0 0.0
    %2725 = vmatprep.subr.mxu0 0.0
    %2726 = vmatpush1.msra.mxu0 0.0
    %2727 = vmatprep.subr.mxu0 0.0
    %2728 = vmatpush1.msra.mxu0 0.0
    %2729 = vmatprep.subr.mxu0 0.0
    %2730 = vmatpush1.msra.mxu0 0.0
    %2731 = vmatprep.subr.mxu0 0.0
    %2732 = vmatpush1.msra.mxu0 0.0
    %2733 = vmatprep.subr.mxu0 0.0
    %2734 = vmatpush1.msra.mxu0 0.0
    %2735 = vmatprep.subr.mxu0 0.0
    %2736 = vmatpush1.msra.mxu0 0.0
    %2737 = vmatprep.subr.mxu0 0.0
    %2738 = vmatpush1.msra.mxu0 0.0
    %2739 = vmatprep.subr.mxu0 0.0
    %2740 = vmatpush1.msra.mxu0 0.0
    %2741 = vmatprep.subr.mxu0 0.0
    %2742 = vmatpush1.msra.mxu0 0.0
    %2743 = vmatprep.subr.mxu0 0.0
    %2744 = vmatpush1.msra.mxu0 0.0
    %2745 = vmatprep.mubr.f32.mxu0 0.0
    %2746 = vmatmul.mubr.f32.gmra.mrb[0].mxu0 %v2670
    %v2747 = vpop.f32.mrb[0].mxu0
    %v2748 = vadd.f32 %v2567, %v2747
    %v2749 = vpop.f32.mrb[0].mxu0
    %2750 = vmatprep.mubr.f32.mxu0 0.0
    %2751 = vmatmul.mubr.f32.gmra.mrb[0].mxu0 %v2673
    %v2752 = vpop.f32.mrb[0].mxu0
    %v2753 = vadd.f32 %v2567, %v2752
    %v2754 = vpop.f32.mrb[0].mxu0
    %2755 = vmatprep.mubr.f32.mxu0 0.0
    %2756 = vmatmul.mubr.f32.gmra.mrb[0].mxu0 %v2676
    %v2757 = vpop.f32.mrb[0].mxu0
    %v2758 = vadd.f32 %v2567, %v2757
    %v2759 = vpop.f32.mrb[0].mxu0
    %2760 = vmatprep.mubr.f32.mxu0 0.0
    %2761 = vmatmul.mubr.f32.gmra.mrb[0].mxu0 %v2679
    %v2762 = vpop.f32.mrb[0].mxu0
    %v2763 = vadd.f32 %v2567, %v2762
    %v2764 = vpop.f32.mrb[0].mxu0
    %2765 = vdwg.mxu0
    %v2767 = vrot.slane %v2748, 7
    %v2769 = vsel %vm766, %v2651, %v2767
    %v2771 = vrot.slane %v2656, 2
    %v2774 = vrot.slane %v2753, 1
    %v2776 = vsel %vm766, %v2771, %v2774
    %v2778 = vrot.slane %v2661, 4
    %v2781 = vrot.slane %v2758, 3
    %v2783 = vsel %vm766, %v2778, %v2781
    %v2785 = vrot.slane %v2666, 6
    %v2788 = vrot.slane %v2763, 5
    %v2790 = vsel %vm766, %v2785, %v2788
    %v2792 = vsel %vm254, 0.0, 0
    %v2795 = vsel %vm472, %v2561, 0
    %2797 = vmatprep.subr.mxu0 0.0
    %2798 = vmatpush1.msra.mxu0 %v2558
    %2799 = vmatprep.subr.mxu0 0.0
    %2800 = vmatpush1.msra.mxu0 %v2559
    %2801 = vmatprep.subr.mxu0 0.0
    %2802 = vmatpush1.msra.mxu0 %v2560
    %2803 = vmatprep.subr.mxu0 0.0
    %2804 = vmatpush1.msra.mxu0 %v2795
    %2805 = vmatprep.subr.mxu0 0.0
    %2806 = vmatpush1.msra.mxu0 0.0
    %2807 = vmatprep.subr.mxu0 0.0
    %2808 = vmatpush1.msra.mxu0 0.0
    %2809 = vmatprep.subr.mxu0 0.0
    %2810 = vmatpush1.msra.mxu0 0.0
    %2811 = vmatprep.subr.mxu0 0.0
    %2812 = vmatpush1.msra.mxu0 0.0
    %2813 = vmatprep.subr.mxu0 0.0
    %2814 = vmatpush1.msra.mxu0 0.0
    %2815 = vmatprep.subr.mxu0 0.0
    %2816 = vmatpush1.msra.mxu0 0.0
    %2817 = vmatprep.subr.mxu0 0.0
    %2818 = vmatpush1.msra.mxu0 0.0
    %2819 = vmatprep.subr.mxu0 0.0
    %2820 = vmatpush1.msra.mxu0 0.0
    %2821 = vmatprep.subr.mxu0 0.0
    %2822 = vmatpush1.msra.mxu0 0.0
    %2823 = vmatprep.subr.mxu0 0.0
    %2824 = vmatpush1.msra.mxu0 0.0
    %2825 = vmatprep.subr.mxu0 0.0
    %2826 = vmatpush1.msra.mxu0 0.0
    %2827 = vmatprep.subr.mxu0 0.0
    %2828 = vmatpush1.msra.mxu0 0.0
    %2829 = vmatprep.subr.mxu0 0.0
    %2830 = vmatpush1.msra.mxu0 0.0
    %2831 = vmatprep.subr.mxu0 0.0
    %2832 = vmatpush1.msra.mxu0 0.0
    %2833 = vmatprep.subr.mxu0 0.0
    %2834 = vmatpush1.msra.mxu0 0.0
    %2835 = vmatprep.subr.mxu0 0.0
    %2836 = vmatpush1.msra.mxu0 0.0
    %2837 = vmatprep.subr.mxu0 0.0
    %2838 = vmatpush1.msra.mxu0 0.0
    %2839 = vmatprep.subr.mxu0 0.0
    %2840 = vmatpush1.msra.mxu0 0.0
    %2841 = vmatprep.subr.mxu0 0.0
    %2842 = vmatpush1.msra.mxu0 0.0
    %2843 = vmatprep.subr.mxu0 0.0
    %2844 = vmatpush1.msra.mxu0 0.0
    %2845 = vmatprep.subr.mxu0 0.0
    %2846 = vmatpush1.msra.mxu0 0.0
    %2847 = vmatprep.subr.mxu0 0.0
    %2848 = vmatpush1.msra.mxu0 0.0
    %2849 = vmatprep.subr.mxu0 0.0
    %2850 = vmatpush1.msra.mxu0 0.0
    %2851 = vmatprep.subr.mxu0 0.0
    %2852 = vmatpush1.msra.mxu0 0.0
    %2853 = vmatprep.subr.mxu0 0.0
    %2854 = vmatpush1.msra.mxu0 0.0
    %2855 = vmatprep.subr.mxu0 0.0
    %2856 = vmatpush1.msra.mxu0 0.0
    %2857 = vmatprep.subr.mxu0 0.0
    %2858 = vmatpush1.msra.mxu0 0.0
    %2859 = vmatprep.subr.mxu0 0.0
    %2860 = vmatpush1.msra.mxu0 0.0
    %2861 = vmatprep.mubr.f32.mxu0 0.0
    %2862 = vmatmul.mubr.f32.gmra.mrb[0].mxu0 %v2792
    %v2863 = vpop.f32.mrb[0].mxu0
    %v2864 = vadd.f32 0.0, %v2863
    %v2865 = vpop.f32.mrb[0].mxu0
    %2866 = vdwg.mxu0
    %v2867 = vadd.f32 %v2769, %v2864
    %v2868 = vadd.f32 %v2790, %v2864
    %v2869 = vsub.f32 0.0, %v2867
    %v2870 = vmul.f32 %v2869, 1.442695
    %v2871 = vpow.pop %v2870
    %v2872 = vadd.f32 %v2871, 1.0
    %v2873 = vrcp.pop %v2872
    %v2874 = vmul.f32 1.0, %v2873
    %v2875 = vtanh.pop %v2867
    %v2876 = vmul.f32 %v2874, 0.0
    %2878 = vrot.lane.b32.xlu0 %v2875, 98
    %v2879 = vpop.permute.xlu0 %2878
    %v2881 = vmul.f32 %v2874, %v2879
    %2883 = vrot.lane.b32.xlu0 %v2881, 15
    %v2884 = vpop.permute.xlu0 %2883
    %v2886 = vadd.f32 %v2876, %v2884
    %v2887 = vtanh.pop %v2886
    %2889 = vrot.lane.b32.xlu0 %v2887, 30
    %v2890 = vpop.permute.xlu0 %2889
    %v2892 = vmul.f32 %v2874, %v2890
    %v2893 = vsub.f32 0.0, %v2868
    %v2894 = vmul.f32 %v2893, 1.442695
    %v2895 = vpow.pop %v2894
    %v2896 = vadd.f32 %v2895, 1.0
    %v2897 = vrcp.pop %v2896
    %v2898 = vmul.f32 1.0, %v2897
    %v2899 = vtanh.pop %v2868
    %v2900 = vmul.f32 %v2898, 0.0
    %2902 = vrot.lane.b32.xlu0 %v2899, 98
    %v2903 = vpop.permute.xlu0 %2902
    %v2905 = vmul.f32 %v2898, %v2903
    %2907 = vrot.lane.b32.xlu0 %v2905, 15
    %v2908 = vpop.permute.xlu0 %2907
    %v2910 = vadd.f32 %v2900, %v2908
    %v2911 = vtanh.pop %v2910
    %2913 = vrot.lane.b32.xlu0 %v2911, 30
    %v2914 = vpop.permute.xlu0 %2913
    %v2916 = vmul.f32 %v2898, %v2914
    %2918 = vrot.lane.b32.xlu0 %v2892, 83
    %v2919 = vpop.permute.xlu0 %2918
    %2922 = vrot.lane.b32.xlu0 %v2916, 38
    %v2923 = vpop.permute.xlu0 %2922
    %vm2925 = vcmask 121856
    %v2926 = vsel %vm2925, %v2919, %v2923
    %v2928 = vsel %vm254, %v2926, 0
    %2930 = vmatprep.subr.mxu0 0.0
    %2931 = vmatpush1.msra.mxu0 %v2558
    %2932 = vmatprep.subr.mxu0 0.0
    %2933 = vmatpush1.msra.mxu0 %v2559
    %2934 = vmatprep.subr.mxu0 0.0
    %2935 = vmatpush1.msra.mxu0 %v2560
    %2936 = vmatprep.subr.mxu0 0.0
    %2937 = vmatpush1.msra.mxu0 %v2795
    %2938 = vmatprep.subr.mxu0 0.0
    %2939 = vmatpush1.msra.mxu0 0.0
    %2940 = vmatprep.subr.mxu0 0.0
    %2941 = vmatpush1.msra.mxu0 0.0
    %2942 = vmatprep.subr.mxu0 0.0
    %2943 = vmatpush1.msra.mxu0 0.0
    %2944 = vmatprep.subr.mxu0 0.0
    %2945 = vmatpush1.msra.mxu0 0.0
    %2946 = vmatprep.subr.mxu0 0.0
    %2947 = vmatpush1.msra.mxu0 0.0
    %2948 = vmatprep.subr.mxu0 0.0
    %2949 = vmatpush1.msra.mxu0 0.0
    %2950 = vmatprep.subr.mxu0 0.0
    %2951 = vmatpush1.msra.mxu0 0.0
    %2952 = vmatprep.subr.mxu0 0.0
    %2953 = vmatpush1.msra.mxu0 0.0
    %2954 = vmatprep.subr.mxu0 0.0
    %2955 = vmatpush1.msra.mxu0 0.0
    %2956 = vmatprep.subr.mxu0 0.0
    %2957 = vmatpush1.msra.mxu0 0.0
    %2958 = vmatprep.subr.mxu0 0.0
    %2959 = vmatpush1.msra.mxu0 0.0
    %2960 = vmatprep.subr.mxu0 0.0
    %2961 = vmatpush1.msra.mxu0 0.0
    %2962 = vmatprep.subr.mxu0 0.0
    %2963 = vmatpush1.msra.mxu0 0.0
    %2964 = vmatprep.subr.mxu0 0.0
    %2965 = vmatpush1.msra.mxu0 0.0
    %2966 = vmatprep.subr.mxu0 0.0
    %2967 = vmatpush1.msra.mxu0 0.0
    %2968 = vmatprep.subr.mxu0 0.0
    %2969 = vmatpush1.msra.mxu0 0.0
    %2970 = vmatprep.subr.mxu0 0.0
    %2971 = vmatpush1.msra.mxu0 0.0
    %2972 = vmatprep.subr.mxu0 0.0
    %2973 = vmatpush1.msra.mxu0 0.0
    %2974 = vmatprep.subr.mxu0 0.0
    %2975 = vmatpush1.msra.mxu0 0.0
    %2976 = vmatprep.subr.mxu0 0.0
    %2977 = vmatpush1.msra.mxu0 0.0
    %2978 = vmatprep.subr.mxu0 0.0
    %2979 = vmatpush1.msra.mxu0 0.0
    %2980 = vmatprep.subr.mxu0 0.0
    %2981 = vmatpush1.msra.mxu0 0.0
    %2982 = vmatprep.subr.mxu0 0.0
    %2983 = vmatpush1.msra.mxu0 0.0
    %2984 = vmatprep.subr.mxu0 0.0
    %2985 = vmatpush1.msra.mxu0 0.0
    %2986 = vmatprep.subr.mxu0 0.0
    %2987 = vmatpush1.msra.mxu0 0.0
    %2988 = vmatprep.subr.mxu0 0.0
    %2989 = vmatpush1.msra.mxu0 0.0
    %2990 = vmatprep.subr.mxu0 0.0
    %2991 = vmatpush1.msra.mxu0 0.0
    %2992 = vmatprep.subr.mxu0 0.0
    %2993 = vmatpush1.msra.mxu0 0.0
    %2994 = vmatprep.mubr.f32.mxu0 0.0
    %2995 = vmatmul.mubr.f32.gmra.mrb[0].mxu0 %v2928
    %v2996 = vpop.f32.mrb[0].mxu0
    %v2997 = vadd.f32 0.0, %v2996
    %v2998 = vpop.f32.mrb[0].mxu0
    %2999 = vdwg.mxu0
    %v3000 = vadd.f32 %v2776, %v2997
    %v3001 = vadd.f32 %v2783, %v2997
    %v3002 = vsub.f32 0.0, %v3000
    %v3003 = vmul.f32 %v3002, 1.442695
    %v3004 = vpow.pop %v3003
    %v3005 = vadd.f32 %v3004, 1.0
    %v3006 = vrcp.pop %v3005
    %v3007 = vmul.f32 1.0, %v3006
    %v3008 = vtanh.pop %v3000
    %v3009 = vmul.f32 %v3007, %v2886
    %3011 = vrot.lane.b32.xlu0 %v3008, 98
    %v3012 = vpop.permute.xlu0 %3011
    %v3014 = vmul.f32 %v3007, %v3012
    %3016 = vrot.lane.b32.xlu0 %v3014, 15
    %v3017 = vpop.permute.xlu0 %3016
    %v3019 = vadd.f32 %v3009, %v3017
    %v3020 = vtanh.pop %v3019
    %3022 = vrot.lane.b32.xlu0 %v3020, 30
    %v3023 = vpop.permute.xlu0 %3022
    %v3025 = vmul.f32 %v3007, %v3023
    %v3026 = vsub.f32 0.0, %v3001
    %v3027 = vmul.f32 %v3026, 1.442695
    %v3028 = vpow.pop %v3027
    %v3029 = vadd.f32 %v3028, 1.0
    %v3030 = vrcp.pop %v3029
    %v3031 = vmul.f32 1.0, %v3030
    %v3032 = vtanh.pop %v3001
    %v3033 = vmul.f32 %v3031, %v2910
    %3035 = vrot.lane.b32.xlu0 %v3032, 98
    %v3036 = vpop.permute.xlu0 %3035
    %v3038 = vmul.f32 %v3031, %v3036
    %3040 = vrot.lane.b32.xlu0 %v3038, 15
    %v3041 = vpop.permute.xlu0 %3040
    %v3043 = vadd.f32 %v3033, %v3041
    %v3044 = vtanh.pop %v3043
    %3046 = vrot.lane.b32.xlu0 %v3044, 30
    %v3047 = vpop.permute.xlu0 %3046
    %v3049 = vmul.f32 %v3031, %v3047
    %3051 = vrot.lane.b32.xlu0 %v3025, 83
    %v3052 = vpop.permute.xlu0 %3051
    %3055 = vrot.lane.b32.xlu0 %v3049, 38
    %v3056 = vpop.permute.xlu0 %3055
    %v3058 = vsel %vm2925, %v3052, %v3056
    %v3060 = vsel %vm254, %v3058, 0
    %3062 = vmatprep.subr.mxu0 0.0
    %3063 = vmatpush1.msra.mxu0 %v2558
    %3064 = vmatprep.subr.mxu0 0.0
    %3065 = vmatpush1.msra.mxu0 %v2559
    %3066 = vmatprep.subr.mxu0 0.0
    %3067 = vmatpush1.msra.mxu0 %v2560
    %3068 = vmatprep.subr.mxu0 0.0
    %3069 = vmatpush1.msra.mxu0 %v2795
    %3070 = vmatprep.subr.mxu0 0.0
    %3071 = vmatpush1.msra.mxu0 0.0
    %3072 = vmatprep.subr.mxu0 0.0
    %3073 = vmatpush1.msra.mxu0 0.0
    %3074 = vmatprep.subr.mxu0 0.0
    %3075 = vmatpush1.msra.mxu0 0.0
    %3076 = vmatprep.subr.mxu0 0.0
    %3077 = vmatpush1.msra.mxu0 0.0
    %3078 = vmatprep.subr.mxu0 0.0
    %3079 = vmatpush1.msra.mxu0 0.0
    %3080 = vmatprep.subr.mxu0 0.0
    %3081 = vmatpush1.msra.mxu0 0.0
    %3082 = vmatprep.subr.mxu0 0.0
    %3083 = vmatpush1.msra.mxu0 0.0
    %3084 = vmatprep.subr.mxu0 0.0
    %3085 = vmatpush1.msra.mxu0 0.0
    %3086 = vmatprep.subr.mxu0 0.0
    %3087 = vmatpush1.msra.mxu0 0.0
    %3088 = vmatprep.subr.mxu0 0.0
    %3089 = vmatpush1.msra.mxu0 0.0
    %3090 = vmatprep.subr.mxu0 0.0
    %3091 = vmatpush1.msra.mxu0 0.0
    %3092 = vmatprep.subr.mxu0 0.0
    %3093 = vmatpush1.msra.mxu0 0.0
    %3094 = vmatprep.subr.mxu0 0.0
    %3095 = vmatpush1.msra.mxu0 0.0
    %3096 = vmatprep.subr.mxu0 0.0
    %3097 = vmatpush1.msra.mxu0 0.0
    %3098 = vmatprep.subr.mxu0 0.0
    %3099 = vmatpush1.msra.mxu0 0.0
    %3100 = vmatprep.subr.mxu0 0.0
    %3101 = vmatpush1.msra.mxu0 0.0
    %3102 = vmatprep.subr.mxu0 0.0
    %3103 = vmatpush1.msra.mxu0 0.0
    %3104 = vmatprep.subr.mxu0 0.0
    %3105 = vmatpush1.msra.mxu0 0.0
    %3106 = vmatprep.subr.mxu0 0.0
    %3107 = vmatpush1.msra.mxu0 0.0
    %3108 = vmatprep.subr.mxu0 0.0
    %3109 = vmatpush1.msra.mxu0 0.0
    %3110 = vmatprep.subr.mxu0 0.0
    %3111 = vmatpush1.msra.mxu0 0.0
    %3112 = vmatprep.subr.mxu0 0.0
    %3113 = vmatpush1.msra.mxu0 0.0
    %3114 = vmatprep.subr.mxu0 0.0
    %3115 = vmatpush1.msra.mxu0 0.0
    %3116 = vmatprep.subr.mxu0 0.0
    %3117 = vmatpush1.msra.mxu0 0.0
    %3118 = vmatprep.subr.mxu0 0.0
    %3119 = vmatpush1.msra.mxu0 0.0
    %3120 = vmatprep.subr.mxu0 0.0
    %3121 = vmatpush1.msra.mxu0 0.0
    %3122 = vmatprep.subr.mxu0 0.0
    %3123 = vmatpush1.msra.mxu0 0.0
    %3124 = vmatprep.subr.mxu0 0.0
    %3125 = vmatpush1.msra.mxu0 0.0
    %3126 = vmatprep.mubr.f32.mxu0 0.0
    %3127 = vmatmul.mubr.f32.gmra.mrb[0].mxu0 %v3060
    %v3128 = vpop.f32.mrb[0].mxu0
    %v3129 = vadd.f32 0.0, %v3128
    %v3130 = vpop.f32.mrb[0].mxu0
    %3131 = vdwg.mxu0
    %v3132 = vadd.f32 %v2783, %v3129
    %v3133 = vadd.f32 %v2776, %v3129
    %v3134 = vsub.f32 0.0, %v3132
    %v3135 = vmul.f32 %v3134, 1.442695
    %v3136 = vpow.pop %v3135
    %v3137 = vadd.f32 %v3136, 1.0
    %v3138 = vrcp.pop %v3137
    %v3139 = vmul.f32 1.0, %v3138
    %v3140 = vtanh.pop %v3132
    %v3141 = vmul.f32 %v3139, %v3019
    %3143 = vrot.lane.b32.xlu0 %v3140, 98
    %v3144 = vpop.permute.xlu0 %3143
    %v3146 = vmul.f32 %v3139, %v3144
    %3148 = vrot.lane.b32.xlu0 %v3146, 15
    %v3149 = vpop.permute.xlu0 %3148
    %v3151 = vadd.f32 %v3141, %v3149
    %v3152 = vtanh.pop %v3151
    %3154 = vrot.lane.b32.xlu0 %v3152, 30
    %v3155 = vpop.permute.xlu0 %3154
    %v3157 = vmul.f32 %v3139, %v3155
    %v3158 = vsub.f32 0.0, %v3133
    %v3159 = vmul.f32 %v3158, 1.442695
    %v3160 = vpow.pop %v3159
    %v3161 = vadd.f32 %v3160, 1.0
    %v3162 = vrcp.pop %v3161
    %v3163 = vmul.f32 1.0, %v3162
    %v3164 = vtanh.pop %v3133
    %v3165 = vmul.f32 %v3163, %v3043
    %3167 = vrot.lane.b32.xlu0 %v3164, 98
    %v3168 = vpop.permute.xlu0 %3167
    %v3170 = vmul.f32 %v3163, %v3168
    %3172 = vrot.lane.b32.xlu0 %v3170, 15
    %v3173 = vpop.permute.xlu0 %3172
    %v3175 = vadd.f32 %v3165, %v3173
    %v3176 = vtanh.pop %v3175
    %3178 = vrot.lane.b32.xlu0 %v3176, 30
    %v3179 = vpop.permute.xlu0 %3178
    %v3181 = vmul.f32 %v3163, %v3179
    %3183 = vrot.lane.b32.xlu0 %v3157, 83
    %v3184 = vpop.permute.xlu0 %3183
    %3187 = vrot.lane.b32.xlu0 %v3181, 38
    %v3188 = vpop.permute.xlu0 %3187
    %v3190 = vsel %vm2925, %v3184, %v3188
    %v3192 = vsel %vm254, %v3190, 0
    %3194 = vmatprep.subr.mxu0 0.0
    %3195 = vmatpush1.msra.mxu0 %v2558
    %3196 = vmatprep.subr.mxu0 0.0
    %3197 = vmatpush1.msra.mxu0 %v2559
    %3198 = vmatprep.subr.mxu0 0.0
    %3199 = vmatpush1.msra.mxu0 %v2560
    %3200 = vmatprep.subr.mxu0 0.0
    %3201 = vmatpush1.msra.mxu0 %v2795
    %3202 = vmatprep.subr.mxu0 0.0
    %3203 = vmatpush1.msra.mxu0 0.0
    %3204 = vmatprep.subr.mxu0 0.0
    %3205 = vmatpush1.msra.mxu0 0.0
    %3206 = vmatprep.subr.mxu0 0.0
    %3207 = vmatpush1.msra.mxu0 0.0
    %3208 = vmatprep.subr.mxu0 0.0
    %3209 = vmatpush1.msra.mxu0 0.0
    %3210 = vmatprep.subr.mxu0 0.0
    %3211 = vmatpush1.msra.mxu0 0.0
    %3212 = vmatprep.subr.mxu0 0.0
    %3213 = vmatpush1.msra.mxu0 0.0
    %3214 = vmatprep.subr.mxu0 0.0
    %3215 = vmatpush1.msra.mxu0 0.0
    %3216 = vmatprep.subr.mxu0 0.0
    %3217 = vmatpush1.msra.mxu0 0.0
    %3218 = vmatprep.subr.mxu0 0.0
    %3219 = vmatpush1.msra.mxu0 0.0
    %3220 = vmatprep.subr.mxu0 0.0
    %3221 = vmatpush1.msra.mxu0 0.0
    %3222 = vmatprep.subr.mxu0 0.0
    %3223 = vmatpush1.msra.mxu0 0.0
    %3224 = vmatprep.subr.mxu0 0.0
    %3225 = vmatpush1.msra.mxu0 0.0
    %3226 = vmatprep.subr.mxu0 0.0
    %3227 = vmatpush1.msra.mxu0 0.0
    %3228 = vmatprep.subr.mxu0 0.0
    %3229 = vmatpush1.msra.mxu0 0.0
    %3230 = vmatprep.subr.mxu0 0.0
    %3231 = vmatpush1.msra.mxu0 0.0
    %3232 = vmatprep.subr.mxu0 0.0
    %3233 = vmatpush1.msra.mxu0 0.0
    %3234 = vmatprep.subr.mxu0 0.0
    %3235 = vmatpush1.msra.mxu0 0.0
    %3236 = vmatprep.subr.mxu0 0.0
    %3237 = vmatpush1.msra.mxu0 0.0
    %3238 = vmatprep.subr.mxu0 0.0
    %3239 = vmatpush1.msra.mxu0 0.0
    %3240 = vmatprep.subr.mxu0 0.0
    %3241 = vmatpush1.msra.mxu0 0.0
    %3242 = vmatprep.subr.mxu0 0.0
    %3243 = vmatpush1.msra.mxu0 0.0
    %3244 = vmatprep.subr.mxu0 0.0
    %3245 = vmatpush1.msra.mxu0 0.0
    %3246 = vmatprep.subr.mxu0 0.0
    %3247 = vmatpush1.msra.mxu0 0.0
    %3248 = vmatprep.subr.mxu0 0.0
    %3249 = vmatpush1.msra.mxu0 0.0
    %3250 = vmatprep.subr.mxu0 0.0
    %3251 = vmatpush1.msra.mxu0 0.0
    %3252 = vmatprep.subr.mxu0 0.0
    %3253 = vmatpush1.msra.mxu0 0.0
    %3254 = vmatprep.subr.mxu0 0.0
    %3255 = vmatpush1.msra.mxu0 0.0
    %3256 = vmatprep.subr.mxu0 0.0
    %3257 = vmatpush1.msra.mxu0 0.0
    %3258 = vmatprep.mubr.f32.mxu0 0.0
    %3259 = vmatmul.mubr.f32.gmra.mrb[0].mxu0 %v3192
    %v3260 = vpop.f32.mrb[0].mxu0
    %v3261 = vadd.f32 0.0, %v3260
    %v3262 = vpop.f32.mrb[0].mxu0
    %3263 = vdwg.mxu0
    %v3264 = vadd.f32 %v2790, %v3261
    %v3265 = vadd.f32 %v2769, %v3261
    %v3266 = vsub.f32 0.0, %v3264
    %v3267 = vmul.f32 %v3266, 1.442695
    %v3268 = vpow.pop %v3267
    %v3269 = vadd.f32 %v3268, 1.0
    %v3270 = vrcp.pop %v3269
    %v3271 = vmul.f32 1.0, %v3270
    %v3272 = vtanh.pop %v3264
    %v3273 = vmul.f32 %v3271, %v3151
    %3275 = vrot.lane.b32.xlu0 %v3272, 98
    %v3276 = vpop.permute.xlu0 %3275
    %v3278 = vmul.f32 %v3271, %v3276
    %3280 = vrot.lane.b32.xlu0 %v3278, 15
    %v3281 = vpop.permute.xlu0 %3280
    %v3283 = vadd.f32 %v3273, %v3281
    %v3284 = vtanh.pop %v3283
    %3286 = vrot.lane.b32.xlu0 %v3284, 30
    %v3287 = vpop.permute.xlu0 %3286
    %v3289 = vmul.f32 %v3271, %v3287
    %v3290 = vsub.f32 0.0, %v3265
    %v3291 = vmul.f32 %v3290, 1.442695
    %v3292 = vpow.pop %v3291
    %v3293 = vadd.f32 %v3292, 1.0
    %v3294 = vrcp.pop %v3293
    %v3295 = vmul.f32 1.0, %v3294
    %v3296 = vtanh.pop %v3265
    %v3297 = vmul.f32 %v3295, %v3175
    %3299 = vrot.lane.b32.xlu0 %v3296, 98
    %v3300 = vpop.permute.xlu0 %3299
    %v3302 = vmul.f32 %v3295, %v3300
    %3304 = vrot.lane.b32.xlu0 %v3302, 15
    %v3305 = vpop.permute.xlu0 %3304
    %v3307 = vadd.f32 %v3297, %v3305
    %v3308 = vtanh.pop %v3307
    %3310 = vrot.lane.b32.xlu0 %v3308, 30
    %v3311 = vpop.permute.xlu0 %3310
    %v3313 = vmul.f32 %v3295, %v3311
    %3315 = vrot.lane.b32.xlu0 %v3313, 38
    %v3316 = vpop.permute.xlu0 %3315
    %v3318 = vsel %vm2925, %v2919, %v3316
    %v3319 = vsel %vm2925, %v3052, %v3188
    %v3320 = vsel %vm2925, %v3184, %v3056
    %3322 = vrot.lane.b32.xlu0 %v3289, 83
    %v3323 = vpop.permute.xlu0 %3322
    %v3325 = vsel %vm2925, %v3323, %v2923
    %3327 = vrot.lane.b32.xlu0 %v3319, 30
    %v3328 = vpop.permute.xlu0 %3327
    %3331 = vrot.lane.b32.xlu0 %v3320, 60
    %v3332 = vpop.permute.xlu0 %3331
    %3335 = vrot.lane.b32.xlu0 %v3325, 90
    %v3336 = vpop.permute.xlu0 %3335
    %v3338 = vsel %vm254, %v3318, %v3328
    %vm3339 = vcmask 490496
    %v3340 = vsel %vm3339, %v3338, %v3332
    %vm3341 = vcmask 736256
    %v3342 = vsel %vm3341, %v3340, %v3336
    %vm3343 = vcmask 975872
    %v3344 = vsel %vm3343, %v3342, 0.0
    %v3345 = vrot.slane %v3344, 4
    %v3346 = vadd.f32 %v3344, %v3345
    %v3347 = vrot.slane %v3346, 2
    %v3348 = vadd.f32 %v3346, %v3347
    %v3349 = vrot.slane %v3348, 1
    %v3350 = vadd.f32 %v3348, %v3349
    %v3351 = vrcp.pop 2.0
    %v3352 = vmul.f32 %v3350, %v3351
    %v3353 = vsub.f32 %v3342, %v3352
    %v3354 = vmul.f32 %v3353, %v3353
    %v3355 = vsel %vm3343, %v3354, 0.0
    %v3356 = vrot.slane %v3355, 4
    %v3357 = vadd.f32 %v3355, %v3356
    %v3358 = vrot.slane %v3357, 2
    %v3359 = vadd.f32 %v3357, %v3358
    %v3360 = vrot.slane %v3359, 1
    %v3361 = vadd.f32 %v3359, %v3360
    %v3362 = vmul.f32 %v3361, %v3351
    %v3363 = vadd.f32 %v3362, 1e-05
    %v3364 = vrsqrt.pop %v3363
    %v3365 = vmul.f32 %v3353, %v3364
    %v3366 = vld [vmem:[%s9] sm:$0xff]
    %v3367 = vld [vmem:[%s9 + $0x8] sm:$0xff]
    %v3368 = vld [vmem:[%s9 + $0x10] sm:$0xff]
    %v3369 = vld [vmem:[%s9 + $0x18] sm:$0xff]
    %v3370 = vld [vmem:[%s9 + $0x20] sm:$0xff]
    %v3371 = vld [vmem:[%s9 + $0x28] sm:$0xff]
    %v3372 = vld [vmem:[%s9 + $0x30] sm:$0xff]
    %v3373 = vld [vmem:[%s9 + $0x38] sm:$0xff]
    %v3374 = vld [vmem:[%s9 + $0x40] sm:$0xff]
    %v3375 = vld [vmem:[%s9 + $0x48] sm:$0xff]
    %v3376 = vld [vmem:[%s9 + $0x50] sm:$0xff]
    %v3377 = vld [vmem:[%s9 + $0x58] sm:$0xff]
    %v3378 = vld [vmem:[%s9 + $0x60] sm:$0xff]
    %v3379 = vld [vmem:[%s9 + $0x68] sm:$0xff]
    %v3380 = vld [vmem:[%s9 + $0x70] sm:$0xff]
    %v3381 = vld [vmem:[%s10] sm:$0x1]
    %v3383 = vlaneseq
    %v3384 = vshrl.u32 %v3383, 7
    %v3385 = vsub.s32 0, %v3384
    %v3386 = vrot.slane %v3381, %v3385
    %vm3388 = vcmask 982016
    %v3390 = vsel %vm3388, %v3365, 0
    %3392 = vmatprep.subr.mxu0 0.0
    %3393 = vmatpush1.msra.mxu0 %v3366
    %3394 = vmatprep.subr.mxu0 0.0
    %3395 = vmatpush1.msra.mxu0 %v3367
    %3396 = vmatprep.subr.mxu0 0.0
    %3397 = vmatpush1.msra.mxu0 %v3368
    %3398 = vmatprep.subr.mxu0 0.0
    %3399 = vmatpush1.msra.mxu0 %v3369
    %3400 = vmatprep.subr.mxu0 0.0
    %3401 = vmatpush1.msra.mxu0 %v3370
    %3402 = vmatprep.subr.mxu0 0.0
    %3403 = vmatpush1.msra.mxu0 %v3371
    %3404 = vmatprep.subr.mxu0 0.0
    %3405 = vmatpush1.msra.mxu0 %v3372
    %3406 = vmatprep.subr.mxu0 0.0
    %3407 = vmatpush1.msra.mxu0 %v3373
    %3408 = vmatprep.subr.mxu0 0.0
    %3409 = vmatpush1.msra.mxu0 %v3374
    %3410 = vmatprep.subr.mxu0 0.0
    %3411 = vmatpush1.msra.mxu0 %v3375
    %3412 = vmatprep.subr.mxu0 0.0
    %3413 = vmatpush1.msra.mxu0 %v3376
    %3414 = vmatprep.subr.mxu0 0.0
    %3415 = vmatpush1.msra.mxu0 %v3377
    %3416 = vmatprep.subr.mxu0 0.0
    %3417 = vmatpush1.msra.mxu0 %v3378
    %3418 = vmatprep.subr.mxu0 0.0
    %3419 = vmatpush1.msra.mxu0 %v3379
    %3420 = vmatprep.subr.mxu0 0.0
    %3421 = vmatpush1.msra.mxu0 %v3380
    %3422 = vmatprep.subr.mxu0 0.0
    %3423 = vmatpush1.msra.mxu0 0.0
    %3424 = vmatprep.subr.mxu0 0.0
    %3425 = vmatpush1.msra.mxu0 0.0
    %3426 = vmatprep.subr.mxu0 0.0
    %3427 = vmatpush1.msra.mxu0 0.0
    %3428 = vmatprep.subr.mxu0 0.0
    %3429 = vmatpush1.msra.mxu0 0.0
    %3430 = vmatprep.subr.mxu0 0.0
    %3431 = vmatpush1.msra.mxu0 0.0
    %3432 = vmatprep.subr.mxu0 0.0
    %3433 = vmatpush1.msra.mxu0 0.0
    %3434 = vmatprep.subr.mxu0 0.0
    %3435 = vmatpush1.msra.mxu0 0.0
    %3436 = vmatprep.subr.mxu0 0.0
    %3437 = vmatpush1.msra.mxu0 0.0
    %3438 = vmatprep.subr.mxu0 0.0
    %3439 = vmatpush1.msra.mxu0 0.0
    %3440 = vmatprep.subr.mxu0 0.0
    %3441 = vmatpush1.msra.mxu0 0.0
    %3442 = vmatprep.subr.mxu0 0.0
    %3443 = vmatpush1.msra.mxu0 0.0
    %3444 = vmatprep.subr.mxu0 0.0
    %3445 = vmatpush1.msra.mxu0 0.0
    %3446 = vmatprep.subr.mxu0 0.0
    %3447 = vmatpush1.msra.mxu0 0.0
    %3448 = vmatprep.subr.mxu0 0.0
    %3449 = vmatpush1.msra.mxu0 0.0
    %3450 = vmatprep.subr.mxu0 0.0
    %3451 = vmatpush1.msra.mxu0 0.0
    %3452 = vmatprep.subr.mxu0 0.0
    %3453 = vmatpush1.msra.mxu0 0.0
    %3454 = vmatprep.subr.mxu0 0.0
    %3455 = vmatpush1.msra.mxu0 0.0
    %3456 = vmatprep.mubr.f32.mxu0 0.0
    %3457 = vmatmul.mubr.f32.gmra.mrb[0].mxu0 %v3390
    %v3458 = vpop.f32.mrb[0].mxu0
    %v3459 = vadd.f32 %v3386, %v3458
    %v3460 = vpop.f32.mrb[0].mxu0
    %3461 = vdwg.mxu0
    %vm3462 = vcmask 9216
    %3463 = vst.msk [vmem:[#allocation4] sm:$0x3] %vm3462, %v3459
    // Predicated region
    $region46: #{tpu_custom_call.1} parent=1 // pred_check
      _
    $region47: #{tpu_custom_call.1} parent=1 // pred_check_branch
      %3465 = sbr.rel (0) target = $region49
    $region48: #{tpu_custom_call.1} parent=1 // pred_region
      %s3467 = ssub.s32 32, 32
      %3468 = vsyncadd [#allocation5], %s3467
      %s3470 = sshll.u32 [#allocation4], 4
      %s3471 = int_to_ptr.vmem [resolvable:$true] %s3470
      %3473 = dma.vmem_to_hbm [thread:$0]  %s3471, 32, %s11, [#allocation5]
    $region49: #{tpu_custom_call.1} parent=1 // pred_fallthru
      _
    // Predicated region
    $region50: #{tpu_custom_call.1} parent=1 // pred_check
      _
    $region51: #{tpu_custom_call.1} parent=1 // pred_check_branch
      %3475 = sbr.rel (0) target = $region53
    $region52: #{tpu_custom_call.1} parent=1 // pred_region
      %3476 = dma.done [#allocation5], 32
    $region53: #{tpu_custom_call.1} parent=1 // pred_fallthru
      _
    %3477 = vsyncpa [#allocation5], 1

</llo_original>
